<compile_context>
chip_gen: v5e
topology: v5e:2x2
jax: 0.10.0
libtpu: 0.0.40
codegen_flags: <defaults>
</compile_context>

<pallas_src>
import jax
import jax.numpy as jnp
from jax import lax
from jax.experimental import pallas as pl
from jax.experimental.pallas import tpu as pltpu


def _bottleneck_kernel(x_ref, xt_ref, xb_ref,
                       w1_ref, b1_ref, w2_ref, b2_ref, w3_ref, b3_ref,
                       o_ref, h1s_ref):
    """One (batch image, TH-row stripe) step of the fused Bottleneck block.

    x_ref  : (1, TH, W, Cin)    bf16  input stripe
    xt_ref : (1, 1,  W, Cin)    bf16  row above the stripe (clamped at image top)
    xb_ref : (1, 1,  W, Cin)    bf16  row below the stripe (clamped at image bottom)
    w1_ref : (Cin, width)       bf16  conv1 weight, BN1 scale folded in
    b1_ref : (1, width)         f32   BN1 bias
    w2_ref : (3, Kpad, width)   bf16  conv2 slab: per ky, the 3 kx taps stacked on K
    b2_ref : (1, width)         f32   BN2 bias
    w3_ref : (width, Cout)      bf16  conv3 weight, BN3 scale folded in
    b3_ref : (1, Cout)          f32   BN3 bias
    o_ref  : (1, TH, W, Cout)   bf16  output stripe
    h1s_ref: ((TH+2)*W, Kpad)   bf16  scratch: kx-stacked, column-shifted conv1 window
    """
    TH, W, Cout = o_ref.shape[1], o_ref.shape[2], o_ref.shape[3]
    Cin = x_ref.shape[3]
    width = w1_ref.shape[1]
    Kpad = w2_ref.shape[1]
    hb = pl.program_id(1)
    HB = pl.num_programs(1)

    w1 = w1_ref[...]
    b1 = b1_ref[...]

    # ---- conv1 (1x1) + bias + ReLU: one big matmul on the main stripe ----
    x_main = x_ref[...].reshape(TH * W, Cin)
    h1_main = jnp.maximum(
        jnp.dot(x_main, w1, preferred_element_type=jnp.float32) + b1, 0.0)

    # conv1 on the two halo rows; zeroed at the image top / bottom so conv2's
    # zero-padding semantics hold (scalar select over a single row only).
    def _halo(row_ref, valid):
        h = jnp.dot(row_ref[...].reshape(W, Cin), w1,
                    preferred_element_type=jnp.float32) + b1
        return jnp.where(valid, jnp.maximum(h, 0.0), 0.0)

    h1_top = _halo(xt_ref, hb > 0)
    h1_bot = _halo(xb_ref, hb < HB - 1)

    # (TH+2, W, width) conv1 window in bf16 (concat along the untiled leading axis)
    h1w = jnp.concatenate(
        [h1_top.reshape(1, W, width),
         h1_main.reshape(TH, W, width),
         h1_bot.reshape(1, W, width)], axis=0).astype(jnp.bfloat16)

    # ---- stage conv2 operand: kx taps stacked along K (lane-dense Kpad).
    #      The W-axis (column) shift is paid once here; the scratch is then
    #      written with a single full-width unmasked store. ----
    zc = jnp.zeros((TH + 2, 1, width), jnp.bfloat16)
    left = jnp.concatenate([zc, h1w[:, :W - 1, :]], axis=1)    # taps column w-1
    right = jnp.concatenate([h1w[:, 1:, :], zc], axis=1)       # taps column w+1
    pieces = [left, h1w, right]
    if Kpad > 3 * width:
        pieces.append(jnp.zeros((TH + 2, W, Kpad - 3 * width), jnp.bfloat16))
    h1s_ref[...] = jnp.concatenate(pieces, axis=-1).reshape((TH + 2) * W, Kpad)

    # ---- conv2 (3x3, stride 1, pad 1): 3 MXU matmuls (one per ky);
    #      operands are sublane-aligned row slices of the scratch ----
    acc = jnp.dot(h1s_ref[0:TH * W, :], w2_ref[0],
                  preferred_element_type=jnp.float32)
    acc = acc + jnp.dot(h1s_ref[W:W + TH * W, :], w2_ref[1],
                        preferred_element_type=jnp.float32)
    acc = acc + jnp.dot(h1s_ref[2 * W:2 * W + TH * W, :], w2_ref[2],
                        preferred_element_type=jnp.float32)
    h2 = jnp.maximum(acc + b2_ref[...], 0.0).astype(jnp.bfloat16)

    # ---- conv3 (1x1) + bias + identity residual + final ReLU, chunked over
    #      row sub-blocks so the live f32 (Cout-lane) state stays in vregs ----
    w3 = w3_ref[...]
    b3 = b3_ref[...]
    thc = TH
    for cand in range(min(TH, max(1, 64 // W)), 0, -1):
        if TH % cand == 0:
            thc = cand
            break
    for c in range(TH // thc):
        r0 = c * thc
        h2c = h2[r0 * W:(r0 + thc) * W]
        h3c = jnp.dot(h2c, w3, preferred_element_type=jnp.float32) + b3
        xres = x_ref[0, r0:r0 + thc].reshape(thc * W, Cin).astype(jnp.float32)
        outc = jnp.maximum(h3c + xres, 0.0)
        o_ref[0, r0:r0 + thc] = outc.reshape(thc, W, Cout).astype(o_ref.dtype)


def fold_bn(gamma, beta, mean, var, eps=1e-5):
    scale = gamma / jnp.sqrt(var + eps)
    bias = beta - mean * scale
    return scale, bias


def _pick_block_h(H, W):
    best = 1
    for d in range(1, H + 1):
        if H % d == 0 and d * W <= 1024:
            best = d
    return best


def bottleneck_forward(x_nchw, params, *, block_h=None):
    """Fused Bottleneck forward.  x_nchw: (N, Cin, H, W) -> (N, Cout, H, W) bf16."""
    x = jnp.transpose(x_nchw, (0, 2, 3, 1)).astype(jnp.bfloat16)     # NCHW -> NHWC, bf16
    N, H, W, Cin = x.shape

    # ---- fold BN scale into conv weights (host side); keep only biases ----
    s1, b1 = fold_bn(*params["bn1"])
    s2, b2 = fold_bn(*params["bn2"])
    s3, b3 = fold_bn(*params["bn3"])

    w1 = jnp.transpose(params["conv1_w"][:, :, 0, 0], (1, 0)) * s1[None, :]
    w2 = jnp.transpose(params["conv2_w"], (2, 3, 1, 0)) * s2[None, None, None, :]
    w3 = jnp.transpose(params["conv3_w"][:, :, 0, 0], (1, 0)) * s3[None, :]
    width = w1.shape[1]
    Cout = w3.shape[1]
    if Cin != Cout:
        raise NotImplementedError(
            "identity residual requires Cin == Cout (downsample not implemented)")

    w1s = w1.astype(jnp.bfloat16)                                    # (Cin, width)
    w3s = w3.astype(jnp.bfloat16)                                    # (width, Cout)
    w2s = w2.astype(jnp.bfloat16)                                    # (ky, kx, i, o)

    # conv2 slab: per ky, the three kx taps stacked along K; K padded to a full
    # lane-tile multiple (192 -> 256 at width=64) with zero rows.
    Kpad = ((3 * width + 127) // 128) * 128
    pad_rows = Kpad - 3 * width
    slabs = []
    for ky in range(3):
        parts = [w2s[ky, 0], w2s[ky, 1], w2s[ky, 2]]
        if pad_rows:
            parts.append(jnp.zeros((pad_rows, width), jnp.bfloat16))
        slabs.append(jnp.concatenate(parts, axis=0))
    w2_slab = jnp.stack(slabs, axis=0)                               # (3, Kpad, width)

    b1r = b1.reshape(1, width).astype(jnp.float32)
    b2r = b2.reshape(1, width).astype(jnp.float32)
    b3r = b3.reshape(1, Cout).astype(jnp.float32)

    # ---- spatial tiling over H; halo rows sliced directly from x via clamped
    #      index maps (no padded copy / gather arrays in HBM) ----
    TH = block_h if block_h is not None else _pick_block_h(H, W)
    if H % TH != 0:
        TH = H
    HB = H // TH

    def x_map(n, hb):
        return (n, hb, 0, 0)

    def top_map(n, hb):                                   # row above the stripe
        return (n, jnp.maximum(hb * TH - 1, 0), 0, 0)

    def bot_map(n, hb):                                   # row below the stripe
        return (n, jnp.minimum(hb * TH + TH, H - 1), 0, 0)

    flops = 2 * N * H * W * (Cin * width + 9 * width * width + width * Cout)
    bytes_accessed = int(2 * x.size                       # bf16 input stripes
                         + 2 * 2 * N * HB * W * Cin       # bf16 halo rows
                         + 2 * N * H * W * Cout           # bf16 output
                         + 2 * (w1s.size + w2_slab.size + w3s.size)
                         + 4 * (b1r.size + b2r.size + b3r.size))

    weight_spec = pl.BlockSpec(memory_space=pltpu.MemorySpace.VMEM)  # resident whole array
    out_nhwc = pl.pallas_call(
        _bottleneck_kernel,
        out_shape=jax.ShapeDtypeStruct((N, H, W, Cout), jnp.bfloat16),
        grid=(N, HB),
        in_specs=[
            pl.BlockSpec((1, TH, W, Cin), x_map),
            pl.BlockSpec((1, 1, W, Cin), top_map),
            pl.BlockSpec((1, 1, W, Cin), bot_map),
            weight_spec,   # w1 (scale folded)
            weight_spec,   # b1
            weight_spec,   # w2 slab (K padded)
            weight_spec,   # b2
            weight_spec,   # w3 (scale folded)
            weight_spec,   # b3
        ],
        out_specs=pl.BlockSpec((1, TH, W, Cout), x_map),
        scratch_shapes=[pltpu.VMEM(((TH + 2) * W, Kpad), jnp.bfloat16)],
        compiler_params=pltpu.CompilerParams(
            dimension_semantics=("parallel", "parallel"),
            vmem_limit_bytes=32 * 1024 * 1024,
        ),
        cost_estimate=pl.CostEstimate(flops=flops, transcendentals=0,
                                      bytes_accessed=bytes_accessed),
    )(x, x, x, w1s, b1r, w2_slab, b2r, w3s, b3r)

    return jnp.transpose(out_nhwc, (0, 3, 1, 2))                     # NHWC -> NCHW (bf16)


def reference_forward(x_nchw, params):
    """lax.conv reference with the same numerics as the kernel (inference-folded
    BN, bf16 conv inputs, f32 accumulation/epilogue, bf16 residual + output)."""
    x = jnp.transpose(x_nchw, (0, 2, 3, 1)).astype(jnp.bfloat16)
    dn = ("NHWC", "HWIO", "NHWC")
    s1, b1 = fold_bn(*params["bn1"])
    s2, b2 = fold_bn(*params["bn2"])
    s3, b3 = fold_bn(*params["bn3"])
    w1 = (jnp.transpose(params["conv1_w"], (2, 3, 1, 0)) * s1).astype(jnp.bfloat16)
    w2 = (jnp.transpose(params["conv2_w"], (2, 3, 1, 0)) * s2).astype(jnp.bfloat16)
    w3 = (jnp.transpose(params["conv3_w"], (2, 3, 1, 0)) * s3).astype(jnp.bfloat16)

    def conv(a, w, pad):
        return lax.conv_general_dilated(
            a.astype(jnp.bfloat16), w, (1, 1), pad, dimension_numbers=dn,
            preferred_element_type=jnp.float32)

    h = jnp.maximum(conv(x, w1, "VALID") + b1, 0.0)
    h = jnp.maximum(conv(h, w2, "SAME") + b2, 0.0)
    h = conv(h, w3, "VALID") + b3
    out = jnp.maximum(h + x.astype(jnp.float32), 0.0).astype(jnp.bfloat16)
    return jnp.transpose(out, (0, 3, 1, 2))


def make_params(key, inplanes, planes, base_width=64, groups=1):
    width = int(planes * (base_width / 64.0)) * groups
    cout = planes * 4  # expansion
    ks = jax.random.split(key, 6)

    def bn_params(k, c):
        k1, k2, k3, k4 = jax.random.split(k, 4)
        gamma = 1.0 + 0.1 * jax.random.normal(k1, (c,), jnp.float32)
        beta = 0.1 * jax.random.normal(k2, (c,), jnp.float32)
        mean = 0.1 * jax.random.normal(k3, (c,), jnp.float32)
        var = jnp.abs(jax.random.normal(k4, (c,), jnp.float32)) + 0.5
        return (gamma, beta, mean, var)

    def conv_w(k, shape):
        fan_in = shape[1] * shape[2] * shape[3]
        return jax.random.normal(k, shape, jnp.float32) / jnp.sqrt(float(fan_in))

    return {
        "conv1_w": conv_w(ks[0], (width, inplanes, 1, 1)),
        "bn1": bn_params(ks[1], width),
        "conv2_w": conv_w(ks[2], (width, width, 3, 3)),
        "bn2": bn_params(ks[3], width),
        "conv3_w": conv_w(ks[4], (cout, width, 1, 1)),
        "bn3": bn_params(ks[5], cout),
    }


if __name__ == "__main__":
    key = jax.random.PRNGKey(0)
    k_x, k_p = jax.random.split(key)

    # Bottleneck(inplanes=256, planes=64): width=64, Cout=256, stride=1,
    # downsample=None (identity residual requires inplanes == planes * 4).
    # Lane-dense channel counts per the perf review; shapes stay small.
    N, inplanes, H, W = 2, 256, 16, 16
    planes = 64

    x = jax.random.normal(k_x, (N, inplanes, H, W), jnp.float32)
    params = make_params(k_p, inplanes, planes)

    out = jax.block_until_ready(jax.jit(bottleneck_forward)(x, params))
    ref = reference_forward(x, params)

    assert out.shape == (N, planes * 4, H, W), out.shape
    err = float(jnp.max(jnp.abs(out.astype(jnp.float32) - ref.astype(jnp.float32))))
    # bf16 activation streaming + bf16 output (f32 accumulation/epilogue inside):
    # both sides apply the same final bf16 rounding, so the remaining drift is
    # accumulation-order noise plus at most ~1 output ulp; a structural bug
    # would show up as O(1).
    assert err < 1e-1, f"max abs err {err}"
    print("KERNEL_OK")
</pallas_src>

<mosaic_0001>
module attributes {stable_mosaic.version = 11 : i64} {
  func.func @_bottleneck_kernel(%arg0: i32, %arg1: i32, %arg2: memref<1x16x16x256xbf16, #tpu.memory_space<vmem>>, %arg3: memref<1x1x16x256xbf16, #tpu.memory_space<vmem>>, %arg4: memref<1x1x16x256xbf16, #tpu.memory_space<vmem>>, %arg5: memref<256x64xbf16, #tpu.memory_space<vmem>>, %arg6: memref<1x64xf32, #tpu.memory_space<vmem>>, %arg7: memref<3x256x64xbf16, #tpu.memory_space<vmem>>, %arg8: memref<1x64xf32, #tpu.memory_space<vmem>>, %arg9: memref<64x256xbf16, #tpu.memory_space<vmem>>, %arg10: memref<1x256xf32, #tpu.memory_space<vmem>>, %arg11: memref<1x16x16x256xbf16, #tpu.memory_space<vmem>>, %arg12: memref<288x256xbf16, #tpu.memory_space<vmem>>) attributes {dimension_semantics = [#tpu.dimension_semantics<parallel>, #tpu.dimension_semantics<parallel>], iteration_bounds = array<i64: 2, 1>, scalar_prefetch = 0 : i64, scratch_operands = 1 : i64, tpu.core_type = #tpu.core_type<tc>, window_params = [{transform_indices = @transform_0, window_bounds = array<i64: 1, 16, 16, 256>}, {transform_indices = @transform_1, window_bounds = array<i64: 1, 1, 16, 256>}, {transform_indices = @transform_2, window_bounds = array<i64: 1, 1, 16, 256>}, {pipeline_mode = #tpu.pipeline_mode<synchronous>, transform_indices = @transform_3, window_bounds = array<i64: 256, 64>}, {pipeline_mode = #tpu.pipeline_mode<synchronous>, transform_indices = @transform_4, window_bounds = array<i64: 1, 64>}, {pipeline_mode = #tpu.pipeline_mode<synchronous>, transform_indices = @transform_5, window_bounds = array<i64: 3, 256, 64>}, {pipeline_mode = #tpu.pipeline_mode<synchronous>, transform_indices = @transform_6, window_bounds = array<i64: 1, 64>}, {pipeline_mode = #tpu.pipeline_mode<synchronous>, transform_indices = @transform_7, window_bounds = array<i64: 64, 256>}, {pipeline_mode = #tpu.pipeline_mode<synchronous>, transform_indices = @transform_8, window_bounds = array<i64: 1, 256>}, {transform_indices = @transform_9, window_bounds = array<i64: 1, 16, 16, 256>}]} {
    %c0 = arith.constant 0 : index
    %c0_0 = arith.constant 0 : index
    %0 = vector.load %arg5[%c0, %c0_0] : memref<256x64xbf16, #tpu.memory_space<vmem>>, vector<256x64xbf16>
    %c0_1 = arith.constant 0 : index
    %c0_2 = arith.constant 0 : index
    %1 = vector.load %arg6[%c0_1, %c0_2] : memref<1x64xf32, #tpu.memory_space<vmem>>, vector<1x64xf32>
    %c0_3 = arith.constant 0 : index
    %c0_4 = arith.constant 0 : index
    %c0_5 = arith.constant 0 : index
    %c0_6 = arith.constant 0 : index
    %2 = vector.load %arg2[%c0_3, %c0_4, %c0_5, %c0_6] : memref<1x16x16x256xbf16, #tpu.memory_space<vmem>>, vector<1x16x16x256xbf16>
    %3 = vector.shape_cast %2 : vector<1x16x16x256xbf16> to vector<256x256xbf16>
    %cst = arith.constant dense<0.000000e+00> : vector<256x64xf32>
    %4 = tpu.matmul %3, %0, %cst {dimension_numbers = #tpu.dot_dimension_numbers<[1], [0], [0], [1], [0, 0, 1, 1], [], []>} : vector<256x256xbf16>, vector<256x64xbf16>, vector<256x64xf32> -> vector<256x64xf32>
    %5 = vector.broadcast %1 : vector<1x64xf32> to vector<256x64xf32>
    %6 = arith.addf %4, %5 : vector<256x64xf32>
    %cst_7 = arith.constant 0.000000e+00 : f32
    %7 = vector.broadcast %cst_7 : f32 to vector<256x64xf32>
    %8 = arith.maximumf %6, %7 : vector<256x64xf32>
    %c0_i32 = arith.constant 0 : i32
    %9 = arith.cmpi sgt, %arg1, %c0_i32 : i32
    %c0_8 = arith.constant 0 : index
    %c0_9 = arith.constant 0 : index
    %c0_10 = arith.constant 0 : index
    %c0_11 = arith.constant 0 : index
    %10 = vector.load %arg3[%c0_8, %c0_9, %c0_10, %c0_11] : memref<1x1x16x256xbf16, #tpu.memory_space<vmem>>, vector<1x1x16x256xbf16>
    %11 = vector.shape_cast %10 : vector<1x1x16x256xbf16> to vector<16x256xbf16>
    %cst_12 = arith.constant dense<0.000000e+00> : vector<16x64xf32>
    %12 = tpu.matmul %11, %0, %cst_12 {dimension_numbers = #tpu.dot_dimension_numbers<[1], [0], [0], [1], [0, 0, 1, 1], [], []>} : vector<16x256xbf16>, vector<256x64xbf16>, vector<16x64xf32> -> vector<16x64xf32>
    %13 = vector.broadcast %1 : vector<1x64xf32> to vector<16x64xf32>
    %14 = arith.addf %12, %13 : vector<16x64xf32>
    %cst_13 = arith.constant 0.000000e+00 : f32
    %15 = vector.broadcast %cst_13 : f32 to vector<16x64xf32>
    %16 = arith.maximumf %14, %15 : vector<16x64xf32>
    %cst_14 = arith.constant 0.000000e+00 : f32
    %17 = vector.broadcast %cst_14 : f32 to vector<16x64xf32>
    %18 = arith.select %9, %16, %17 : vector<16x64xf32>
    %c0_i32_15 = arith.constant 0 : i32
    %19 = arith.cmpi slt, %arg1, %c0_i32_15 : i32
    %c0_16 = arith.constant 0 : index
    %c0_17 = arith.constant 0 : index
    %c0_18 = arith.constant 0 : index
    %c0_19 = arith.constant 0 : index
    %20 = vector.load %arg4[%c0_16, %c0_17, %c0_18, %c0_19] : memref<1x1x16x256xbf16, #tpu.memory_space<vmem>>, vector<1x1x16x256xbf16>
    %21 = vector.shape_cast %20 : vector<1x1x16x256xbf16> to vector<16x256xbf16>
    %cst_20 = arith.constant dense<0.000000e+00> : vector<16x64xf32>
    %22 = tpu.matmul %21, %0, %cst_20 {dimension_numbers = #tpu.dot_dimension_numbers<[1], [0], [0], [1], [0, 0, 1, 1], [], []>} : vector<16x256xbf16>, vector<256x64xbf16>, vector<16x64xf32> -> vector<16x64xf32>
    %23 = vector.broadcast %1 : vector<1x64xf32> to vector<16x64xf32>
    %24 = arith.addf %22, %23 : vector<16x64xf32>
    %cst_21 = arith.constant 0.000000e+00 : f32
    %25 = vector.broadcast %cst_21 : f32 to vector<16x64xf32>
    %26 = arith.maximumf %24, %25 : vector<16x64xf32>
    %cst_22 = arith.constant 0.000000e+00 : f32
    %27 = vector.broadcast %cst_22 : f32 to vector<16x64xf32>
    %28 = arith.select %19, %26, %27 : vector<16x64xf32>
    %29 = vector.shape_cast %18 : vector<16x64xf32> to vector<1x16x64xf32>
    %30 = vector.shape_cast %8 : vector<256x64xf32> to vector<16x16x64xf32>
    %31 = vector.shape_cast %28 : vector<16x64xf32> to vector<1x16x64xf32>
    %32 = tpu.concatenate %29, %30, %31 in 0 : vector<1x16x64xf32>, vector<16x16x64xf32>, vector<1x16x64xf32> -> vector<18x16x64xf32>
    %33 = arith.truncf %32 : vector<18x16x64xf32> to vector<18x16x64xbf16>
    %cst_23 = arith.constant 0.000000e+00 : bf16
    %34 = vector.broadcast %cst_23 : bf16 to vector<18x1x64xbf16>
    %35 = vector.extract_strided_slice %33 {offsets = [0, 0, 0], sizes = [18, 15, 64], strides = [1, 1, 1]} : vector<18x16x64xbf16> to vector<18x15x64xbf16>
    %36 = tpu.concatenate %34, %35 in 1 : vector<18x1x64xbf16>, vector<18x15x64xbf16> -> vector<18x16x64xbf16>
    %37 = vector.extract_strided_slice %33 {offsets = [0, 1, 0], sizes = [18, 15, 64], strides = [1, 1, 1]} : vector<18x16x64xbf16> to vector<18x15x64xbf16>
    %38 = tpu.concatenate %37, %34 in 1 : vector<18x15x64xbf16>, vector<18x1x64xbf16> -> vector<18x16x64xbf16>
    %cst_24 = arith.constant 0.000000e+00 : bf16
    %39 = vector.broadcast %cst_24 : bf16 to vector<18x16x64xbf16>
    %40 = tpu.concatenate %36, %33, %38, %39 in 2 : vector<18x16x64xbf16>, vector<18x16x64xbf16>, vector<18x16x64xbf16>, vector<18x16x64xbf16> -> vector<18x16x256xbf16>
    %41 = vector.shape_cast %40 : vector<18x16x256xbf16> to vector<288x256xbf16>
    %c0_25 = arith.constant 0 : index
    %c0_26 = arith.constant 0 : index
    %42 = vector.load %arg12[%c0_25, %c0_26] : memref<288x256xbf16, #tpu.memory_space<vmem>>, vector<288x256xbf16>
    tpu.vector_store %arg12[%c0_25, %c0_26], %41 {strides = array<i32>} : memref<288x256xbf16, #tpu.memory_space<vmem>>, vector<288x256xbf16>,
    %c0_27 = arith.constant 0 : index
    %c0_28 = arith.constant 0 : index
    %43 = vector.load %arg12[%c0_27, %c0_28] : memref<288x256xbf16, #tpu.memory_space<vmem>>, vector<256x256xbf16>
    %c0_29 = arith.constant 0 : index
    %c0_30 = arith.constant 0 : index
    %c0_31 = arith.constant 0 : index
    %44 = vector.load %arg7[%c0_29, %c0_30, %c0_31] : memref<3x256x64xbf16, #tpu.memory_space<vmem>>, vector<1x256x64xbf16>
    %45 = vector.shape_cast %44 : vector<1x256x64xbf16> to vector<256x64xbf16>
    %cst_32 = arith.constant dense<0.000000e+00> : vector<256x64xf32>
    %46 = tpu.matmul %43, %45, %cst_32 {dimension_numbers = #tpu.dot_dimension_numbers<[1], [0], [0], [1], [0, 0, 1, 1], [], []>} : vector<256x256xbf16>, vector<256x64xbf16>, vector<256x64xf32> -> vector<256x64xf32>
    %c16 = arith.constant 16 : index
    %c0_33 = arith.constant 0 : index
    %47 = vector.load %arg12[%c16, %c0_33] : memref<288x256xbf16, #tpu.memory_space<vmem>>, vector<256x256xbf16>
    %c1 = arith.constant 1 : index
    %c0_34 = arith.constant 0 : index
    %c0_35 = arith.constant 0 : index
    %48 = vector.load %arg7[%c1, %c0_34, %c0_35] : memref<3x256x64xbf16, #tpu.memory_space<vmem>>, vector<1x256x64xbf16>
    %49 = vector.shape_cast %48 : vector<1x256x64xbf16> to vector<256x64xbf16>
    %cst_36 = arith.constant dense<0.000000e+00> : vector<256x64xf32>
    %50 = tpu.matmul %47, %49, %cst_36 {dimension_numbers = #tpu.dot_dimension_numbers<[1], [0], [0], [1], [0, 0, 1, 1], [], []>} : vector<256x256xbf16>, vector<256x64xbf16>, vector<256x64xf32> -> vector<256x64xf32>
    %51 = arith.addf %46, %50 : vector<256x64xf32>
    %c32 = arith.constant 32 : index
    %c0_37 = arith.constant 0 : index
    %52 = vector.load %arg12[%c32, %c0_37] : memref<288x256xbf16, #tpu.memory_space<vmem>>, vector<256x256xbf16>
    %c2 = arith.constant 2 : index
    %c0_38 = arith.constant 0 : index
    %c0_39 = arith.constant 0 : index
    %53 = vector.load %arg7[%c2, %c0_38, %c0_39] : memref<3x256x64xbf16, #tpu.memory_space<vmem>>, vector<1x256x64xbf16>
    %54 = vector.shape_cast %53 : vector<1x256x64xbf16> to vector<256x64xbf16>
    %cst_40 = arith.constant dense<0.000000e+00> : vector<256x64xf32>
    %55 = tpu.matmul %52, %54, %cst_40 {dimension_numbers = #tpu.dot_dimension_numbers<[1], [0], [0], [1], [0, 0, 1, 1], [], []>} : vector<256x256xbf16>, vector<256x64xbf16>, vector<256x64xf32> -> vector<256x64xf32>
    %56 = arith.addf %51, %55 : vector<256x64xf32>
    %c0_41 = arith.constant 0 : index
    %c0_42 = arith.constant 0 : index
    %57 = vector.load %arg8[%c0_41, %c0_42] : memref<1x64xf32, #tpu.memory_space<vmem>>, vector<1x64xf32>
    %58 = vector.broadcast %57 : vector<1x64xf32> to vector<256x64xf32>
    %59 = arith.addf %56, %58 : vector<256x64xf32>
    %cst_43 = arith.constant 0.000000e+00 : f32
    %60 = vector.broadcast %cst_43 : f32 to vector<256x64xf32>
    %61 = arith.maximumf %59, %60 : vector<256x64xf32>
    %62 = arith.truncf %61 : vector<256x64xf32> to vector<256x64xbf16>
    %c0_44 = arith.constant 0 : index
    %c0_45 = arith.constant 0 : index
    %63 = vector.load %arg9[%c0_44, %c0_45] : memref<64x256xbf16, #tpu.memory_space<vmem>>, vector<64x256xbf16>
    %c0_46 = arith.constant 0 : index
    %c0_47 = arith.constant 0 : index
    %64 = vector.load %arg10[%c0_46, %c0_47] : memref<1x256xf32, #tpu.memory_space<vmem>>, vector<1x256xf32>
    %65 = vector.extract_strided_slice %62 {offsets = [0, 0], sizes = [64, 64], strides = [1, 1]} : vector<256x64xbf16> to vector<64x64xbf16>
    %cst_48 = arith.constant dense<0.000000e+00> : vector<64x256xf32>
    %66 = tpu.matmul %65, %63, %cst_48 {dimension_numbers = #tpu.dot_dimension_numbers<[1], [0], [0], [1], [0, 0, 1, 1], [], []>} : vector<64x64xbf16>, vector<64x256xbf16>, vector<64x256xf32> -> vector<64x256xf32>
    %67 = vector.broadcast %64 : vector<1x256xf32> to vector<64x256xf32>
    %68 = arith.addf %66, %67 : vector<64x256xf32>
    %c0_49 = arith.constant 0 : index
    %c0_50 = arith.constant 0 : index
    %c0_51 = arith.constant 0 : index
    %c0_52 = arith.constant 0 : index
    %69 = vector.load %arg2[%c0_49, %c0_50, %c0_51, %c0_52] : memref<1x16x16x256xbf16, #tpu.memory_space<vmem>>, vector<1x4x16x256xbf16>
    %70 = vector.shape_cast %69 : vector<1x4x16x256xbf16> to vector<4x16x256xbf16>
    %71 = vector.shape_cast %70 : vector<4x16x256xbf16> to vector<64x256xbf16>
    %72 = arith.extf %71 : vector<64x256xbf16> to vector<64x256xf32>
    %73 = arith.addf %68, %72 : vector<64x256xf32>
    %cst_53 = arith.constant 0.000000e+00 : f32
    %74 = vector.broadcast %cst_53 : f32 to vector<64x256xf32>
    %75 = arith.maximumf %73, %74 : vector<64x256xf32>
    %76 = vector.shape_cast %75 : vector<64x256xf32> to vector<4x16x256xf32>
    %77 = arith.truncf %76 : vector<4x16x256xf32> to vector<4x16x256xbf16>
    %c0_54 = arith.constant 0 : index
    %c0_55 = arith.constant 0 : index
    %c0_56 = arith.constant 0 : index
    %c0_57 = arith.constant 0 : index
    %78 = vector.load %arg11[%c0_54, %c0_55, %c0_56, %c0_57] : memref<1x16x16x256xbf16, #tpu.memory_space<vmem>>, vector<1x4x16x256xbf16>
    %79 = vector.shape_cast %78 : vector<1x4x16x256xbf16> to vector<4x16x256xbf16>
    %80 = vector.shape_cast %77 : vector<4x16x256xbf16> to vector<1x4x16x256xbf16>
    tpu.vector_store %arg11[%c0_54, %c0_55, %c0_56, %c0_57], %80 {strides = array<i32>} : memref<1x16x16x256xbf16, #tpu.memory_space<vmem>>, vector<1x4x16x256xbf16>,
    %81 = vector.extract_strided_slice %62 {offsets = [64, 0], sizes = [64, 64], strides = [1, 1]} : vector<256x64xbf16> to vector<64x64xbf16>
    %cst_58 = arith.constant dense<0.000000e+00> : vector<64x256xf32>
    %82 = tpu.matmul %81, %63, %cst_58 {dimension_numbers = #tpu.dot_dimension_numbers<[1], [0], [0], [1], [0, 0, 1, 1], [], []>} : vector<64x64xbf16>, vector<64x256xbf16>, vector<64x256xf32> -> vector<64x256xf32>
    %83 = vector.broadcast %64 : vector<1x256xf32> to vector<64x256xf32>
    %84 = arith.addf %82, %83 : vector<64x256xf32>
    %c0_59 = arith.constant 0 : index
    %c4 = arith.constant 4 : index
    %c0_60 = arith.constant 0 : index
    %c0_61 = arith.constant 0 : index
    %85 = vector.load %arg2[%c0_59, %c4, %c0_60, %c0_61] : memref<1x16x16x256xbf16, #tpu.memory_space<vmem>>, vector<1x4x16x256xbf16>
    %86 = vector.shape_cast %85 : vector<1x4x16x256xbf16> to vector<4x16x256xbf16>
    %87 = vector.shape_cast %86 : vector<4x16x256xbf16> to vector<64x256xbf16>
    %88 = arith.extf %87 : vector<64x256xbf16> to vector<64x256xf32>
    %89 = arith.addf %84, %88 : vector<64x256xf32>
    %cst_62 = arith.constant 0.000000e+00 : f32
    %90 = vector.broadcast %cst_62 : f32 to vector<64x256xf32>
    %91 = arith.maximumf %89, %90 : vector<64x256xf32>
    %92 = vector.shape_cast %91 : vector<64x256xf32> to vector<4x16x256xf32>
    %93 = arith.truncf %92 : vector<4x16x256xf32> to vector<4x16x256xbf16>
    %c0_63 = arith.constant 0 : index
    %c4_64 = arith.constant 4 : index
    %c0_65 = arith.constant 0 : index
    %c0_66 = arith.constant 0 : index
    %94 = vector.load %arg11[%c0_63, %c4_64, %c0_65, %c0_66] : memref<1x16x16x256xbf16, #tpu.memory_space<vmem>>, vector<1x4x16x256xbf16>
    %95 = vector.shape_cast %94 : vector<1x4x16x256xbf16> to vector<4x16x256xbf16>
    %96 = vector.shape_cast %93 : vector<4x16x256xbf16> to vector<1x4x16x256xbf16>
    tpu.vector_store %arg11[%c0_63, %c4_64, %c0_65, %c0_66], %96 {strides = array<i32>} : memref<1x16x16x256xbf16, #tpu.memory_space<vmem>>, vector<1x4x16x256xbf16>,
    %97 = vector.extract_strided_slice %62 {offsets = [128, 0], sizes = [64, 64], strides = [1, 1]} : vector<256x64xbf16> to vector<64x64xbf16>
    %cst_67 = arith.constant dense<0.000000e+00> : vector<64x256xf32>
    %98 = tpu.matmul %97, %63, %cst_67 {dimension_numbers = #tpu.dot_dimension_numbers<[1], [0], [0], [1], [0, 0, 1, 1], [], []>} : vector<64x64xbf16>, vector<64x256xbf16>, vector<64x256xf32> -> vector<64x256xf32>
    %99 = vector.broadcast %64 : vector<1x256xf32> to vector<64x256xf32>
    %100 = arith.addf %98, %99 : vector<64x256xf32>
    %c0_68 = arith.constant 0 : index
    %c8 = arith.constant 8 : index
    %c0_69 = arith.constant 0 : index
    %c0_70 = arith.constant 0 : index
    %101 = vector.load %arg2[%c0_68, %c8, %c0_69, %c0_70] : memref<1x16x16x256xbf16, #tpu.memory_space<vmem>>, vector<1x4x16x256xbf16>
    %102 = vector.shape_cast %101 : vector<1x4x16x256xbf16> to vector<4x16x256xbf16>
    %103 = vector.shape_cast %102 : vector<4x16x256xbf16> to vector<64x256xbf16>
    %104 = arith.extf %103 : vector<64x256xbf16> to vector<64x256xf32>
    %105 = arith.addf %100, %104 : vector<64x256xf32>
    %cst_71 = arith.constant 0.000000e+00 : f32
    %106 = vector.broadcast %cst_71 : f32 to vector<64x256xf32>
    %107 = arith.maximumf %105, %106 : vector<64x256xf32>
    %108 = vector.shape_cast %107 : vector<64x256xf32> to vector<4x16x256xf32>
    %109 = arith.truncf %108 : vector<4x16x256xf32> to vector<4x16x256xbf16>
    %c0_72 = arith.constant 0 : index
    %c8_73 = arith.constant 8 : index
    %c0_74 = arith.constant 0 : index
    %c0_75 = arith.constant 0 : index
    %110 = vector.load %arg11[%c0_72, %c8_73, %c0_74, %c0_75] : memref<1x16x16x256xbf16, #tpu.memory_space<vmem>>, vector<1x4x16x256xbf16>
    %111 = vector.shape_cast %110 : vector<1x4x16x256xbf16> to vector<4x16x256xbf16>
    %112 = vector.shape_cast %109 : vector<4x16x256xbf16> to vector<1x4x16x256xbf16>
    tpu.vector_store %arg11[%c0_72, %c8_73, %c0_74, %c0_75], %112 {strides = array<i32>} : memref<1x16x16x256xbf16, #tpu.memory_space<vmem>>, vector<1x4x16x256xbf16>,
    %113 = vector.extract_strided_slice %62 {offsets = [192, 0], sizes = [64, 64], strides = [1, 1]} : vector<256x64xbf16> to vector<64x64xbf16>
    %cst_76 = arith.constant dense<0.000000e+00> : vector<64x256xf32>
    %114 = tpu.matmul %113, %63, %cst_76 {dimension_numbers = #tpu.dot_dimension_numbers<[1], [0], [0], [1], [0, 0, 1, 1], [], []>} : vector<64x64xbf16>, vector<64x256xbf16>, vector<64x256xf32> -> vector<64x256xf32>
    %115 = vector.broadcast %64 : vector<1x256xf32> to vector<64x256xf32>
    %116 = arith.addf %114, %115 : vector<64x256xf32>
    %c0_77 = arith.constant 0 : index
    %c12 = arith.constant 12 : index
    %c0_78 = arith.constant 0 : index
    %c0_79 = arith.constant 0 : index
    %117 = vector.load %arg2[%c0_77, %c12, %c0_78, %c0_79] : memref<1x16x16x256xbf16, #tpu.memory_space<vmem>>, vector<1x4x16x256xbf16>
    %118 = vector.shape_cast %117 : vector<1x4x16x256xbf16> to vector<4x16x256xbf16>
    %119 = vector.shape_cast %118 : vector<4x16x256xbf16> to vector<64x256xbf16>
    %120 = arith.extf %119 : vector<64x256xbf16> to vector<64x256xf32>
    %121 = arith.addf %116, %120 : vector<64x256xf32>
    %cst_80 = arith.constant 0.000000e+00 : f32
    %122 = vector.broadcast %cst_80 : f32 to vector<64x256xf32>
    %123 = arith.maximumf %121, %122 : vector<64x256xf32>
    %124 = vector.shape_cast %123 : vector<64x256xf32> to vector<4x16x256xf32>
    %125 = arith.truncf %124 : vector<4x16x256xf32> to vector<4x16x256xbf16>
    %c0_81 = arith.constant 0 : index
    %c12_82 = arith.constant 12 : index
    %c0_83 = arith.constant 0 : index
    %c0_84 = arith.constant 0 : index
    %126 = vector.load %arg11[%c0_81, %c12_82, %c0_83, %c0_84] : memref<1x16x16x256xbf16, #tpu.memory_space<vmem>>, vector<1x4x16x256xbf16>
    %127 = vector.shape_cast %126 : vector<1x4x16x256xbf16> to vector<4x16x256xbf16>
    %128 = vector.shape_cast %125 : vector<4x16x256xbf16> to vector<1x4x16x256xbf16>
    tpu.vector_store %arg11[%c0_81, %c12_82, %c0_83, %c0_84], %128 {strides = array<i32>} : memref<1x16x16x256xbf16, #tpu.memory_space<vmem>>, vector<1x4x16x256xbf16>,
    return
  }
  func.func @transform_0(%arg0: i32, %arg1: i32) -> (i32, i32, i32, i32) {
    %c0_i32 = arith.constant 0 : i32
    %c0_i32_0 = arith.constant 0 : i32
    %c0_i32_1 = arith.constant 0 : i32
    return %arg0, %arg1, %c0_i32, %c0_i32_0 : i32, i32, i32, i32
  }
  func.func @transform_1(%arg0: i32, %arg1: i32) -> (i32, i32, i32, i32) {
    %c16_i32 = arith.constant 16 : i32
    %0 = arith.muli %arg1, %c16_i32 : i32
    %c1_i32 = arith.constant 1 : i32
    %1 = arith.subi %0, %c1_i32 : i32
    %c0_i32 = arith.constant 0 : i32
    %2 = arith.maxsi %1, %c0_i32 : i32
    %c0_i32_0 = arith.constant 0 : i32
    %c0_i32_1 = arith.constant 0 : i32
    %c0_i32_2 = arith.constant 0 : i32
    return %arg0, %2, %c0_i32_0, %c0_i32_1 : i32, i32, i32, i32
  }
  func.func @transform_2(%arg0: i32, %arg1: i32) -> (i32, i32, i32, i32) {
    %c16_i32 = arith.constant 16 : i32
    %0 = arith.muli %arg1, %c16_i32 : i32
    %c16_i32_0 = arith.constant 16 : i32
    %1 = arith.addi %0, %c16_i32_0 : i32
    %c15_i32 = arith.constant 15 : i32
    %2 = arith.minsi %1, %c15_i32 : i32
    %c0_i32 = arith.constant 0 : i32
    %c0_i32_1 = arith.constant 0 : i32
    %c0_i32_2 = arith.constant 0 : i32
    return %arg0, %2, %c0_i32, %c0_i32_1 : i32, i32, i32, i32
  }
  func.func @transform_3(%arg0: i32, %arg1: i32) -> (i32, i32) {
    %c0_i32 = arith.constant 0 : i32
    %c0_i32_0 = arith.constant 0 : i32
    %c0_i32_1 = arith.constant 0 : i32
    return %c0_i32, %c0_i32_0 : i32, i32
  }
  func.func @transform_4(%arg0: i32, %arg1: i32) -> (i32, i32) {
    %c0_i32 = arith.constant 0 : i32
    %c0_i32_0 = arith.constant 0 : i32
    %c0_i32_1 = arith.constant 0 : i32
    return %c0_i32, %c0_i32_0 : i32, i32
  }
  func.func @transform_5(%arg0: i32, %arg1: i32) -> (i32, i32, i32) {
    %c0_i32 = arith.constant 0 : i32
    %c0_i32_0 = arith.constant 0 : i32
    %c0_i32_1 = arith.constant 0 : i32
    %c0_i32_2 = arith.constant 0 : i32
    return %c0_i32, %c0_i32_0, %c0_i32_1 : i32, i32, i32
  }
  func.func @transform_6(%arg0: i32, %arg1: i32) -> (i32, i32) {
    %c0_i32 = arith.constant 0 : i32
    %c0_i32_0 = arith.constant 0 : i32
    %c0_i32_1 = arith.constant 0 : i32
    return %c0_i32, %c0_i32_0 : i32, i32
  }
  func.func @transform_7(%arg0: i32, %arg1: i32) -> (i32, i32) {
    %c0_i32 = arith.constant 0 : i32
    %c0_i32_0 = arith.constant 0 : i32
    %c0_i32_1 = arith.constant 0 : i32
    return %c0_i32, %c0_i32_0 : i32, i32
  }
  func.func @transform_8(%arg0: i32, %arg1: i32) -> (i32, i32) {
    %c0_i32 = arith.constant 0 : i32
    %c0_i32_0 = arith.constant 0 : i32
    %c0_i32_1 = arith.constant 0 : i32
    return %c0_i32, %c0_i32_0 : i32, i32
  }
  func.func @transform_9(%arg0: i32, %arg1: i32) -> (i32, i32, i32, i32) {
    %c0_i32 = arith.constant 0 : i32
    %c0_i32_0 = arith.constant 0 : i32
    %c0_i32_1 = arith.constant 0 : i32
    return %arg0, %arg1, %c0_i32, %c0_i32_0 : i32, i32, i32, i32
  }
}

</mosaic_0001>

<llo_original>
// kernel: bottleneck_forward.1
$region0: #{bottleneck_forward.1}
  #allocation0 [shape = 'u32[]', space=smem, size = 0x4, offset = 0x4, fixed_abs, tag = 'smem constant byte address 0x4 - core index']
  #allocation1 [shape = 'u32[72,128]{1,0:T(1,128)}', space=vmem, size = 0x9000, scoped, tag = 'internal scratch']
  #allocation2 [shape = 'bf16[288,256]{1,0:T(8,128)(2,1)}', space=vmem, size = 0x24000, scoped, tag = 'scratch operand']
  %s0 = inlined_call_operand.vmem [shape: bf16[2,16,16,256], index: 0, kind: input, shape index: {}, may-alias: {0,1,2}]
  %s1 = inlined_call_operand.vmem [shape: bf16[2,16,16,256], index: 1, kind: input, shape index: {}, may-alias: {0,1,2}]
  %s2 = inlined_call_operand.vmem [shape: bf16[2,16,16,256], index: 2, kind: input, shape index: {}, may-alias: {0,1,2}]
  %s3 = inlined_call_operand.vmem [shape: bf16[256,64], index: 3, kind: input, shape index: {}]
  %s4 = inlined_call_operand.vmem [shape: f32[1,64], index: 4, kind: input, shape index: {}]
  %s5 = inlined_call_operand.vmem [shape: bf16[3,256,64], index: 5, kind: input, shape index: {}]
  %s6 = inlined_call_operand.vmem [shape: f32[1,64], index: 6, kind: input, shape index: {}]
  %s7 = inlined_call_operand.vmem [shape: bf16[64,256], index: 7, kind: input, shape index: {}]
  %s8 = inlined_call_operand.vmem [shape: f32[1,256], index: 8, kind: input, shape index: {}]
  %s9 = inlined_call_operand.hbm [shape: bf16[2,16,16,256], index: 9, kind: output, shape index: {}]
  %s10 = sld [smem:[#allocation0]]
  $region69: #{bottleneck_forward.1} parent=0
    _
  %s12 = ssub.s32 1, %s10
  %s13 = scalar_select 0, %s12, %s10
  $region1: #{bottleneck_forward.1} parent=0
    #allocation3 [shape = 'u8[262144]{0}', space=vmem, size = 0x40000, scoped, tag = 'output window, operand 0']
    #allocation4 [shape = 's32[2]{0}', space=sflag, size = 0x8, scoped, tag = 'scoped memory for bottleneck_forward.1']
    %14 = vsyncpa [#allocation4], 0
    %s15 = scalar_lea.sflag [#allocation4], 1
    %16 = vsyncpa %s15, 0
    loop: start=0, step=1, limit=4
    $region2: #{bottleneck_forward.1} parent=1 // loop_pre_header
      _
    $region3: #{bottleneck_forward.1} parent=1 // loop_header
      %s18 = sphi 0, %s22
      %p19 = scmp.ge.s32.totalorder %s18, 4
      %s25 = sphi 0, %s37
      %s26 = sphi 0, %s33
      %s27 = sphi 0, %s25
      %s28 = sphi 0, %s26
      %s29 = sphi 0, %s27
      %s30 = sphi 0, %s28
      %s42 = sphi 0, %s44
      %s45 = sphi 0, %s42
      %s46 = sphi 0, %s45
      %s62 = sphi 0, %s46
      %s78 = sphi 0, %s80
      %s81 = sphi 0, %s78
      %s82 = sphi 0, %s81
      %s98 = sphi 0, %s82
      %s114 = sphi 0, %s116
      %s117 = sphi 0, %s114
      %s118 = sphi 0, %s117
      %s134 = sphi 0, %s118
      %s138 = sphi 0, %s138
      %s140 = sphi 0, %s138
      %s141 = sphi 0, %s140
      %s155 = sphi 0, %s141
      %s159 = sphi 0, %s159
      %s161 = sphi 0, %s159
      %s162 = sphi 0, %s161
      %s176 = sphi 0, %s162
      %s180 = sphi 0, %s180
      %s182 = sphi 0, %s180
      %s183 = sphi 0, %s182
      %s197 = sphi 0, %s183
      %s201 = sphi 0, %s201
      %s203 = sphi 0, %s201
      %s204 = sphi 0, %s203
      %s218 = sphi 0, %s204
      %s222 = sphi 0, %s222
      %s224 = sphi 0, %s222
      %s225 = sphi 0, %s224
      %s239 = sphi 0, %s225
      %s243 = sphi 0, %s243
      %s245 = sphi 0, %s243
      %s246 = sphi 0, %s245
      %s260 = sphi 0, %s246
      %s268 = sphi 0, %s270
      %s271 = sphi 0, %s268
      %s272 = sphi 0, %s271
      %s288 = sphi 0, %s272
    $region4: #{bottleneck_forward.1} parent=1 // loop_header_branch
      %21 = sbr.rel (%p19) target = $region8
    $region5: #{bottleneck_forward.1} parent=1 // loop_body
      %s23 = ssub.s32 %s18, 1
      %s24 = ssub.s32 %s18, 2
      %s31 = sadd.s32 1, %s26
      %p32 = scmp.ge.s32.totalorder %s31, 1
      %s33 = scalar_select %p32, 0, %s31
      %s34 = sadd.s32 1, %s25
      %s35 = scalar_select %p32, %s34, %s25
      %p36 = scmp.ge.s32.totalorder %s35, 2
      %s37 = scalar_select %p36, 0, %s35
      %s38 = ssub.s32 %s25, %s37
      %s39 = ssub.s32 %s26, %s33
      %s40 = sor.u32 %s38, %s39
      %p41 = scmp.eq.s32.totalorder %s40, 0
      %s43 = sadd.s32 %s42, 1
      %s44 = scalar_select %p41, %s42, %s43
      %p47 = pneg %p41
      %p48 = scmp.eq.s32.totalorder %s18, 1
      %p49 = por %p47, %p48
      %p50 = scmp.ne.s32.totalorder %s42, %s45
      %p51 = scmp.eq.s32.totalorder %s18, 0
      %p52 = por %p50, %p51
      %p53 = scmp.ne.s32.totalorder %s42, %s45
      %p54 = scmp.eq.s32.totalorder %s23, 1
      %p55 = por %p53, %p54
      %p56 = scmp.ne.s32.totalorder %s45, %s46
      %p57 = scmp.eq.s32.totalorder %s23, 0
      %p58 = por %p56, %p57
      %p59 = scmp.ne.s32.totalorder %s45, %s46
      %p60 = scmp.eq.s32.totalorder %s24, 1
      %p61 = por %p59, %p60
      %p63 = scmp.ne.s32.totalorder %s46, %s62
      %p64 = scmp.eq.s32.totalorder %s24, 0
      %p65 = por %p63, %p64
      %s66 = smul.u32 %s26, 16
      %s67 = ssub.s32 %s66, 1
      %p68 = scmp.gt.s32.totalorder %s67, 0
      %s69 = scalar_select %p68, %s67, 0
      %s70 = smul.u32 %s33, 16
      %s71 = ssub.s32 %s70, 1
      %p72 = scmp.gt.s32.totalorder %s71, 0
      %s73 = scalar_select %p72, %s71, 0
      %s74 = ssub.s32 %s25, %s37
      %s75 = ssub.s32 %s69, %s73
      %s76 = sor.u32 %s74, %s75
      %p77 = scmp.eq.s32.totalorder %s76, 0
      %s79 = sadd.s32 %s78, 1
      %s80 = scalar_select %p77, %s78, %s79
      %p83 = pneg %p77
      %p84 = scmp.eq.s32.totalorder %s18, 1
      %p85 = por %p83, %p84
      %p86 = scmp.ne.s32.totalorder %s78, %s81
      %p87 = scmp.eq.s32.totalorder %s18, 0
      %p88 = por %p86, %p87
      %p89 = scmp.ne.s32.totalorder %s78, %s81
      %p90 = scmp.eq.s32.totalorder %s23, 1
      %p91 = por %p89, %p90
      %p92 = scmp.ne.s32.totalorder %s81, %s82
      %p93 = scmp.eq.s32.totalorder %s23, 0
      %p94 = por %p92, %p93
      %p95 = scmp.ne.s32.totalorder %s81, %s82
      %p96 = scmp.eq.s32.totalorder %s24, 1
      %p97 = por %p95, %p96
      %p99 = scmp.ne.s32.totalorder %s82, %s98
      %p100 = scmp.eq.s32.totalorder %s24, 0
      %p101 = por %p99, %p100
      %s102 = smul.u32 %s26, 16
      %s103 = sadd.s32 %s102, 16
      %p104 = scmp.lt.s32.totalorder %s103, 15
      %s105 = scalar_select %p104, %s103, 15
      %s106 = smul.u32 %s33, 16
      %s107 = sadd.s32 %s106, 16
      %p108 = scmp.lt.s32.totalorder %s107, 15
      %s109 = scalar_select %p108, %s107, 15
      %s110 = ssub.s32 %s25, %s37
      %s111 = ssub.s32 %s105, %s109
      %s112 = sor.u32 %s110, %s111
      %p113 = scmp.eq.s32.totalorder %s112, 0
      %s115 = sadd.s32 %s114, 1
      %s116 = scalar_select %p113, %s114, %s115
      %p119 = pneg %p113
      %p120 = scmp.eq.s32.totalorder %s18, 1
      %p121 = por %p119, %p120
      %p122 = scmp.ne.s32.totalorder %s114, %s117
      %p123 = scmp.eq.s32.totalorder %s18, 0
      %p124 = por %p122, %p123
      %p125 = scmp.ne.s32.totalorder %s114, %s117
      %p126 = scmp.eq.s32.totalorder %s23, 1
      %p127 = por %p125, %p126
      %p128 = scmp.ne.s32.totalorder %s117, %s118
      %p129 = scmp.eq.s32.totalorder %s23, 0
      %p130 = por %p128, %p129
      %p131 = scmp.ne.s32.totalorder %s117, %s118
      %p132 = scmp.eq.s32.totalorder %s24, 1
      %p133 = por %p131, %p132
      %p135 = scmp.ne.s32.totalorder %s118, %s134
      %p136 = scmp.eq.s32.totalorder %s24, 0
      %p137 = por %p135, %p136
      %s139 = sadd.s32 %s138, 1
      %p142 = scmp.eq.s32.totalorder %s18, 1
      %p143 = scmp.ne.s32.totalorder %s138, %s140
      %p144 = scmp.eq.s32.totalorder %s18, 0
      %p145 = por %p143, %p144
      %p146 = scmp.ne.s32.totalorder %s138, %s140
      %p147 = scmp.eq.s32.totalorder %s23, 1
      %p148 = por %p146, %p147
      %p149 = scmp.ne.s32.totalorder %s140, %s141
      %p150 = scmp.eq.s32.totalorder %s23, 0
      %p151 = por %p149, %p150
      %p152 = scmp.ne.s32.totalorder %s140, %s141
      %p153 = scmp.eq.s32.totalorder %s24, 1
      %p154 = por %p152, %p153
      %p156 = scmp.ne.s32.totalorder %s141, %s155
      %p157 = scmp.eq.s32.totalorder %s24, 0
      %p158 = por %p156, %p157
      %s160 = sadd.s32 %s159, 1
      %p163 = scmp.eq.s32.totalorder %s18, 1
      %p164 = scmp.ne.s32.totalorder %s159, %s161
      %p165 = scmp.eq.s32.totalorder %s18, 0
      %p166 = por %p164, %p165
      %p167 = scmp.ne.s32.totalorder %s159, %s161
      %p168 = scmp.eq.s32.totalorder %s23, 1
      %p169 = por %p167, %p168
      %p170 = scmp.ne.s32.totalorder %s161, %s162
      %p171 = scmp.eq.s32.totalorder %s23, 0
      %p172 = por %p170, %p171
      %p173 = scmp.ne.s32.totalorder %s161, %s162
      %p174 = scmp.eq.s32.totalorder %s24, 1
      %p175 = por %p173, %p174
      %p177 = scmp.ne.s32.totalorder %s162, %s176
      %p178 = scmp.eq.s32.totalorder %s24, 0
      %p179 = por %p177, %p178
      %s181 = sadd.s32 %s180, 1
      %p184 = scmp.eq.s32.totalorder %s18, 1
      %p185 = scmp.ne.s32.totalorder %s180, %s182
      %p186 = scmp.eq.s32.totalorder %s18, 0
      %p187 = por %p185, %p186
      %p188 = scmp.ne.s32.totalorder %s180, %s182
      %p189 = scmp.eq.s32.totalorder %s23, 1
      %p190 = por %p188, %p189
      %p191 = scmp.ne.s32.totalorder %s182, %s183
      %p192 = scmp.eq.s32.totalorder %s23, 0
      %p193 = por %p191, %p192
      %p194 = scmp.ne.s32.totalorder %s182, %s183
      %p195 = scmp.eq.s32.totalorder %s24, 1
      %p196 = por %p194, %p195
      %p198 = scmp.ne.s32.totalorder %s183, %s197
      %p199 = scmp.eq.s32.totalorder %s24, 0
      %p200 = por %p198, %p199
      %s202 = sadd.s32 %s201, 1
      %p205 = scmp.eq.s32.totalorder %s18, 1
      %p206 = scmp.ne.s32.totalorder %s201, %s203
      %p207 = scmp.eq.s32.totalorder %s18, 0
      %p208 = por %p206, %p207
      %p209 = scmp.ne.s32.totalorder %s201, %s203
      %p210 = scmp.eq.s32.totalorder %s23, 1
      %p211 = por %p209, %p210
      %p212 = scmp.ne.s32.totalorder %s203, %s204
      %p213 = scmp.eq.s32.totalorder %s23, 0
      %p214 = por %p212, %p213
      %p215 = scmp.ne.s32.totalorder %s203, %s204
      %p216 = scmp.eq.s32.totalorder %s24, 1
      %p217 = por %p215, %p216
      %p219 = scmp.ne.s32.totalorder %s204, %s218
      %p220 = scmp.eq.s32.totalorder %s24, 0
      %p221 = por %p219, %p220
      %s223 = sadd.s32 %s222, 1
      %p226 = scmp.eq.s32.totalorder %s18, 1
      %p227 = scmp.ne.s32.totalorder %s222, %s224
      %p228 = scmp.eq.s32.totalorder %s18, 0
      %p229 = por %p227, %p228
      %p230 = scmp.ne.s32.totalorder %s222, %s224
      %p231 = scmp.eq.s32.totalorder %s23, 1
      %p232 = por %p230, %p231
      %p233 = scmp.ne.s32.totalorder %s224, %s225
      %p234 = scmp.eq.s32.totalorder %s23, 0
      %p235 = por %p233, %p234
      %p236 = scmp.ne.s32.totalorder %s224, %s225
      %p237 = scmp.eq.s32.totalorder %s24, 1
      %p238 = por %p236, %p237
      %p240 = scmp.ne.s32.totalorder %s225, %s239
      %p241 = scmp.eq.s32.totalorder %s24, 0
      %p242 = por %p240, %p241
      %s244 = sadd.s32 %s243, 1
      %p247 = scmp.eq.s32.totalorder %s18, 1
      %p248 = scmp.ne.s32.totalorder %s243, %s245
      %p249 = scmp.eq.s32.totalorder %s18, 0
      %p250 = por %p248, %p249
      %p251 = scmp.ne.s32.totalorder %s243, %s245
      %p252 = scmp.eq.s32.totalorder %s23, 1
      %p253 = por %p251, %p252
      %p254 = scmp.ne.s32.totalorder %s245, %s246
      %p255 = scmp.eq.s32.totalorder %s23, 0
      %p256 = por %p254, %p255
      %p257 = scmp.ne.s32.totalorder %s245, %s246
      %p258 = scmp.eq.s32.totalorder %s24, 1
      %p259 = por %p257, %p258
      %p261 = scmp.ne.s32.totalorder %s246, %s260
      %p262 = scmp.eq.s32.totalorder %s24, 0
      %p263 = por %p261, %p262
      %s264 = ssub.s32 %s25, %s37
      %s265 = ssub.s32 %s26, %s33
      %s266 = sor.u32 %s264, %s265
      %p267 = scmp.eq.s32.totalorder %s266, 0
      %s269 = sadd.s32 %s268, 1
      %s270 = scalar_select %p267, %s268, %s269
      %p273 = pneg %p267
      %p274 = scmp.eq.s32.totalorder %s18, 1
      %p275 = por %p273, %p274
      %p276 = scmp.ne.s32.totalorder %s268, %s271
      %p277 = scmp.eq.s32.totalorder %s18, 0
      %p278 = por %p276, %p277
      %p279 = scmp.ne.s32.totalorder %s268, %s271
      %p280 = scmp.eq.s32.totalorder %s23, 1
      %p281 = por %p279, %p280
      %p282 = scmp.ne.s32.totalorder %s271, %s272
      %p283 = scmp.eq.s32.totalorder %s23, 0
      %p284 = por %p282, %p283
      %p285 = scmp.ne.s32.totalorder %s271, %s272
      %p286 = scmp.eq.s32.totalorder %s24, 1
      %p287 = por %p285, %p286
      %p289 = scmp.ne.s32.totalorder %s272, %s288
      %p290 = scmp.eq.s32.totalorder %s24, 0
      %p291 = por %p289, %p290
      %p292 = scmp.le.s32.totalorder 1, %s18
      %p293 = scmp.lt.s32.totalorder %s18, 3
      %p294 = pnand %p292, %p293
      %p295 = pneg %p294
      // Predicated region
      $region9: #{bottleneck_forward.1} parent=5 // pred_check
        _
      $region10: #{bottleneck_forward.1} parent=5 // pred_check_branch
        %297 = sbr.rel (%p294) target = $region12
      $region11: #{bottleneck_forward.1} parent=5 // pred_region
        %s298 = ssub.s32 %s18, 1
        // Predicated region
        $region13: #{bottleneck_forward.1} parent=11 // pred_check
          %p299 = pneg %p151
        $region14: #{bottleneck_forward.1} parent=11 // pred_check_branch
          %301 = sbr.rel (%p299) target = $region16
        $region15: #{bottleneck_forward.1} parent=11 // pred_region
          _
        $region16: #{bottleneck_forward.1} parent=11 // pred_fallthru
          _
        // Predicated region
        $region17: #{bottleneck_forward.1} parent=11 // pred_check
          %p302 = pneg %p172
        $region18: #{bottleneck_forward.1} parent=11 // pred_check_branch
          %304 = sbr.rel (%p302) target = $region20
        $region19: #{bottleneck_forward.1} parent=11 // pred_region
          _
        $region20: #{bottleneck_forward.1} parent=11 // pred_fallthru
          _
        // Predicated region
        $region21: #{bottleneck_forward.1} parent=11 // pred_check
          %p305 = pneg %p193
        $region22: #{bottleneck_forward.1} parent=11 // pred_check_branch
          %307 = sbr.rel (%p305) target = $region24
        $region23: #{bottleneck_forward.1} parent=11 // pred_region
          _
        $region24: #{bottleneck_forward.1} parent=11 // pred_fallthru
          _
        // Predicated region
        $region25: #{bottleneck_forward.1} parent=11 // pred_check
          %p308 = pneg %p214
        $region26: #{bottleneck_forward.1} parent=11 // pred_check_branch
          %310 = sbr.rel (%p308) target = $region28
        $region27: #{bottleneck_forward.1} parent=11 // pred_region
          _
        $region28: #{bottleneck_forward.1} parent=11 // pred_fallthru
          _
        // Predicated region
        $region29: #{bottleneck_forward.1} parent=11 // pred_check
          %p311 = pneg %p235
        $region30: #{bottleneck_forward.1} parent=11 // pred_check_branch
          %313 = sbr.rel (%p311) target = $region32
        $region31: #{bottleneck_forward.1} parent=11 // pred_region
          _
        $region32: #{bottleneck_forward.1} parent=11 // pred_fallthru
          _
        // Predicated region
        $region33: #{bottleneck_forward.1} parent=11 // pred_check
          %p314 = pneg %p256
        $region34: #{bottleneck_forward.1} parent=11 // pred_check_branch
          %316 = sbr.rel (%p314) target = $region36
        $region35: #{bottleneck_forward.1} parent=11 // pred_region
          _
        $region36: #{bottleneck_forward.1} parent=11 // pred_fallthru
          _
      $region12: #{bottleneck_forward.1} parent=5 // pred_fallthru
        _
      %p317 = scmp.lt.s32.totalorder %s18, 2
      // Predicated region
      $region37: #{bottleneck_forward.1} parent=5 // pred_check
        %p318 = pneg %p317
      $region38: #{bottleneck_forward.1} parent=5 // pred_check_branch
        %320 = sbr.rel (%p318) target = $region40
      $region39: #{bottleneck_forward.1} parent=5 // pred_region
        // Predicated region
        $region41: #{bottleneck_forward.1} parent=39 // pred_check
          %p321 = pneg %p52
        $region42: #{bottleneck_forward.1} parent=39 // pred_check_branch
          %323 = sbr.rel (%p321) target = $region44
        $region43: #{bottleneck_forward.1} parent=39 // pred_region
          %s324 = smul.u32 16, %s26
          %p325 = scmp.lt.s32.totalorder %s25, 1
          %s326 = scalar_select %p325, %s25, 1
          %p327 = scmp.lt.s32.totalorder %s324, 15
          %s328 = scalar_select %p327, %s324, 15
          %s329 = smul.addr %s328, 4
          %s330 = smul.addr %s326, 64
          %s331 = sadd.s32 %s329, %s330
          %s332 = smul.addr %s331, 4
          %s333 = scalar_lea.vmem %s0, %s332
          %s334 = smul.u32 16, %s26
        $region44: #{bottleneck_forward.1} parent=39 // pred_fallthru
          _
        // Predicated region
        $region45: #{bottleneck_forward.1} parent=39 // pred_check
          %p335 = pneg %p88
        $region46: #{bottleneck_forward.1} parent=39 // pred_check_branch
          %337 = sbr.rel (%p335) target = $region48
        $region47: #{bottleneck_forward.1} parent=39 // pred_region
          %s338 = smul.u32 %s26, 16
          %s339 = ssub.s32 %s338, 1
          %p340 = scmp.gt.s32.totalorder %s339, 0
          %s341 = scalar_select %p340, %s339, 0
          %p342 = scmp.lt.s32.totalorder %s25, 1
          %s343 = scalar_select %p342, %s25, 1
          %p344 = scmp.lt.s32.totalorder %s341, 15
          %s345 = scalar_select %p344, %s341, 15
          %s346 = smul.addr %s345, 4
          %s347 = smul.addr %s343, 64
          %s348 = sadd.s32 %s346, %s347
          %s349 = smul.addr %s348, 4
          %s350 = scalar_lea.vmem %s1, %s349
          %s351 = smul.u32 %s26, 16
          %s352 = ssub.s32 %s351, 1
          %p353 = scmp.gt.s32.totalorder %s352, 0
          %s354 = scalar_select %p353, %s352, 0
        $region48: #{bottleneck_forward.1} parent=39 // pred_fallthru
          _
        // Predicated region
        $region49: #{bottleneck_forward.1} parent=39 // pred_check
          %p355 = pneg %p124
        $region50: #{bottleneck_forward.1} parent=39 // pred_check_branch
          %357 = sbr.rel (%p355) target = $region52
        $region51: #{bottleneck_forward.1} parent=39 // pred_region
          %s358 = smul.u32 %s26, 16
          %s359 = sadd.s32 %s358, 16
          %p360 = scmp.lt.s32.totalorder %s359, 15
          %s361 = scalar_select %p360, %s359, 15
          %p362 = scmp.lt.s32.totalorder %s25, 1
          %s363 = scalar_select %p362, %s25, 1
          %p364 = scmp.lt.s32.totalorder %s361, 15
          %s365 = scalar_select %p364, %s361, 15
          %s366 = smul.addr %s365, 4
          %s367 = smul.addr %s363, 64
          %s368 = sadd.s32 %s366, %s367
          %s369 = smul.addr %s368, 4
          %s370 = scalar_lea.vmem %s2, %s369
          %s371 = smul.u32 %s26, 16
          %s372 = sadd.s32 %s371, 16
          %p373 = scmp.lt.s32.totalorder %s372, 15
          %s374 = scalar_select %p373, %s372, 15
        $region52: #{bottleneck_forward.1} parent=39 // pred_fallthru
          _
      $region40: #{bottleneck_forward.1} parent=5 // pred_fallthru
        _
      %p375 = scmp.le.s32.totalorder 1, %s18
      %p376 = scmp.lt.s32.totalorder %s18, 3
      %p377 = pnand %p375, %p376
      %p378 = pneg %p377
      // Predicated region
      $region53: #{bottleneck_forward.1} parent=5 // pred_check
        _
      $region54: #{bottleneck_forward.1} parent=5 // pred_check_branch
        %380 = sbr.rel (%p377) target = $region56
      $region55: #{bottleneck_forward.1} parent=5 // pred_region
        %s381 = ssub.s32 %s18, 1
        %s382 = smul.u32 16, %s28
        %p383 = scmp.lt.s32.totalorder %s27, 1
        %s384 = scalar_select %p383, %s27, 1
        %p385 = scmp.lt.s32.totalorder %s382, 15
        %s386 = scalar_select %p385, %s382, 15
        %s387 = smul.addr %s386, 4
        %s388 = smul.addr %s384, 64
        %s389 = sadd.s32 %s387, %s388
        %s390 = smul.addr %s389, 4
        %s391 = scalar_lea.vmem %s0, %s390
        %p392 = pneg %p58
        %p393 = pneg %p55
        %s394 = smul.u32 %s28, 16
        %s395 = ssub.s32 %s394, 1
        %p396 = scmp.gt.s32.totalorder %s395, 0
        %s397 = scalar_select %p396, %s395, 0
        %p398 = scmp.lt.s32.totalorder %s27, 1
        %s399 = scalar_select %p398, %s27, 1
        %p400 = scmp.lt.s32.totalorder %s397, 15
        %s401 = scalar_select %p400, %s397, 15
        %s402 = smul.addr %s401, 4
        %s403 = smul.addr %s399, 64
        %s404 = sadd.s32 %s402, %s403
        %s405 = smul.addr %s404, 4
        %s406 = scalar_lea.vmem %s1, %s405
        %p407 = pneg %p94
        %p408 = pneg %p91
        %s409 = smul.u32 %s28, 16
        %s410 = sadd.s32 %s409, 16
        %p411 = scmp.lt.s32.totalorder %s410, 15
        %s412 = scalar_select %p411, %s410, 15
        %p413 = scmp.lt.s32.totalorder %s27, 1
        %s414 = scalar_select %p413, %s27, 1
        %p415 = scmp.lt.s32.totalorder %s412, 15
        %s416 = scalar_select %p415, %s412, 15
        %s417 = smul.addr %s416, 4
        %s418 = smul.addr %s414, 64
        %s419 = sadd.s32 %s417, %s418
        %s420 = smul.addr %s419, 4
        %s421 = scalar_lea.vmem %s2, %s420
        %p422 = pneg %p130
        %p423 = pneg %p127
        %p424 = pneg %p151
        %p425 = pneg %p148
        %p426 = pneg %p172
        %p427 = pneg %p169
        %p428 = pneg %p193
        %p429 = pneg %p190
        %p430 = pneg %p214
        %p431 = pneg %p211
        %p432 = pneg %p235
        %p433 = pneg %p232
        %p434 = pneg %p256
        %p435 = pneg %p253
        %p436 = pneg %p284
        %p437 = pneg %p281
        %s438 = sand.u32 %s271, 1
        %s439 = scalar_lea.sflag [#allocation4], %s438
        %s440 = sand.u32 %s271, 1
        %s441 = smul.addr %s440, 256
        %s442 = scalar_lea.vmem [#allocation3], %s441
        %s443 = smul.u32 16, %s28
        %p444 = scmp.lt.s32.totalorder %s27, 1
        %s445 = scalar_select %p444, %s27, 1
        %p446 = scmp.lt.s32.totalorder %s443, 15
        %s447 = scalar_select %p446, %s443, 15
        %s448 = smul.addr %s447, 4
        %s449 = smul.addr %s445, 64
        %s450 = sadd.s32 %s448, %s449
        %s451 = smul.addr %s450, 4
        %s452 = scalar_lea.vmem %s0, %s451
        %s453 = smul.u32 16, %s28
        %s454 = smul.u32 %s28, 16
        %s455 = ssub.s32 %s454, 1
        %p456 = scmp.gt.s32.totalorder %s455, 0
        %s457 = scalar_select %p456, %s455, 0
        %p458 = scmp.lt.s32.totalorder %s27, 1
        %s459 = scalar_select %p458, %s27, 1
        %p460 = scmp.lt.s32.totalorder %s457, 15
        %s461 = scalar_select %p460, %s457, 15
        %s462 = smul.addr %s461, 4
        %s463 = smul.addr %s459, 64
        %s464 = sadd.s32 %s462, %s463
        %s465 = smul.addr %s464, 4
        %s466 = scalar_lea.vmem %s1, %s465
        %s467 = smul.u32 %s28, 16
        %s468 = ssub.s32 %s467, 1
        %p469 = scmp.gt.s32.totalorder %s468, 0
        %s470 = scalar_select %p469, %s468, 0
        %s471 = smul.u32 %s28, 16
        %s472 = sadd.s32 %s471, 16
        %p473 = scmp.lt.s32.totalorder %s472, 15
        %s474 = scalar_select %p473, %s472, 15
        %p475 = scmp.lt.s32.totalorder %s27, 1
        %s476 = scalar_select %p475, %s27, 1
        %p477 = scmp.lt.s32.totalorder %s474, 15
        %s478 = scalar_select %p477, %s474, 15
        %s479 = smul.addr %s478, 4
        %s480 = smul.addr %s476, 64
        %s481 = sadd.s32 %s479, %s480
        %s482 = smul.addr %s481, 4
        %s483 = scalar_lea.vmem %s2, %s482
        %s484 = smul.u32 %s28, 16
        %s485 = sadd.s32 %s484, 16
        %p486 = scmp.lt.s32.totalorder %s485, 15
        %s487 = scalar_select %p486, %s485, 15
        %s488 = smul.u32 16, %s28
        %v490 = vld [vmem:[%s3] sm:$0xf]
        %v491 = vld [vmem:[%s3 + $0x4] sm:$0xf]
        %v492 = vld [vmem:[%s3 + $0x8] sm:$0xf]
        %v493 = vld [vmem:[%s3 + $0xc] sm:$0xf]
        %v494 = vld [vmem:[%s3 + $0x10] sm:$0xf]
        %v495 = vld [vmem:[%s3 + $0x14] sm:$0xf]
        %v496 = vld [vmem:[%s3 + $0x18] sm:$0xf]
        %v497 = vld [vmem:[%s3 + $0x1c] sm:$0xf]
        %v498 = vld [vmem:[%s3 + $0x20] sm:$0xf]
        %v499 = vld [vmem:[%s3 + $0x24] sm:$0xf]
        %v500 = vld [vmem:[%s3 + $0x28] sm:$0xf]
        %v501 = vld [vmem:[%s3 + $0x2c] sm:$0xf]
        %v502 = vld [vmem:[%s3 + $0x30] sm:$0xf]
        %v503 = vld [vmem:[%s3 + $0x34] sm:$0xf]
        %v504 = vld [vmem:[%s3 + $0x38] sm:$0xf]
        %v505 = vld [vmem:[%s3 + $0x3c] sm:$0xf]
        %v506 = vld [vmem:[%s3 + $0x40] sm:$0xf]
        %v507 = vld [vmem:[%s3 + $0x44] sm:$0xf]
        %v508 = vld [vmem:[%s3 + $0x48] sm:$0xf]
        %v509 = vld [vmem:[%s3 + $0x4c] sm:$0xf]
        %v510 = vld [vmem:[%s3 + $0x50] sm:$0xf]
        %v511 = vld [vmem:[%s3 + $0x54] sm:$0xf]
        %v512 = vld [vmem:[%s3 + $0x58] sm:$0xf]
        %v513 = vld [vmem:[%s3 + $0x5c] sm:$0xf]
        %v514 = vld [vmem:[%s3 + $0x60] sm:$0xf]
        %v515 = vld [vmem:[%s3 + $0x64] sm:$0xf]
        %v516 = vld [vmem:[%s3 + $0x68] sm:$0xf]
        %v517 = vld [vmem:[%s3 + $0x6c] sm:$0xf]
        %v518 = vld [vmem:[%s3 + $0x70] sm:$0xf]
        %v519 = vld [vmem:[%s3 + $0x74] sm:$0xf]
        %v520 = vld [vmem:[%s3 + $0x78] sm:$0xf]
        %v521 = vld [vmem:[%s3 + $0x7c] sm:$0xf]
        %v522 = vld [vmem:[%s4] sm:$0x1]
        %v523 = vld [vmem:[%s452] sm:$0xff]
        %v524 = vld [vmem:[%s452 + $0x8] sm:$0xff]
        %v525 = vld [vmem:[%s452 + $0x10] sm:$0xff]
        %v526 = vld [vmem:[%s452 + $0x18] sm:$0xff]
        %v527 = vld [vmem:[%s452 + $0x20] sm:$0xff]
        %v528 = vld [vmem:[%s452 + $0x28] sm:$0xff]
        %v529 = vld [vmem:[%s452 + $0x30] sm:$0xff]
        %v530 = vld [vmem:[%s452 + $0x38] sm:$0xff]
        %v531 = vld [vmem:[%s452 + $0x40] sm:$0xff]
        %v532 = vld [vmem:[%s452 + $0x48] sm:$0xff]
        %v533 = vld [vmem:[%s452 + $0x50] sm:$0xff]
        %v534 = vld [vmem:[%s452 + $0x58] sm:$0xff]
        %v535 = vld [vmem:[%s452 + $0x60] sm:$0xff]
        %v536 = vld [vmem:[%s452 + $0x68] sm:$0xff]
        %v537 = vld [vmem:[%s452 + $0x70] sm:$0xff]
        %v538 = vld [vmem:[%s452 + $0x78] sm:$0xff]
        %v539 = vld [vmem:[%s452 + $0x80] sm:$0xff]
        %v540 = vld [vmem:[%s452 + $0x88] sm:$0xff]
        %v541 = vld [vmem:[%s452 + $0x90] sm:$0xff]
        %v542 = vld [vmem:[%s452 + $0x98] sm:$0xff]
        %v543 = vld [vmem:[%s452 + $0xa0] sm:$0xff]
        %v544 = vld [vmem:[%s452 + $0xa8] sm:$0xff]
        %v545 = vld [vmem:[%s452 + $0xb0] sm:$0xff]
        %v546 = vld [vmem:[%s452 + $0xb8] sm:$0xff]
        %v547 = vld [vmem:[%s452 + $0xc0] sm:$0xff]
        %v548 = vld [vmem:[%s452 + $0xc8] sm:$0xff]
        %v549 = vld [vmem:[%s452 + $0xd0] sm:$0xff]
        %v550 = vld [vmem:[%s452 + $0xd8] sm:$0xff]
        %v551 = vld [vmem:[%s452 + $0xe0] sm:$0xff]
        %v552 = vld [vmem:[%s452 + $0xe8] sm:$0xff]
        %v553 = vld [vmem:[%s452 + $0xf0] sm:$0xff]
        %v554 = vld [vmem:[%s452 + $0xf8] sm:$0xff]
        %v556 = vperm.slane %v522, 0
        %v590 = vunpack.c.l.b16 %v523
        %v591 = vunpack.c.h.b16 %v523
        %v592 = vunpack.c.l.b16 %v524
        %v593 = vunpack.c.h.b16 %v524
        %v594 = vunpack.c.l.b16 %v525
        %v595 = vunpack.c.h.b16 %v525
        %v596 = vunpack.c.l.b16 %v526
        %v597 = vunpack.c.h.b16 %v526
        %v598 = vunpack.c.l.b16 %v527
        %v599 = vunpack.c.h.b16 %v527
        %v600 = vunpack.c.l.b16 %v528
        %v601 = vunpack.c.h.b16 %v528
        %v602 = vunpack.c.l.b16 %v529
        %v603 = vunpack.c.h.b16 %v529
        %v604 = vunpack.c.l.b16 %v530
        %v605 = vunpack.c.h.b16 %v530
        %v606 = vunpack.c.l.b16 %v531
        %v607 = vunpack.c.h.b16 %v531
        %v608 = vunpack.c.l.b16 %v532
        %v609 = vunpack.c.h.b16 %v532
        %v610 = vunpack.c.l.b16 %v533
        %v611 = vunpack.c.h.b16 %v533
        %v612 = vunpack.c.l.b16 %v534
        %v613 = vunpack.c.h.b16 %v534
        %v614 = vunpack.c.l.b16 %v535
        %v615 = vunpack.c.h.b16 %v535
        %v616 = vunpack.c.l.b16 %v536
        %v617 = vunpack.c.h.b16 %v536
        %v618 = vunpack.c.l.b16 %v537
        %v619 = vunpack.c.h.b16 %v537
        %v620 = vunpack.c.l.b16 %v538
        %v621 = vunpack.c.h.b16 %v538
        %v622 = vunpack.c.l.b16 %v539
        %v623 = vunpack.c.h.b16 %v539
        %v624 = vunpack.c.l.b16 %v540
        %v625 = vunpack.c.h.b16 %v540
        %v626 = vunpack.c.l.b16 %v541
        %v627 = vunpack.c.h.b16 %v541
        %v628 = vunpack.c.l.b16 %v542
        %v629 = vunpack.c.h.b16 %v542
        %v630 = vunpack.c.l.b16 %v543
        %v631 = vunpack.c.h.b16 %v543
        %v632 = vunpack.c.l.b16 %v544
        %v633 = vunpack.c.h.b16 %v544
        %v634 = vunpack.c.l.b16 %v545
        %v635 = vunpack.c.h.b16 %v545
        %v636 = vunpack.c.l.b16 %v546
        %v637 = vunpack.c.h.b16 %v546
        %v638 = vunpack.c.l.b16 %v547
        %v639 = vunpack.c.h.b16 %v547
        %v640 = vunpack.c.l.b16 %v548
        %v641 = vunpack.c.h.b16 %v548
        %v642 = vunpack.c.l.b16 %v549
        %v643 = vunpack.c.h.b16 %v549
        %v644 = vunpack.c.l.b16 %v550
        %v645 = vunpack.c.h.b16 %v550
        %v646 = vunpack.c.l.b16 %v551
        %v647 = vunpack.c.h.b16 %v551
        %v648 = vunpack.c.l.b16 %v552
        %v649 = vunpack.c.h.b16 %v552
        %v650 = vunpack.c.l.b16 %v553
        %v651 = vunpack.c.h.b16 %v553
        %v652 = vunpack.c.l.b16 %v554
        %v653 = vunpack.c.h.b16 %v554
        %v654 = vpack.c.b16 %v592, %v590
        %v655 = vpack.c.b16 %v593, %v591
        %v656 = vpack.c.b16 %v596, %v594
        %v657 = vpack.c.b16 %v597, %v595
        %v658 = vpack.c.b16 %v600, %v598
        %v659 = vpack.c.b16 %v601, %v599
        %v660 = vpack.c.b16 %v604, %v602
        %v661 = vpack.c.b16 %v605, %v603
        %v662 = vpack.c.b16 %v608, %v606
        %v663 = vpack.c.b16 %v609, %v607
        %v664 = vpack.c.b16 %v612, %v610
        %v665 = vpack.c.b16 %v613, %v611
        %v666 = vpack.c.b16 %v616, %v614
        %v667 = vpack.c.b16 %v617, %v615
        %v668 = vpack.c.b16 %v620, %v618
        %v669 = vpack.c.b16 %v621, %v619
        %v670 = vpack.c.b16 %v624, %v622
        %v671 = vpack.c.b16 %v625, %v623
        %v672 = vpack.c.b16 %v628, %v626
        %v673 = vpack.c.b16 %v629, %v627
        %v674 = vpack.c.b16 %v632, %v630
        %v675 = vpack.c.b16 %v633, %v631
        %v676 = vpack.c.b16 %v636, %v634
        %v677 = vpack.c.b16 %v637, %v635
        %v678 = vpack.c.b16 %v640, %v638
        %v679 = vpack.c.b16 %v641, %v639
        %v680 = vpack.c.b16 %v644, %v642
        %v681 = vpack.c.b16 %v645, %v643
        %v682 = vpack.c.b16 %v648, %v646
        %v683 = vpack.c.b16 %v649, %v647
        %v684 = vpack.c.b16 %v652, %v650
        %v685 = vpack.c.b16 %v653, %v651
        %v750 = vunpack.c.l.b16 %v490
        %v751 = vunpack.c.l.b16 %v491
        %v752 = vunpack.c.l.b16 %v492
        %v753 = vunpack.c.l.b16 %v493
        %v754 = vunpack.c.l.b16 %v494
        %v755 = vunpack.c.l.b16 %v495
        %v756 = vunpack.c.l.b16 %v496
        %v757 = vunpack.c.l.b16 %v497
        %v758 = vunpack.c.l.b16 %v498
        %v759 = vunpack.c.l.b16 %v499
        %v760 = vunpack.c.l.b16 %v500
        %v761 = vunpack.c.l.b16 %v501
        %v762 = vunpack.c.l.b16 %v502
        %v763 = vunpack.c.l.b16 %v503
        %v764 = vunpack.c.l.b16 %v504
        %v765 = vunpack.c.l.b16 %v505
        %v766 = vunpack.c.l.b16 %v506
        %v767 = vunpack.c.l.b16 %v507
        %v768 = vunpack.c.l.b16 %v508
        %v769 = vunpack.c.l.b16 %v509
        %v770 = vunpack.c.l.b16 %v510
        %v771 = vunpack.c.l.b16 %v511
        %v772 = vunpack.c.l.b16 %v512
        %v773 = vunpack.c.l.b16 %v513
        %v774 = vunpack.c.l.b16 %v514
        %v775 = vunpack.c.l.b16 %v515
        %v776 = vunpack.c.l.b16 %v516
        %v777 = vunpack.c.l.b16 %v517
        %v778 = vunpack.c.l.b16 %v518
        %v779 = vunpack.c.l.b16 %v519
        %v780 = vunpack.c.l.b16 %v520
        %v781 = vunpack.c.l.b16 %v521
        %v782 = vpack.c.b16 %v751, %v750
        %v783 = vpack.c.b16 %v753, %v752
        %v784 = vpack.c.b16 %v755, %v754
        %v785 = vpack.c.b16 %v757, %v756
        %v786 = vpack.c.b16 %v759, %v758
        %v787 = vpack.c.b16 %v761, %v760
        %v788 = vpack.c.b16 %v763, %v762
        %v789 = vpack.c.b16 %v765, %v764
        %v790 = vpack.c.b16 %v767, %v766
        %v791 = vpack.c.b16 %v769, %v768
        %v792 = vpack.c.b16 %v771, %v770
        %v793 = vpack.c.b16 %v773, %v772
        %v794 = vpack.c.b16 %v775, %v774
        %v795 = vpack.c.b16 %v777, %v776
        %v796 = vpack.c.b16 %v779, %v778
        %v797 = vpack.c.b16 %v781, %v780
        %814 = vmatpush.bf16.msra.mxu0 %v789
        %815 = vmatpush.bf16.msra.mxu0 %v788
        %816 = vmatpush.bf16.msra.mxu0 %v787
        %817 = vmatpush.bf16.msra.mxu0 %v786
        %818 = vmatpush.bf16.msra.mxu0 %v785
        %819 = vmatpush.bf16.msra.mxu0 %v784
        %820 = vmatpush.bf16.msra.mxu0 %v783
        %821 = vmatpush.bf16.msra.mxu0 %v782
        %822 = vmatmul.bf16.gmra.mxu0 %v654
        %v823 = vpop.f32.mrf.mxu0
        %v824 = vadd.f32 %v556, %v823
        %v825 = vpop.f32.mrf.mxu0
        %v826 = vadd.f32 %v556, %v825
        %827 = vmatmul.bf16.gmra.mxu0 %v656
        %v828 = vpop.f32.mrf.mxu0
        %v829 = vadd.f32 %v556, %v828
        %v830 = vpop.f32.mrf.mxu0
        %v831 = vadd.f32 %v556, %v830
        %832 = vmatmul.bf16.gmra.mxu0 %v658
        %v833 = vpop.f32.mrf.mxu0
        %v834 = vadd.f32 %v556, %v833
        %v835 = vpop.f32.mrf.mxu0
        %v836 = vadd.f32 %v556, %v835
        %837 = vmatmul.bf16.gmra.mxu0 %v660
        %v838 = vpop.f32.mrf.mxu0
        %v839 = vadd.f32 %v556, %v838
        %v840 = vpop.f32.mrf.mxu0
        %v841 = vadd.f32 %v556, %v840
        %842 = vmatmul.bf16.gmra.mxu0 %v662
        %v843 = vpop.f32.mrf.mxu0
        %v844 = vadd.f32 %v556, %v843
        %v845 = vpop.f32.mrf.mxu0
        %v846 = vadd.f32 %v556, %v845
        %847 = vmatmul.bf16.gmra.mxu0 %v664
        %v848 = vpop.f32.mrf.mxu0
        %v849 = vadd.f32 %v556, %v848
        %v850 = vpop.f32.mrf.mxu0
        %v851 = vadd.f32 %v556, %v850
        %852 = vmatmul.bf16.gmra.mxu0 %v666
        %v853 = vpop.f32.mrf.mxu0
        %v854 = vadd.f32 %v556, %v853
        %v855 = vpop.f32.mrf.mxu0
        %v856 = vadd.f32 %v556, %v855
        %857 = vmatmul.bf16.gmra.mxu0 %v668
        %v858 = vpop.f32.mrf.mxu0
        %v859 = vadd.f32 %v556, %v858
        %v860 = vpop.f32.mrf.mxu0
        %v861 = vadd.f32 %v556, %v860
        %862 = vmatmul.bf16.gmra.mxu0 %v670
        %v863 = vpop.f32.mrf.mxu0
        %v864 = vadd.f32 %v556, %v863
        %v865 = vpop.f32.mrf.mxu0
        %v866 = vadd.f32 %v556, %v865
        %867 = vmatmul.bf16.gmra.mxu0 %v672
        %v868 = vpop.f32.mrf.mxu0
        %v869 = vadd.f32 %v556, %v868
        %v870 = vpop.f32.mrf.mxu0
        %v871 = vadd.f32 %v556, %v870
        %872 = vmatmul.bf16.gmra.mxu0 %v674
        %v873 = vpop.f32.mrf.mxu0
        %v874 = vadd.f32 %v556, %v873
        %v875 = vpop.f32.mrf.mxu0
        %v876 = vadd.f32 %v556, %v875
        %877 = vmatmul.bf16.gmra.mxu0 %v676
        %v878 = vpop.f32.mrf.mxu0
        %v879 = vadd.f32 %v556, %v878
        %v880 = vpop.f32.mrf.mxu0
        %v881 = vadd.f32 %v556, %v880
        %882 = vmatmul.bf16.gmra.mxu0 %v678
        %v883 = vpop.f32.mrf.mxu0
        %v884 = vadd.f32 %v556, %v883
        %v885 = vpop.f32.mrf.mxu0
        %v886 = vadd.f32 %v556, %v885
        %887 = vmatmul.bf16.gmra.mxu0 %v680
        %v888 = vpop.f32.mrf.mxu0
        %v889 = vadd.f32 %v556, %v888
        %v890 = vpop.f32.mrf.mxu0
        %v891 = vadd.f32 %v556, %v890
        %892 = vmatmul.bf16.gmra.mxu0 %v682
        %v893 = vpop.f32.mrf.mxu0
        %v894 = vadd.f32 %v556, %v893
        %v895 = vpop.f32.mrf.mxu0
        %v896 = vadd.f32 %v556, %v895
        %897 = vmatmul.bf16.gmra.mxu0 %v684
        %v898 = vpop.f32.mrf.mxu0
        %v899 = vadd.f32 %v556, %v898
        %v900 = vpop.f32.mrf.mxu0
        %v901 = vadd.f32 %v556, %v900
        %902 = vdwg.mxu0
        %903 = vmatpush.bf16.msra.mxu0 %v797
        %904 = vmatpush.bf16.msra.mxu0 %v796
        %905 = vmatpush.bf16.msra.mxu0 %v795
        %906 = vmatpush.bf16.msra.mxu0 %v794
        %907 = vmatpush.bf16.msra.mxu0 %v793
        %908 = vmatpush.bf16.msra.mxu0 %v792
        %909 = vmatpush.bf16.msra.mxu0 %v791
        %910 = vmatpush.bf16.msra.mxu0 %v790
        %911 = vmatmul.bf16.gmra.mxu0 %v655
        %v912 = vpop.f32.mrf.mxu0
        %v913 = vadd.f32 %v824, %v912
        %v914 = vpop.f32.mrf.mxu0
        %v915 = vadd.f32 %v826, %v914
        %916 = vmatmul.bf16.gmra.mxu0 %v657
        %v917 = vpop.f32.mrf.mxu0
        %v918 = vadd.f32 %v829, %v917
        %v919 = vpop.f32.mrf.mxu0
        %v920 = vadd.f32 %v831, %v919
        %921 = vmatmul.bf16.gmra.mxu0 %v659
        %v922 = vpop.f32.mrf.mxu0
        %v923 = vadd.f32 %v834, %v922
        %v924 = vpop.f32.mrf.mxu0
        %v925 = vadd.f32 %v836, %v924
        %926 = vmatmul.bf16.gmra.mxu0 %v661
        %v927 = vpop.f32.mrf.mxu0
        %v928 = vadd.f32 %v839, %v927
        %v929 = vpop.f32.mrf.mxu0
        %v930 = vadd.f32 %v841, %v929
        %931 = vmatmul.bf16.gmra.mxu0 %v663
        %v932 = vpop.f32.mrf.mxu0
        %v933 = vadd.f32 %v844, %v932
        %v934 = vpop.f32.mrf.mxu0
        %v935 = vadd.f32 %v846, %v934
        %936 = vmatmul.bf16.gmra.mxu0 %v665
        %v937 = vpop.f32.mrf.mxu0
        %v938 = vadd.f32 %v849, %v937
        %v939 = vpop.f32.mrf.mxu0
        %v940 = vadd.f32 %v851, %v939
        %941 = vmatmul.bf16.gmra.mxu0 %v667
        %v942 = vpop.f32.mrf.mxu0
        %v943 = vadd.f32 %v854, %v942
        %v944 = vpop.f32.mrf.mxu0
        %v945 = vadd.f32 %v856, %v944
        %946 = vmatmul.bf16.gmra.mxu0 %v669
        %v947 = vpop.f32.mrf.mxu0
        %v948 = vadd.f32 %v859, %v947
        %v949 = vpop.f32.mrf.mxu0
        %v950 = vadd.f32 %v861, %v949
        %951 = vmatmul.bf16.gmra.mxu0 %v671
        %v952 = vpop.f32.mrf.mxu0
        %v953 = vadd.f32 %v864, %v952
        %v954 = vpop.f32.mrf.mxu0
        %v955 = vadd.f32 %v866, %v954
        %956 = vmatmul.bf16.gmra.mxu0 %v673
        %v957 = vpop.f32.mrf.mxu0
        %v958 = vadd.f32 %v869, %v957
        %v959 = vpop.f32.mrf.mxu0
        %v960 = vadd.f32 %v871, %v959
        %961 = vmatmul.bf16.gmra.mxu0 %v675
        %v962 = vpop.f32.mrf.mxu0
        %v963 = vadd.f32 %v874, %v962
        %v964 = vpop.f32.mrf.mxu0
        %v965 = vadd.f32 %v876, %v964
        %966 = vmatmul.bf16.gmra.mxu0 %v677
        %v967 = vpop.f32.mrf.mxu0
        %v968 = vadd.f32 %v879, %v967
        %v969 = vpop.f32.mrf.mxu0
        %v970 = vadd.f32 %v881, %v969
        %971 = vmatmul.bf16.gmra.mxu0 %v679
        %v972 = vpop.f32.mrf.mxu0
        %v973 = vadd.f32 %v884, %v972
        %v974 = vpop.f32.mrf.mxu0
        %v975 = vadd.f32 %v886, %v974
        %976 = vmatmul.bf16.gmra.mxu0 %v681
        %v977 = vpop.f32.mrf.mxu0
        %v978 = vadd.f32 %v889, %v977
        %v979 = vpop.f32.mrf.mxu0
        %v980 = vadd.f32 %v891, %v979
        %981 = vmatmul.bf16.gmra.mxu0 %v683
        %v982 = vpop.f32.mrf.mxu0
        %v983 = vadd.f32 %v894, %v982
        %v984 = vpop.f32.mrf.mxu0
        %v985 = vadd.f32 %v896, %v984
        %986 = vmatmul.bf16.gmra.mxu0 %v685
        %v987 = vpop.f32.mrf.mxu0
        %v988 = vadd.f32 %v899, %v987
        %v989 = vpop.f32.mrf.mxu0
        %v990 = vadd.f32 %v901, %v989
        %991 = vdwg.mxu0
        %v992 = vmax.f32 %v913, 0.0
        %v993 = vmax.f32 %v915, 0.0
        %v994 = vmax.f32 %v918, 0.0
        %v995 = vmax.f32 %v920, 0.0
        %v996 = vmax.f32 %v923, 0.0
        %v997 = vmax.f32 %v925, 0.0
        %v998 = vmax.f32 %v928, 0.0
        %v999 = vmax.f32 %v930, 0.0
        %v1000 = vmax.f32 %v933, 0.0
        %v1001 = vmax.f32 %v935, 0.0
        %v1002 = vmax.f32 %v938, 0.0
        %v1003 = vmax.f32 %v940, 0.0
        %v1004 = vmax.f32 %v943, 0.0
        %v1005 = vmax.f32 %v945, 0.0
        %v1006 = vmax.f32 %v948, 0.0
        %v1007 = vmax.f32 %v950, 0.0
        %v1008 = vmax.f32 %v953, 0.0
        %v1009 = vmax.f32 %v955, 0.0
        %v1010 = vmax.f32 %v958, 0.0
        %v1011 = vmax.f32 %v960, 0.0
        %v1012 = vmax.f32 %v963, 0.0
        %v1013 = vmax.f32 %v965, 0.0
        %v1014 = vmax.f32 %v968, 0.0
        %v1015 = vmax.f32 %v970, 0.0
        %v1016 = vmax.f32 %v973, 0.0
        %v1017 = vmax.f32 %v975, 0.0
        %v1018 = vmax.f32 %v978, 0.0
        %v1019 = vmax.f32 %v980, 0.0
        %v1020 = vmax.f32 %v983, 0.0
        %v1021 = vmax.f32 %v985, 0.0
        %v1022 = vmax.f32 %v988, 0.0
        %v1023 = vmax.f32 %v990, 0.0
        %p1024 = scmp.gt.s32.totalorder %s28, 0
        %v1025 = vld [vmem:[%s466] sm:$0xff]
        %v1026 = vld [vmem:[%s466 + $0x8] sm:$0xff]
        %v1029 = vunpack.c.l.b16 %v1025
        %v1030 = vunpack.c.h.b16 %v1025
        %v1031 = vunpack.c.l.b16 %v1026
        %v1032 = vunpack.c.h.b16 %v1026
        %v1033 = vpack.c.b16 %v1031, %v1029
        %v1034 = vpack.c.b16 %v1032, %v1030
        %1037 = vmatpush.bf16.msra.mxu0 %v789
        %1038 = vmatpush.bf16.msra.mxu0 %v788
        %1039 = vmatpush.bf16.msra.mxu0 %v787
        %1040 = vmatpush.bf16.msra.mxu0 %v786
        %1041 = vmatpush.bf16.msra.mxu0 %v785
        %1042 = vmatpush.bf16.msra.mxu0 %v784
        %1043 = vmatpush.bf16.msra.mxu0 %v783
        %1044 = vmatpush.bf16.msra.mxu0 %v782
        %1045 = vmatmul.bf16.gmra.mxu0 %v1033
        %v1046 = vpop.f32.mrf.mxu0
        %v1047 = vadd.f32 %v556, %v1046
        %v1048 = vpop.f32.mrf.mxu0
        %v1049 = vadd.f32 %v556, %v1048
        %1050 = vdwg.mxu0
        %1051 = vmatpush.bf16.msra.mxu0 %v797
        %1052 = vmatpush.bf16.msra.mxu0 %v796
        %1053 = vmatpush.bf16.msra.mxu0 %v795
        %1054 = vmatpush.bf16.msra.mxu0 %v794
        %1055 = vmatpush.bf16.msra.mxu0 %v793
        %1056 = vmatpush.bf16.msra.mxu0 %v792
        %1057 = vmatpush.bf16.msra.mxu0 %v791
        %1058 = vmatpush.bf16.msra.mxu0 %v790
        %1059 = vmatmul.bf16.gmra.mxu0 %v1034
        %v1060 = vpop.f32.mrf.mxu0
        %v1061 = vadd.f32 %v1047, %v1060
        %v1062 = vpop.f32.mrf.mxu0
        %v1063 = vadd.f32 %v1049, %v1062
        %1064 = vdwg.mxu0
        %v1065 = vmax.f32 %v1061, 0.0
        %v1066 = vmax.f32 %v1063, 0.0
        %s1067 = scalar_select %p1024, 1, 0
        %v1068 = vstv %s1067
        %vm1069 = vcmp.eq.s32.totalorder %v1068, 1
        %v1070 = vsel %vm1069, %v1065, 0.0
        %v1071 = vsel %vm1069, %v1066, 0.0
        %p1072 = scmp.lt.s32.totalorder %s28, 0
        %v1073 = vld [vmem:[%s483] sm:$0xff]
        %v1074 = vld [vmem:[%s483 + $0x8] sm:$0xff]
        %v1077 = vunpack.c.l.b16 %v1073
        %v1078 = vunpack.c.h.b16 %v1073
        %v1079 = vunpack.c.l.b16 %v1074
        %v1080 = vunpack.c.h.b16 %v1074
        %v1081 = vpack.c.b16 %v1079, %v1077
        %v1082 = vpack.c.b16 %v1080, %v1078
        %1085 = vmatpush.bf16.msra.mxu0 %v789
        %1086 = vmatpush.bf16.msra.mxu0 %v788
        %1087 = vmatpush.bf16.msra.mxu0 %v787
        %1088 = vmatpush.bf16.msra.mxu0 %v786
        %1089 = vmatpush.bf16.msra.mxu0 %v785
        %1090 = vmatpush.bf16.msra.mxu0 %v784
        %1091 = vmatpush.bf16.msra.mxu0 %v783
        %1092 = vmatpush.bf16.msra.mxu0 %v782
        %1093 = vmatmul.bf16.gmra.mxu0 %v1081
        %v1094 = vpop.f32.mrf.mxu0
        %v1095 = vadd.f32 %v556, %v1094
        %v1096 = vpop.f32.mrf.mxu0
        %v1097 = vadd.f32 %v556, %v1096
        %1098 = vdwg.mxu0
        %1099 = vmatpush.bf16.msra.mxu0 %v797
        %1100 = vmatpush.bf16.msra.mxu0 %v796
        %1101 = vmatpush.bf16.msra.mxu0 %v795
        %1102 = vmatpush.bf16.msra.mxu0 %v794
        %1103 = vmatpush.bf16.msra.mxu0 %v793
        %1104 = vmatpush.bf16.msra.mxu0 %v792
        %1105 = vmatpush.bf16.msra.mxu0 %v791
        %1106 = vmatpush.bf16.msra.mxu0 %v790
        %1107 = vmatmul.bf16.gmra.mxu0 %v1082
        %v1108 = vpop.f32.mrf.mxu0
        %v1109 = vadd.f32 %v1095, %v1108
        %v1110 = vpop.f32.mrf.mxu0
        %v1111 = vadd.f32 %v1097, %v1110
        %1112 = vdwg.mxu0
        %v1113 = vmax.f32 %v1109, 0.0
        %v1114 = vmax.f32 %v1111, 0.0
        %s1115 = scalar_select %p1072, 1, 0
        %v1116 = vstv %s1115
        %vm1117 = vcmp.eq.s32.totalorder %v1116, 1
        %v1118 = vsel %vm1117, %v1113, 0.0
        %v1119 = vsel %vm1117, %v1114, 0.0
        %v1120 = vpack.c.bf16 %v1070, %v1070
        %v1121 = vpack.c.bf16 %v1071, %v1071
        %v1122 = vpack.c.bf16 %v992, %v992
        %v1123 = vpack.c.bf16 %v993, %v993
        %v1124 = vpack.c.bf16 %v994, %v994
        %v1125 = vpack.c.bf16 %v995, %v995
        %v1126 = vpack.c.bf16 %v996, %v996
        %v1127 = vpack.c.bf16 %v997, %v997
        %v1128 = vpack.c.bf16 %v998, %v998
        %v1129 = vpack.c.bf16 %v999, %v999
        %v1130 = vpack.c.bf16 %v1000, %v1000
        %v1131 = vpack.c.bf16 %v1001, %v1001
        %v1132 = vpack.c.bf16 %v1002, %v1002
        %v1133 = vpack.c.bf16 %v1003, %v1003
        %v1134 = vpack.c.bf16 %v1004, %v1004
        %v1135 = vpack.c.bf16 %v1005, %v1005
        %v1136 = vpack.c.bf16 %v1006, %v1006
        %v1137 = vpack.c.bf16 %v1007, %v1007
        %v1138 = vpack.c.bf16 %v1008, %v1008
        %v1139 = vpack.c.bf16 %v1009, %v1009
        %v1140 = vpack.c.bf16 %v1010, %v1010
        %v1141 = vpack.c.bf16 %v1011, %v1011
        %v1142 = vpack.c.bf16 %v1012, %v1012
        %v1143 = vpack.c.bf16 %v1013, %v1013
        %v1144 = vpack.c.bf16 %v1014, %v1014
        %v1145 = vpack.c.bf16 %v1015, %v1015
        %v1146 = vpack.c.bf16 %v1016, %v1016
        %v1147 = vpack.c.bf16 %v1017, %v1017
        %v1148 = vpack.c.bf16 %v1018, %v1018
        %v1149 = vpack.c.bf16 %v1019, %v1019
        %v1150 = vpack.c.bf16 %v1020, %v1020
        %v1151 = vpack.c.bf16 %v1021, %v1021
        %v1152 = vpack.c.bf16 %v1022, %v1022
        %v1153 = vpack.c.bf16 %v1023, %v1023
        %v1154 = vpack.c.bf16 %v1118, %v1118
        %v1155 = vpack.c.bf16 %v1119, %v1119
        %v1192 = vunpack.c.l.b16 %v1120
        %v1193 = vunpack.c.l.b16 %v1121
        %v1194 = vunpack.c.l.b16 %v1122
        %v1195 = vunpack.c.l.b16 %v1123
        %v1196 = vunpack.c.l.b16 %v1124
        %v1197 = vunpack.c.l.b16 %v1125
        %v1198 = vunpack.c.l.b16 %v1126
        %v1199 = vunpack.c.l.b16 %v1127
        %v1200 = vunpack.c.l.b16 %v1128
        %v1201 = vunpack.c.l.b16 %v1129
        %v1202 = vunpack.c.l.b16 %v1130
        %v1203 = vunpack.c.l.b16 %v1131
        %v1204 = vunpack.c.l.b16 %v1132
        %v1205 = vunpack.c.l.b16 %v1133
        %v1206 = vunpack.c.l.b16 %v1134
        %v1207 = vunpack.c.l.b16 %v1135
        %v1208 = vunpack.c.l.b16 %v1136
        %v1209 = vunpack.c.l.b16 %v1137
        %v1210 = vunpack.c.l.b16 %v1138
        %v1211 = vunpack.c.l.b16 %v1139
        %v1212 = vunpack.c.l.b16 %v1140
        %v1213 = vunpack.c.l.b16 %v1141
        %v1214 = vunpack.c.l.b16 %v1142
        %v1215 = vunpack.c.l.b16 %v1143
        %v1216 = vunpack.c.l.b16 %v1144
        %v1217 = vunpack.c.l.b16 %v1145
        %v1218 = vunpack.c.l.b16 %v1146
        %v1219 = vunpack.c.l.b16 %v1147
        %v1220 = vunpack.c.l.b16 %v1148
        %v1221 = vunpack.c.l.b16 %v1149
        %v1222 = vunpack.c.l.b16 %v1150
        %v1223 = vunpack.c.l.b16 %v1151
        %v1224 = vunpack.c.l.b16 %v1152
        %v1225 = vunpack.c.l.b16 %v1153
        %v1226 = vunpack.c.l.b16 %v1154
        %v1227 = vunpack.c.l.b16 %v1155
        %v1228 = vpack.c.b16 %v1193, %v1192
        %v1229 = vpack.c.b16 %v1195, %v1194
        %v1230 = vpack.c.b16 %v1197, %v1196
        %v1231 = vpack.c.b16 %v1199, %v1198
        %v1232 = vpack.c.b16 %v1201, %v1200
        %v1233 = vpack.c.b16 %v1203, %v1202
        %v1234 = vpack.c.b16 %v1205, %v1204
        %v1235 = vpack.c.b16 %v1207, %v1206
        %v1236 = vpack.c.b16 %v1209, %v1208
        %v1237 = vpack.c.b16 %v1211, %v1210
        %v1238 = vpack.c.b16 %v1213, %v1212
        %v1239 = vpack.c.b16 %v1215, %v1214
        %v1240 = vpack.c.b16 %v1217, %v1216
        %v1241 = vpack.c.b16 %v1219, %v1218
        %v1242 = vpack.c.b16 %v1221, %v1220
        %v1243 = vpack.c.b16 %v1223, %v1222
        %v1244 = vpack.c.b16 %v1225, %v1224
        %v1245 = vpack.c.b16 %v1227, %v1226
        %v1247 = vshrl.u32 %v1228, 16
        %v1249 = vrot.slane %v1247, 7
        %v1250 = vshll.u32 %v1228, 16
        %v1252 = vor.u32 %v1249, %v1250
        %v1254 = vshrl.u32 %v1229, 16
        %v1256 = vrot.slane %v1254, 7
        %v1257 = vshll.u32 %v1229, 16
        %v1259 = vor.u32 %v1256, %v1257
        %v1261 = vshrl.u32 %v1230, 16
        %v1263 = vrot.slane %v1261, 7
        %v1264 = vshll.u32 %v1230, 16
        %v1266 = vor.u32 %v1263, %v1264
        %v1268 = vshrl.u32 %v1231, 16
        %v1270 = vrot.slane %v1268, 7
        %v1271 = vshll.u32 %v1231, 16
        %v1273 = vor.u32 %v1270, %v1271
        %v1275 = vshrl.u32 %v1232, 16
        %v1277 = vrot.slane %v1275, 7
        %v1278 = vshll.u32 %v1232, 16
        %v1280 = vor.u32 %v1277, %v1278
        %v1282 = vshrl.u32 %v1233, 16
        %v1284 = vrot.slane %v1282, 7
        %v1285 = vshll.u32 %v1233, 16
        %v1287 = vor.u32 %v1284, %v1285
        %v1289 = vshrl.u32 %v1234, 16
        %v1291 = vrot.slane %v1289, 7
        %v1292 = vshll.u32 %v1234, 16
        %v1294 = vor.u32 %v1291, %v1292
        %v1296 = vshrl.u32 %v1235, 16
        %v1298 = vrot.slane %v1296, 7
        %v1299 = vshll.u32 %v1235, 16
        %v1301 = vor.u32 %v1298, %v1299
        %v1303 = vshrl.u32 %v1236, 16
        %v1305 = vrot.slane %v1303, 7
        %v1306 = vshll.u32 %v1236, 16
        %v1308 = vor.u32 %v1305, %v1306
        %v1310 = vshrl.u32 %v1237, 16
        %v1312 = vrot.slane %v1310, 7
        %v1313 = vshll.u32 %v1237, 16
        %v1315 = vor.u32 %v1312, %v1313
        %v1317 = vshrl.u32 %v1238, 16
        %v1319 = vrot.slane %v1317, 7
        %v1320 = vshll.u32 %v1238, 16
        %v1322 = vor.u32 %v1319, %v1320
        %v1324 = vshrl.u32 %v1239, 16
        %v1326 = vrot.slane %v1324, 7
        %v1327 = vshll.u32 %v1239, 16
        %v1329 = vor.u32 %v1326, %v1327
        %v1331 = vshrl.u32 %v1240, 16
        %v1333 = vrot.slane %v1331, 7
        %v1334 = vshll.u32 %v1240, 16
        %v1336 = vor.u32 %v1333, %v1334
        %v1338 = vshrl.u32 %v1241, 16
        %v1340 = vrot.slane %v1338, 7
        %v1341 = vshll.u32 %v1241, 16
        %v1343 = vor.u32 %v1340, %v1341
        %v1345 = vshrl.u32 %v1242, 16
        %v1347 = vrot.slane %v1345, 7
        %v1348 = vshll.u32 %v1242, 16
        %v1350 = vor.u32 %v1347, %v1348
        %v1352 = vshrl.u32 %v1243, 16
        %v1354 = vrot.slane %v1352, 7
        %v1355 = vshll.u32 %v1243, 16
        %v1357 = vor.u32 %v1354, %v1355
        %v1359 = vshrl.u32 %v1244, 16
        %v1361 = vrot.slane %v1359, 7
        %v1362 = vshll.u32 %v1244, 16
        %v1364 = vor.u32 %v1361, %v1362
        %v1366 = vshrl.u32 %v1245, 16
        %v1368 = vrot.slane %v1366, 7
        %v1369 = vshll.u32 %v1245, 16
        %v1371 = vor.u32 %v1368, %v1369
        %vm1390 = vcmask 1040384
        %vm1391 = vsmask.f32 256
        %vm1392 = vmand %vm1390, %vm1391
        %v1393 = vsel %vm1392, 0, %v1252
        %v1394 = vsel %vm1392, 0, %v1259
        %v1395 = vsel %vm1392, 0, %v1266
        %v1396 = vsel %vm1392, 0, %v1273
        %v1397 = vsel %vm1392, 0, %v1280
        %v1398 = vsel %vm1392, 0, %v1287
        %v1399 = vsel %vm1392, 0, %v1294
        %v1400 = vsel %vm1392, 0, %v1301
        %v1401 = vsel %vm1392, 0, %v1308
        %v1402 = vsel %vm1392, 0, %v1315
        %v1403 = vsel %vm1392, 0, %v1322
        %v1404 = vsel %vm1392, 0, %v1329
        %v1405 = vsel %vm1392, 0, %v1336
        %v1406 = vsel %vm1392, 0, %v1343
        %v1407 = vsel %vm1392, 0, %v1350
        %v1408 = vsel %vm1392, 0, %v1357
        %v1409 = vsel %vm1392, 0, %v1364
        %v1410 = vsel %vm1392, 0, %v1371
        %v1411 = vrot.slane %v1250, 1
        %v1412 = vor.u32 %v1247, %v1411
        %v1413 = vrot.slane %v1257, 1
        %v1414 = vor.u32 %v1254, %v1413
        %v1415 = vrot.slane %v1264, 1
        %v1416 = vor.u32 %v1261, %v1415
        %v1417 = vrot.slane %v1271, 1
        %v1418 = vor.u32 %v1268, %v1417
        %v1419 = vrot.slane %v1278, 1
        %v1420 = vor.u32 %v1275, %v1419
        %v1421 = vrot.slane %v1285, 1
        %v1422 = vor.u32 %v1282, %v1421
        %v1423 = vrot.slane %v1292, 1
        %v1424 = vor.u32 %v1289, %v1423
        %v1425 = vrot.slane %v1299, 1
        %v1426 = vor.u32 %v1296, %v1425
        %v1427 = vrot.slane %v1306, 1
        %v1428 = vor.u32 %v1303, %v1427
        %v1429 = vrot.slane %v1313, 1
        %v1430 = vor.u32 %v1310, %v1429
        %v1431 = vrot.slane %v1320, 1
        %v1432 = vor.u32 %v1317, %v1431
        %v1433 = vrot.slane %v1327, 1
        %v1434 = vor.u32 %v1324, %v1433
        %v1435 = vrot.slane %v1334, 1
        %v1436 = vor.u32 %v1331, %v1435
        %v1437 = vrot.slane %v1341, 1
        %v1438 = vor.u32 %v1338, %v1437
        %v1439 = vrot.slane %v1348, 1
        %v1440 = vor.u32 %v1345, %v1439
        %v1441 = vrot.slane %v1355, 1
        %v1442 = vor.u32 %v1352, %v1441
        %v1443 = vrot.slane %v1362, 1
        %v1444 = vor.u32 %v1359, %v1443
        %v1445 = vrot.slane %v1369, 1
        %v1446 = vor.u32 %v1366, %v1445
        %vm1465 = vcmask 1047552
        %vm1466 = vsmask.f32 7424
        %vm1467 = vmand %vm1465, %vm1466
        %v1468 = vsel %vm1467, %v1412, 0
        %v1469 = vsel %vm1467, %v1414, 0
        %v1470 = vsel %vm1467, %v1416, 0
        %v1471 = vsel %vm1467, %v1418, 0
        %v1472 = vsel %vm1467, %v1420, 0
        %v1473 = vsel %vm1467, %v1422, 0
        %v1474 = vsel %vm1467, %v1424, 0
        %v1475 = vsel %vm1467, %v1426, 0
        %v1476 = vsel %vm1467, %v1428, 0
        %v1477 = vsel %vm1467, %v1430, 0
        %v1478 = vsel %vm1467, %v1432, 0
        %v1479 = vsel %vm1467, %v1434, 0
        %v1480 = vsel %vm1467, %v1436, 0
        %v1481 = vsel %vm1467, %v1438, 0
        %v1482 = vsel %vm1467, %v1440, 0
        %v1483 = vsel %vm1467, %v1442, 0
        %v1484 = vsel %vm1467, %v1444, 0
        %v1485 = vsel %vm1467, %v1446, 0
        %1486 = vrot.lane.b32.xlu0 %v1228, 64
        %v1487 = vpop.permute.xlu0 %1486
        %1488 = vrot.lane.b32.xlu0 %v1229, 64
        %v1489 = vpop.permute.xlu0 %1488
        %1490 = vrot.lane.b32.xlu0 %v1230, 64
        %v1491 = vpop.permute.xlu0 %1490
        %1492 = vrot.lane.b32.xlu0 %v1231, 64
        %v1493 = vpop.permute.xlu0 %1492
        %1494 = vrot.lane.b32.xlu0 %v1232, 64
        %v1495 = vpop.permute.xlu0 %1494
        %1496 = vrot.lane.b32.xlu0 %v1233, 64
        %v1497 = vpop.permute.xlu0 %1496
        %1498 = vrot.lane.b32.xlu0 %v1234, 64
        %v1499 = vpop.permute.xlu0 %1498
        %1500 = vrot.lane.b32.xlu0 %v1235, 64
        %v1501 = vpop.permute.xlu0 %1500
        %1502 = vrot.lane.b32.xlu0 %v1236, 64
        %v1503 = vpop.permute.xlu0 %1502
        %1504 = vrot.lane.b32.xlu0 %v1237, 64
        %v1505 = vpop.permute.xlu0 %1504
        %1506 = vrot.lane.b32.xlu0 %v1238, 64
        %v1507 = vpop.permute.xlu0 %1506
        %1508 = vrot.lane.b32.xlu0 %v1239, 64
        %v1509 = vpop.permute.xlu0 %1508
        %1510 = vrot.lane.b32.xlu0 %v1240, 64
        %v1511 = vpop.permute.xlu0 %1510
        %1512 = vrot.lane.b32.xlu0 %v1241, 64
        %v1513 = vpop.permute.xlu0 %1512
        %1514 = vrot.lane.b32.xlu0 %v1242, 64
        %v1515 = vpop.permute.xlu0 %1514
        %1516 = vrot.lane.b32.xlu0 %v1243, 64
        %v1517 = vpop.permute.xlu0 %1516
        %1518 = vrot.lane.b32.xlu0 %v1244, 64
        %v1519 = vpop.permute.xlu0 %1518
        %1520 = vrot.lane.b32.xlu0 %v1245, 64
        %v1521 = vpop.permute.xlu0 %1520
        %vm1522 = vcmask 523264
        %v1525 = vsel %vm1522, %v1393, %v1487
        %v1528 = vsel %vm1522, %v1394, %v1489
        %v1531 = vsel %vm1522, %v1395, %v1491
        %v1534 = vsel %vm1522, %v1396, %v1493
        %v1537 = vsel %vm1522, %v1397, %v1495
        %v1540 = vsel %vm1522, %v1398, %v1497
        %v1543 = vsel %vm1522, %v1399, %v1499
        %v1546 = vsel %vm1522, %v1400, %v1501
        %v1549 = vsel %vm1522, %v1401, %v1503
        %v1552 = vsel %vm1522, %v1402, %v1505
        %v1555 = vsel %vm1522, %v1403, %v1507
        %v1558 = vsel %vm1522, %v1404, %v1509
        %v1561 = vsel %vm1522, %v1405, %v1511
        %v1564 = vsel %vm1522, %v1406, %v1513
        %v1567 = vsel %vm1522, %v1407, %v1515
        %v1570 = vsel %vm1522, %v1408, %v1517
        %v1573 = vsel %vm1522, %v1409, %v1519
        %v1576 = vsel %vm1522, %v1410, %v1521
        %v1579 = vsel %vm1522, %v1468, 0
        %v1581 = vsel %vm1522, %v1469, 0
        %v1583 = vsel %vm1522, %v1470, 0
        %v1585 = vsel %vm1522, %v1471, 0
        %v1587 = vsel %vm1522, %v1472, 0
        %v1589 = vsel %vm1522, %v1473, 0
        %v1591 = vsel %vm1522, %v1474, 0
        %v1593 = vsel %vm1522, %v1475, 0
        %v1595 = vsel %vm1522, %v1476, 0
        %v1597 = vsel %vm1522, %v1477, 0
        %v1599 = vsel %vm1522, %v1478, 0
        %v1601 = vsel %vm1522, %v1479, 0
        %v1603 = vsel %vm1522, %v1480, 0
        %v1605 = vsel %vm1522, %v1481, 0
        %v1607 = vsel %vm1522, %v1482, 0
        %v1609 = vsel %vm1522, %v1483, 0
        %v1611 = vsel %vm1522, %v1484, 0
        %v1613 = vsel %vm1522, %v1485, 0
        %v1650 = vunpack.c.l.b16 %v1525
        %v1651 = vunpack.c.l.b16 %v1579
        %v1652 = vunpack.c.h.b16 %v1525
        %v1653 = vunpack.c.h.b16 %v1579
        %v1654 = vunpack.c.l.b16 %v1528
        %v1655 = vunpack.c.l.b16 %v1581
        %v1656 = vunpack.c.h.b16 %v1528
        %v1657 = vunpack.c.h.b16 %v1581
        %v1658 = vunpack.c.l.b16 %v1531
        %v1659 = vunpack.c.l.b16 %v1583
        %v1660 = vunpack.c.h.b16 %v1531
        %v1661 = vunpack.c.h.b16 %v1583
        %v1662 = vunpack.c.l.b16 %v1534
        %v1663 = vunpack.c.l.b16 %v1585
        %v1664 = vunpack.c.h.b16 %v1534
        %v1665 = vunpack.c.h.b16 %v1585
        %v1666 = vunpack.c.l.b16 %v1537
        %v1667 = vunpack.c.l.b16 %v1587
        %v1668 = vunpack.c.h.b16 %v1537
        %v1669 = vunpack.c.h.b16 %v1587
        %v1670 = vunpack.c.l.b16 %v1540
        %v1671 = vunpack.c.l.b16 %v1589
        %v1672 = vunpack.c.h.b16 %v1540
        %v1673 = vunpack.c.h.b16 %v1589
        %v1674 = vunpack.c.l.b16 %v1543
        %v1675 = vunpack.c.l.b16 %v1591
        %v1676 = vunpack.c.h.b16 %v1543
        %v1677 = vunpack.c.h.b16 %v1591
        %v1678 = vunpack.c.l.b16 %v1546
        %v1679 = vunpack.c.l.b16 %v1593
        %v1680 = vunpack.c.h.b16 %v1546
        %v1681 = vunpack.c.h.b16 %v1593
        %v1682 = vunpack.c.l.b16 %v1549
        %v1683 = vunpack.c.l.b16 %v1595
        %v1684 = vunpack.c.h.b16 %v1549
        %v1685 = vunpack.c.h.b16 %v1595
        %v1686 = vunpack.c.l.b16 %v1552
        %v1687 = vunpack.c.l.b16 %v1597
        %v1688 = vunpack.c.h.b16 %v1552
        %v1689 = vunpack.c.h.b16 %v1597
        %v1690 = vunpack.c.l.b16 %v1555
        %v1691 = vunpack.c.l.b16 %v1599
        %v1692 = vunpack.c.h.b16 %v1555
        %v1693 = vunpack.c.h.b16 %v1599
        %v1694 = vunpack.c.l.b16 %v1558
        %v1695 = vunpack.c.l.b16 %v1601
        %v1696 = vunpack.c.h.b16 %v1558
        %v1697 = vunpack.c.h.b16 %v1601
        %v1698 = vunpack.c.l.b16 %v1561
        %v1699 = vunpack.c.l.b16 %v1603
        %v1700 = vunpack.c.h.b16 %v1561
        %v1701 = vunpack.c.h.b16 %v1603
        %v1702 = vunpack.c.l.b16 %v1564
        %v1703 = vunpack.c.l.b16 %v1605
        %v1704 = vunpack.c.h.b16 %v1564
        %v1705 = vunpack.c.h.b16 %v1605
        %v1706 = vunpack.c.l.b16 %v1567
        %v1707 = vunpack.c.l.b16 %v1607
        %v1708 = vunpack.c.h.b16 %v1567
        %v1709 = vunpack.c.h.b16 %v1607
        %v1710 = vunpack.c.l.b16 %v1570
        %v1711 = vunpack.c.l.b16 %v1609
        %v1712 = vunpack.c.h.b16 %v1570
        %v1713 = vunpack.c.h.b16 %v1609
        %v1714 = vunpack.c.l.b16 %v1573
        %v1715 = vunpack.c.l.b16 %v1611
        %v1716 = vunpack.c.h.b16 %v1573
        %v1717 = vunpack.c.h.b16 %v1611
        %v1718 = vunpack.c.l.b16 %v1576
        %v1719 = vunpack.c.l.b16 %v1613
        %v1720 = vunpack.c.h.b16 %v1576
        %v1721 = vunpack.c.h.b16 %v1613
        %v1722 = vpack.c.b16 %v1651, %v1650
        %v1723 = vpack.c.b16 %v1653, %v1652
        %v1724 = vpack.c.b16 %v1655, %v1654
        %v1725 = vpack.c.b16 %v1657, %v1656
        %v1726 = vpack.c.b16 %v1659, %v1658
        %v1727 = vpack.c.b16 %v1661, %v1660
        %v1728 = vpack.c.b16 %v1663, %v1662
        %v1729 = vpack.c.b16 %v1665, %v1664
        %v1730 = vpack.c.b16 %v1667, %v1666
        %v1731 = vpack.c.b16 %v1669, %v1668
        %v1732 = vpack.c.b16 %v1671, %v1670
        %v1733 = vpack.c.b16 %v1673, %v1672
        %v1734 = vpack.c.b16 %v1675, %v1674
        %v1735 = vpack.c.b16 %v1677, %v1676
        %v1736 = vpack.c.b16 %v1679, %v1678
        %v1737 = vpack.c.b16 %v1681, %v1680
        %v1738 = vpack.c.b16 %v1683, %v1682
        %v1739 = vpack.c.b16 %v1685, %v1684
        %v1740 = vpack.c.b16 %v1687, %v1686
        %v1741 = vpack.c.b16 %v1689, %v1688
        %v1742 = vpack.c.b16 %v1691, %v1690
        %v1743 = vpack.c.b16 %v1693, %v1692
        %v1744 = vpack.c.b16 %v1695, %v1694
        %v1745 = vpack.c.b16 %v1697, %v1696
        %v1746 = vpack.c.b16 %v1699, %v1698
        %v1747 = vpack.c.b16 %v1701, %v1700
        %v1748 = vpack.c.b16 %v1703, %v1702
        %v1749 = vpack.c.b16 %v1705, %v1704
        %v1750 = vpack.c.b16 %v1707, %v1706
        %v1751 = vpack.c.b16 %v1709, %v1708
        %v1752 = vpack.c.b16 %v1711, %v1710
        %v1753 = vpack.c.b16 %v1713, %v1712
        %v1754 = vpack.c.b16 %v1715, %v1714
        %v1755 = vpack.c.b16 %v1717, %v1716
        %v1756 = vpack.c.b16 %v1719, %v1718
        %v1757 = vpack.c.b16 %v1721, %v1720
        %1794 = vst [vmem:[#allocation2] sm:$0xff] %v1722
        %1795 = vst [vmem:[#allocation2 + $0x8] sm:$0xff] %v1723
        %1796 = vst [vmem:[#allocation2 + $0x10] sm:$0xff] %v1724
        %1797 = vst [vmem:[#allocation2 + $0x18] sm:$0xff] %v1725
        %1798 = vst [vmem:[#allocation2 + $0x20] sm:$0xff] %v1726
        %1799 = vst [vmem:[#allocation2 + $0x28] sm:$0xff] %v1727
        %1800 = vst [vmem:[#allocation2 + $0x30] sm:$0xff] %v1728
        %1801 = vst [vmem:[#allocation2 + $0x38] sm:$0xff] %v1729
        %1802 = vst [vmem:[#allocation2 + $0x40] sm:$0xff] %v1730
        %1803 = vst [vmem:[#allocation2 + $0x48] sm:$0xff] %v1731
        %1804 = vst [vmem:[#allocation2 + $0x50] sm:$0xff] %v1732
        %1805 = vst [vmem:[#allocation2 + $0x58] sm:$0xff] %v1733
        %1806 = vst [vmem:[#allocation2 + $0x60] sm:$0xff] %v1734
        %1807 = vst [vmem:[#allocation2 + $0x68] sm:$0xff] %v1735
        %1808 = vst [vmem:[#allocation2 + $0x70] sm:$0xff] %v1736
        %1809 = vst [vmem:[#allocation2 + $0x78] sm:$0xff] %v1737
        %1810 = vst [vmem:[#allocation2 + $0x80] sm:$0xff] %v1738
        %1811 = vst [vmem:[#allocation2 + $0x88] sm:$0xff] %v1739
        %1812 = vst [vmem:[#allocation2 + $0x90] sm:$0xff] %v1740
        %1813 = vst [vmem:[#allocation2 + $0x98] sm:$0xff] %v1741
        %1814 = vst [vmem:[#allocation2 + $0xa0] sm:$0xff] %v1742
        %1815 = vst [vmem:[#allocation2 + $0xa8] sm:$0xff] %v1743
        %1816 = vst [vmem:[#allocation2 + $0xb0] sm:$0xff] %v1744
        %1817 = vst [vmem:[#allocation2 + $0xb8] sm:$0xff] %v1745
        %1818 = vst [vmem:[#allocation2 + $0xc0] sm:$0xff] %v1746
        %1819 = vst [vmem:[#allocation2 + $0xc8] sm:$0xff] %v1747
        %1820 = vst [vmem:[#allocation2 + $0xd0] sm:$0xff] %v1748
        %1821 = vst [vmem:[#allocation2 + $0xd8] sm:$0xff] %v1749
        %1822 = vst [vmem:[#allocation2 + $0xe0] sm:$0xff] %v1750
        %1823 = vst [vmem:[#allocation2 + $0xe8] sm:$0xff] %v1751
        %1824 = vst [vmem:[#allocation2 + $0xf0] sm:$0xff] %v1752
        %1825 = vst [vmem:[#allocation2 + $0xf8] sm:$0xff] %v1753
        %1826 = vst [vmem:[#allocation2 + $0x100] sm:$0xff] %v1754
        %1827 = vst [vmem:[#allocation2 + $0x108] sm:$0xff] %v1755
        %1828 = vst [vmem:[#allocation2 + $0x110] sm:$0xff] %v1756
        %1829 = vst [vmem:[#allocation2 + $0x118] sm:$0xff] %v1757
        %v1830 = vld [vmem:[#allocation2] sm:$0xff]
        %v1831 = vld [vmem:[#allocation2 + $0x8] sm:$0xff]
        %v1832 = vld [vmem:[#allocation2 + $0x10] sm:$0xff]
        %v1833 = vld [vmem:[#allocation2 + $0x18] sm:$0xff]
        %v1834 = vld [vmem:[#allocation2 + $0x20] sm:$0xff]
        %v1835 = vld [vmem:[#allocation2 + $0x28] sm:$0xff]
        %v1836 = vld [vmem:[#allocation2 + $0x30] sm:$0xff]
        %v1837 = vld [vmem:[#allocation2 + $0x38] sm:$0xff]
        %v1838 = vld [vmem:[#allocation2 + $0x40] sm:$0xff]
        %v1839 = vld [vmem:[#allocation2 + $0x48] sm:$0xff]
        %v1840 = vld [vmem:[#allocation2 + $0x50] sm:$0xff]
        %v1841 = vld [vmem:[#allocation2 + $0x58] sm:$0xff]
        %v1842 = vld [vmem:[#allocation2 + $0x60] sm:$0xff]
        %v1843 = vld [vmem:[#allocation2 + $0x68] sm:$0xff]
        %v1844 = vld [vmem:[#allocation2 + $0x70] sm:$0xff]
        %v1845 = vld [vmem:[#allocation2 + $0x78] sm:$0xff]
        %v1846 = vld [vmem:[#allocation2 + $0x80] sm:$0xff]
        %v1847 = vld [vmem:[#allocation2 + $0x88] sm:$0xff]
        %v1848 = vld [vmem:[#allocation2 + $0x90] sm:$0xff]
        %v1849 = vld [vmem:[#allocation2 + $0x98] sm:$0xff]
        %v1850 = vld [vmem:[#allocation2 + $0xa0] sm:$0xff]
        %v1851 = vld [vmem:[#allocation2 + $0xa8] sm:$0xff]
        %v1852 = vld [vmem:[#allocation2 + $0xb0] sm:$0xff]
        %v1853 = vld [vmem:[#allocation2 + $0xb8] sm:$0xff]
        %v1854 = vld [vmem:[#allocation2 + $0xc0] sm:$0xff]
        %v1855 = vld [vmem:[#allocation2 + $0xc8] sm:$0xff]
        %v1856 = vld [vmem:[#allocation2 + $0xd0] sm:$0xff]
        %v1857 = vld [vmem:[#allocation2 + $0xd8] sm:$0xff]
        %v1858 = vld [vmem:[#allocation2 + $0xe0] sm:$0xff]
        %v1859 = vld [vmem:[#allocation2 + $0xe8] sm:$0xff]
        %v1860 = vld [vmem:[#allocation2 + $0xf0] sm:$0xff]
        %v1861 = vld [vmem:[#allocation2 + $0xf8] sm:$0xff]
        %v1862 = vld [vmem:[%s5] sm:$0xf]
        %v1863 = vld [vmem:[%s5 + $0x4] sm:$0xf]
        %v1864 = vld [vmem:[%s5 + $0x8] sm:$0xf]
        %v1865 = vld [vmem:[%s5 + $0xc] sm:$0xf]
        %v1866 = vld [vmem:[%s5 + $0x10] sm:$0xf]
        %v1867 = vld [vmem:[%s5 + $0x14] sm:$0xf]
        %v1868 = vld [vmem:[%s5 + $0x18] sm:$0xf]
        %v1869 = vld [vmem:[%s5 + $0x1c] sm:$0xf]
        %v1870 = vld [vmem:[%s5 + $0x20] sm:$0xf]
        %v1871 = vld [vmem:[%s5 + $0x24] sm:$0xf]
        %v1872 = vld [vmem:[%s5 + $0x28] sm:$0xf]
        %v1873 = vld [vmem:[%s5 + $0x2c] sm:$0xf]
        %v1874 = vld [vmem:[%s5 + $0x30] sm:$0xf]
        %v1875 = vld [vmem:[%s5 + $0x34] sm:$0xf]
        %v1876 = vld [vmem:[%s5 + $0x38] sm:$0xf]
        %v1877 = vld [vmem:[%s5 + $0x3c] sm:$0xf]
        %v1878 = vld [vmem:[%s5 + $0x40] sm:$0xf]
        %v1879 = vld [vmem:[%s5 + $0x44] sm:$0xf]
        %v1880 = vld [vmem:[%s5 + $0x48] sm:$0xf]
        %v1881 = vld [vmem:[%s5 + $0x4c] sm:$0xf]
        %v1882 = vld [vmem:[%s5 + $0x50] sm:$0xf]
        %v1883 = vld [vmem:[%s5 + $0x54] sm:$0xf]
        %v1884 = vld [vmem:[%s5 + $0x58] sm:$0xf]
        %v1885 = vld [vmem:[%s5 + $0x5c] sm:$0xf]
        %v1886 = vld [vmem:[%s5 + $0x60] sm:$0xf]
        %v1887 = vld [vmem:[%s5 + $0x64] sm:$0xf]
        %v1888 = vld [vmem:[%s5 + $0x68] sm:$0xf]
        %v1889 = vld [vmem:[%s5 + $0x6c] sm:$0xf]
        %v1890 = vld [vmem:[%s5 + $0x70] sm:$0xf]
        %v1891 = vld [vmem:[%s5 + $0x74] sm:$0xf]
        %v1892 = vld [vmem:[%s5 + $0x78] sm:$0xf]
        %v1893 = vld [vmem:[%s5 + $0x7c] sm:$0xf]
        %v1894 = vld [vmem:[#allocation2 + $0x100] sm:$0xff]
        %v1895 = vld [vmem:[#allocation2 + $0x108] sm:$0xff]
        %s1896 = scalar_lea.vmem %s5, 128
        %v1897 = vld [vmem:[%s1896] sm:$0xf]
        %v1898 = vld [vmem:[%s1896 + $0x4] sm:$0xf]
        %v1899 = vld [vmem:[%s1896 + $0x8] sm:$0xf]
        %v1900 = vld [vmem:[%s1896 + $0xc] sm:$0xf]
        %v1901 = vld [vmem:[%s1896 + $0x10] sm:$0xf]
        %v1902 = vld [vmem:[%s1896 + $0x14] sm:$0xf]
        %v1903 = vld [vmem:[%s1896 + $0x18] sm:$0xf]
        %v1904 = vld [vmem:[%s1896 + $0x1c] sm:$0xf]
        %v1905 = vld [vmem:[%s1896 + $0x20] sm:$0xf]
        %v1906 = vld [vmem:[%s1896 + $0x24] sm:$0xf]
        %v1907 = vld [vmem:[%s1896 + $0x28] sm:$0xf]
        %v1908 = vld [vmem:[%s1896 + $0x2c] sm:$0xf]
        %v1909 = vld [vmem:[%s1896 + $0x30] sm:$0xf]
        %v1910 = vld [vmem:[%s1896 + $0x34] sm:$0xf]
        %v1911 = vld [vmem:[%s1896 + $0x38] sm:$0xf]
        %v1912 = vld [vmem:[%s1896 + $0x3c] sm:$0xf]
        %v1913 = vld [vmem:[%s1896 + $0x40] sm:$0xf]
        %v1914 = vld [vmem:[%s1896 + $0x44] sm:$0xf]
        %v1915 = vld [vmem:[%s1896 + $0x48] sm:$0xf]
        %v1916 = vld [vmem:[%s1896 + $0x4c] sm:$0xf]
        %v1917 = vld [vmem:[%s1896 + $0x50] sm:$0xf]
        %v1918 = vld [vmem:[%s1896 + $0x54] sm:$0xf]
        %v1919 = vld [vmem:[%s1896 + $0x58] sm:$0xf]
        %v1920 = vld [vmem:[%s1896 + $0x5c] sm:$0xf]
        %v1921 = vld [vmem:[%s1896 + $0x60] sm:$0xf]
        %v1922 = vld [vmem:[%s1896 + $0x64] sm:$0xf]
        %v1923 = vld [vmem:[%s1896 + $0x68] sm:$0xf]
        %v1924 = vld [vmem:[%s1896 + $0x6c] sm:$0xf]
        %v1925 = vld [vmem:[%s1896 + $0x70] sm:$0xf]
        %v1926 = vld [vmem:[%s1896 + $0x74] sm:$0xf]
        %v1927 = vld [vmem:[%s1896 + $0x78] sm:$0xf]
        %v1928 = vld [vmem:[%s1896 + $0x7c] sm:$0xf]
        %v1961 = vunpack.c.l.b16 %v1832
        %v1962 = vunpack.c.h.b16 %v1832
        %v1963 = vunpack.c.l.b16 %v1833
        %v1964 = vunpack.c.h.b16 %v1833
        %v1965 = vunpack.c.l.b16 %v1834
        %v1966 = vunpack.c.h.b16 %v1834
        %v1967 = vunpack.c.l.b16 %v1835
        %v1968 = vunpack.c.h.b16 %v1835
        %v1969 = vunpack.c.l.b16 %v1836
        %v1970 = vunpack.c.h.b16 %v1836
        %v1971 = vunpack.c.l.b16 %v1837
        %v1972 = vunpack.c.h.b16 %v1837
        %v1973 = vunpack.c.l.b16 %v1838
        %v1974 = vunpack.c.h.b16 %v1838
        %v1975 = vunpack.c.l.b16 %v1839
        %v1976 = vunpack.c.h.b16 %v1839
        %v1977 = vunpack.c.l.b16 %v1840
        %v1978 = vunpack.c.h.b16 %v1840
        %v1979 = vunpack.c.l.b16 %v1841
        %v1980 = vunpack.c.h.b16 %v1841
        %v1981 = vunpack.c.l.b16 %v1842
        %v1982 = vunpack.c.h.b16 %v1842
        %v1983 = vunpack.c.l.b16 %v1843
        %v1984 = vunpack.c.h.b16 %v1843
        %v1985 = vunpack.c.l.b16 %v1844
        %v1986 = vunpack.c.h.b16 %v1844
        %v1987 = vunpack.c.l.b16 %v1845
        %v1988 = vunpack.c.h.b16 %v1845
        %v1989 = vunpack.c.l.b16 %v1846
        %v1990 = vunpack.c.h.b16 %v1846
        %v1991 = vunpack.c.l.b16 %v1847
        %v1992 = vunpack.c.h.b16 %v1847
        %v1993 = vunpack.c.l.b16 %v1848
        %v1994 = vunpack.c.h.b16 %v1848
        %v1995 = vunpack.c.l.b16 %v1849
        %v1996 = vunpack.c.h.b16 %v1849
        %v1997 = vunpack.c.l.b16 %v1850
        %v1998 = vunpack.c.h.b16 %v1850
        %v1999 = vunpack.c.l.b16 %v1851
        %v2000 = vunpack.c.h.b16 %v1851
        %v2001 = vunpack.c.l.b16 %v1852
        %v2002 = vunpack.c.h.b16 %v1852
        %v2003 = vunpack.c.l.b16 %v1853
        %v2004 = vunpack.c.h.b16 %v1853
        %v2005 = vunpack.c.l.b16 %v1854
        %v2006 = vunpack.c.h.b16 %v1854
        %v2007 = vunpack.c.l.b16 %v1855
        %v2008 = vunpack.c.h.b16 %v1855
        %v2009 = vunpack.c.l.b16 %v1856
        %v2010 = vunpack.c.h.b16 %v1856
        %v2011 = vunpack.c.l.b16 %v1857
        %v2012 = vunpack.c.h.b16 %v1857
        %v2013 = vunpack.c.l.b16 %v1858
        %v2014 = vunpack.c.h.b16 %v1858
        %v2015 = vunpack.c.l.b16 %v1859
        %v2016 = vunpack.c.h.b16 %v1859
        %v2017 = vunpack.c.l.b16 %v1860
        %v2018 = vunpack.c.h.b16 %v1860
        %v2019 = vunpack.c.l.b16 %v1861
        %v2020 = vunpack.c.h.b16 %v1861
        %v2021 = vunpack.c.l.b16 %v1894
        %v2022 = vunpack.c.h.b16 %v1894
        %v2023 = vunpack.c.l.b16 %v1895
        %v2024 = vunpack.c.h.b16 %v1895
        %v2025 = vpack.c.b16 %v1963, %v1961
        %v2026 = vpack.c.b16 %v1964, %v1962
        %v2027 = vpack.c.b16 %v1967, %v1965
        %v2028 = vpack.c.b16 %v1968, %v1966
        %v2029 = vpack.c.b16 %v1971, %v1969
        %v2030 = vpack.c.b16 %v1972, %v1970
        %v2031 = vpack.c.b16 %v1975, %v1973
        %v2032 = vpack.c.b16 %v1976, %v1974
        %v2033 = vpack.c.b16 %v1979, %v1977
        %v2034 = vpack.c.b16 %v1980, %v1978
        %v2035 = vpack.c.b16 %v1983, %v1981
        %v2036 = vpack.c.b16 %v1984, %v1982
        %v2037 = vpack.c.b16 %v1987, %v1985
        %v2038 = vpack.c.b16 %v1988, %v1986
        %v2039 = vpack.c.b16 %v1991, %v1989
        %v2040 = vpack.c.b16 %v1992, %v1990
        %v2041 = vpack.c.b16 %v1995, %v1993
        %v2042 = vpack.c.b16 %v1996, %v1994
        %v2043 = vpack.c.b16 %v1999, %v1997
        %v2044 = vpack.c.b16 %v2000, %v1998
        %v2045 = vpack.c.b16 %v2003, %v2001
        %v2046 = vpack.c.b16 %v2004, %v2002
        %v2047 = vpack.c.b16 %v2007, %v2005
        %v2048 = vpack.c.b16 %v2008, %v2006
        %v2049 = vpack.c.b16 %v2011, %v2009
        %v2050 = vpack.c.b16 %v2012, %v2010
        %v2051 = vpack.c.b16 %v2015, %v2013
        %v2052 = vpack.c.b16 %v2016, %v2014
        %v2053 = vpack.c.b16 %v2019, %v2017
        %v2054 = vpack.c.b16 %v2020, %v2018
        %v2055 = vpack.c.b16 %v2023, %v2021
        %v2056 = vpack.c.b16 %v2024, %v2022
        %v2121 = vunpack.c.l.b16 %v1897
        %v2122 = vunpack.c.l.b16 %v1898
        %v2123 = vunpack.c.l.b16 %v1899
        %v2124 = vunpack.c.l.b16 %v1900
        %v2125 = vunpack.c.l.b16 %v1901
        %v2126 = vunpack.c.l.b16 %v1902
        %v2127 = vunpack.c.l.b16 %v1903
        %v2128 = vunpack.c.l.b16 %v1904
        %v2129 = vunpack.c.l.b16 %v1905
        %v2130 = vunpack.c.l.b16 %v1906
        %v2131 = vunpack.c.l.b16 %v1907
        %v2132 = vunpack.c.l.b16 %v1908
        %v2133 = vunpack.c.l.b16 %v1909
        %v2134 = vunpack.c.l.b16 %v1910
        %v2135 = vunpack.c.l.b16 %v1911
        %v2136 = vunpack.c.l.b16 %v1912
        %v2137 = vunpack.c.l.b16 %v1913
        %v2138 = vunpack.c.l.b16 %v1914
        %v2139 = vunpack.c.l.b16 %v1915
        %v2140 = vunpack.c.l.b16 %v1916
        %v2141 = vunpack.c.l.b16 %v1917
        %v2142 = vunpack.c.l.b16 %v1918
        %v2143 = vunpack.c.l.b16 %v1919
        %v2144 = vunpack.c.l.b16 %v1920
        %v2145 = vunpack.c.l.b16 %v1921
        %v2146 = vunpack.c.l.b16 %v1922
        %v2147 = vunpack.c.l.b16 %v1923
        %v2148 = vunpack.c.l.b16 %v1924
        %v2149 = vunpack.c.l.b16 %v1925
        %v2150 = vunpack.c.l.b16 %v1926
        %v2151 = vunpack.c.l.b16 %v1927
        %v2152 = vunpack.c.l.b16 %v1928
        %v2153 = vpack.c.b16 %v2122, %v2121
        %v2154 = vpack.c.b16 %v2124, %v2123
        %v2155 = vpack.c.b16 %v2126, %v2125
        %v2156 = vpack.c.b16 %v2128, %v2127
        %v2157 = vpack.c.b16 %v2130, %v2129
        %v2158 = vpack.c.b16 %v2132, %v2131
        %v2159 = vpack.c.b16 %v2134, %v2133
        %v2160 = vpack.c.b16 %v2136, %v2135
        %v2161 = vpack.c.b16 %v2138, %v2137
        %v2162 = vpack.c.b16 %v2140, %v2139
        %v2163 = vpack.c.b16 %v2142, %v2141
        %v2164 = vpack.c.b16 %v2144, %v2143
        %v2165 = vpack.c.b16 %v2146, %v2145
        %v2166 = vpack.c.b16 %v2148, %v2147
        %v2167 = vpack.c.b16 %v2150, %v2149
        %v2168 = vpack.c.b16 %v2152, %v2151
        %2185 = vmatpush.bf16.msra.mxu0 %v2160
        %2186 = vmatpush.bf16.msra.mxu0 %v2159
        %2187 = vmatpush.bf16.msra.mxu0 %v2158
        %2188 = vmatpush.bf16.msra.mxu0 %v2157
        %2189 = vmatpush.bf16.msra.mxu0 %v2156
        %2190 = vmatpush.bf16.msra.mxu0 %v2155
        %2191 = vmatpush.bf16.msra.mxu0 %v2154
        %2192 = vmatpush.bf16.msra.mxu0 %v2153
        %2193 = vmatmul.bf16.gmra.mxu0 %v2025
        %v2194 = vpop.f32.mrf.mxu0
        %v2195 = vadd.f32 0.0, %v2194
        %v2196 = vpop.f32.mrf.mxu0
        %v2197 = vadd.f32 0.0, %v2196
        %2198 = vmatmul.bf16.gmra.mxu0 %v2027
        %v2199 = vpop.f32.mrf.mxu0
        %v2200 = vadd.f32 0.0, %v2199
        %v2201 = vpop.f32.mrf.mxu0
        %v2202 = vadd.f32 0.0, %v2201
        %2203 = vmatmul.bf16.gmra.mxu0 %v2029
        %v2204 = vpop.f32.mrf.mxu0
        %v2205 = vadd.f32 0.0, %v2204
        %v2206 = vpop.f32.mrf.mxu0
        %v2207 = vadd.f32 0.0, %v2206
        %2208 = vmatmul.bf16.gmra.mxu0 %v2031
        %v2209 = vpop.f32.mrf.mxu0
        %v2210 = vadd.f32 0.0, %v2209
        %v2211 = vpop.f32.mrf.mxu0
        %v2212 = vadd.f32 0.0, %v2211
        %2213 = vmatmul.bf16.gmra.mxu0 %v2033
        %v2214 = vpop.f32.mrf.mxu0
        %v2215 = vadd.f32 0.0, %v2214
        %v2216 = vpop.f32.mrf.mxu0
        %v2217 = vadd.f32 0.0, %v2216
        %2218 = vmatmul.bf16.gmra.mxu0 %v2035
        %v2219 = vpop.f32.mrf.mxu0
        %v2220 = vadd.f32 0.0, %v2219
        %v2221 = vpop.f32.mrf.mxu0
        %v2222 = vadd.f32 0.0, %v2221
        %2223 = vmatmul.bf16.gmra.mxu0 %v2037
        %v2224 = vpop.f32.mrf.mxu0
        %v2225 = vadd.f32 0.0, %v2224
        %v2226 = vpop.f32.mrf.mxu0
        %v2227 = vadd.f32 0.0, %v2226
        %2228 = vmatmul.bf16.gmra.mxu0 %v2039
        %v2229 = vpop.f32.mrf.mxu0
        %v2230 = vadd.f32 0.0, %v2229
        %v2231 = vpop.f32.mrf.mxu0
        %v2232 = vadd.f32 0.0, %v2231
        %2233 = vmatmul.bf16.gmra.mxu0 %v2041
        %v2234 = vpop.f32.mrf.mxu0
        %v2235 = vadd.f32 0.0, %v2234
        %v2236 = vpop.f32.mrf.mxu0
        %v2237 = vadd.f32 0.0, %v2236
        %2238 = vmatmul.bf16.gmra.mxu0 %v2043
        %v2239 = vpop.f32.mrf.mxu0
        %v2240 = vadd.f32 0.0, %v2239
        %v2241 = vpop.f32.mrf.mxu0
        %v2242 = vadd.f32 0.0, %v2241
        %2243 = vmatmul.bf16.gmra.mxu0 %v2045
        %v2244 = vpop.f32.mrf.mxu0
        %v2245 = vadd.f32 0.0, %v2244
        %v2246 = vpop.f32.mrf.mxu0
        %v2247 = vadd.f32 0.0, %v2246
        %2248 = vmatmul.bf16.gmra.mxu0 %v2047
        %v2249 = vpop.f32.mrf.mxu0
        %v2250 = vadd.f32 0.0, %v2249
        %v2251 = vpop.f32.mrf.mxu0
        %v2252 = vadd.f32 0.0, %v2251
        %2253 = vmatmul.bf16.gmra.mxu0 %v2049
        %v2254 = vpop.f32.mrf.mxu0
        %v2255 = vadd.f32 0.0, %v2254
        %v2256 = vpop.f32.mrf.mxu0
        %v2257 = vadd.f32 0.0, %v2256
        %2258 = vmatmul.bf16.gmra.mxu0 %v2051
        %v2259 = vpop.f32.mrf.mxu0
        %v2260 = vadd.f32 0.0, %v2259
        %v2261 = vpop.f32.mrf.mxu0
        %v2262 = vadd.f32 0.0, %v2261
        %2263 = vmatmul.bf16.gmra.mxu0 %v2053
        %v2264 = vpop.f32.mrf.mxu0
        %v2265 = vadd.f32 0.0, %v2264
        %v2266 = vpop.f32.mrf.mxu0
        %v2267 = vadd.f32 0.0, %v2266
        %2268 = vmatmul.bf16.gmra.mxu0 %v2055
        %v2269 = vpop.f32.mrf.mxu0
        %v2270 = vadd.f32 0.0, %v2269
        %v2271 = vpop.f32.mrf.mxu0
        %v2272 = vadd.f32 0.0, %v2271
        %2273 = vdwg.mxu0
        %2274 = vmatpush.bf16.msra.mxu0 %v2168
        %2275 = vmatpush.bf16.msra.mxu0 %v2167
        %2276 = vmatpush.bf16.msra.mxu0 %v2166
        %2277 = vmatpush.bf16.msra.mxu0 %v2165
        %2278 = vmatpush.bf16.msra.mxu0 %v2164
        %2279 = vmatpush.bf16.msra.mxu0 %v2163
        %2280 = vmatpush.bf16.msra.mxu0 %v2162
        %2281 = vmatpush.bf16.msra.mxu0 %v2161
        %2282 = vmatmul.bf16.gmra.mxu0 %v2026
        %v2283 = vpop.f32.mrf.mxu0
        %v2284 = vadd.f32 %v2195, %v2283
        %v2285 = vpop.f32.mrf.mxu0
        %v2286 = vadd.f32 %v2197, %v2285
        %2287 = vmatmul.bf16.gmra.mxu0 %v2028
        %v2288 = vpop.f32.mrf.mxu0
        %v2289 = vadd.f32 %v2200, %v2288
        %v2290 = vpop.f32.mrf.mxu0
        %v2291 = vadd.f32 %v2202, %v2290
        %2292 = vmatmul.bf16.gmra.mxu0 %v2030
        %v2293 = vpop.f32.mrf.mxu0
        %v2294 = vadd.f32 %v2205, %v2293
        %v2295 = vpop.f32.mrf.mxu0
        %v2296 = vadd.f32 %v2207, %v2295
        %2297 = vmatmul.bf16.gmra.mxu0 %v2032
        %v2298 = vpop.f32.mrf.mxu0
        %v2299 = vadd.f32 %v2210, %v2298
        %v2300 = vpop.f32.mrf.mxu0
        %v2301 = vadd.f32 %v2212, %v2300
        %2302 = vmatmul.bf16.gmra.mxu0 %v2034
        %v2303 = vpop.f32.mrf.mxu0
        %v2304 = vadd.f32 %v2215, %v2303
        %v2305 = vpop.f32.mrf.mxu0
        %v2306 = vadd.f32 %v2217, %v2305
        %2307 = vmatmul.bf16.gmra.mxu0 %v2036
        %v2308 = vpop.f32.mrf.mxu0
        %v2309 = vadd.f32 %v2220, %v2308
        %v2310 = vpop.f32.mrf.mxu0
        %v2311 = vadd.f32 %v2222, %v2310
        %2312 = vmatmul.bf16.gmra.mxu0 %v2038
        %v2313 = vpop.f32.mrf.mxu0
        %v2314 = vadd.f32 %v2225, %v2313
        %v2315 = vpop.f32.mrf.mxu0
        %v2316 = vadd.f32 %v2227, %v2315
        %2317 = vmatmul.bf16.gmra.mxu0 %v2040
        %v2318 = vpop.f32.mrf.mxu0
        %v2319 = vadd.f32 %v2230, %v2318
        %v2320 = vpop.f32.mrf.mxu0
        %v2321 = vadd.f32 %v2232, %v2320
        %2322 = vmatmul.bf16.gmra.mxu0 %v2042
        %v2323 = vpop.f32.mrf.mxu0
        %v2324 = vadd.f32 %v2235, %v2323
        %v2325 = vpop.f32.mrf.mxu0
        %v2326 = vadd.f32 %v2237, %v2325
        %2327 = vmatmul.bf16.gmra.mxu0 %v2044
        %v2328 = vpop.f32.mrf.mxu0
        %v2329 = vadd.f32 %v2240, %v2328
        %v2330 = vpop.f32.mrf.mxu0
        %v2331 = vadd.f32 %v2242, %v2330
        %2332 = vmatmul.bf16.gmra.mxu0 %v2046
        %v2333 = vpop.f32.mrf.mxu0
        %v2334 = vadd.f32 %v2245, %v2333
        %v2335 = vpop.f32.mrf.mxu0
        %v2336 = vadd.f32 %v2247, %v2335
        %2337 = vmatmul.bf16.gmra.mxu0 %v2048
        %v2338 = vpop.f32.mrf.mxu0
        %v2339 = vadd.f32 %v2250, %v2338
        %v2340 = vpop.f32.mrf.mxu0
        %v2341 = vadd.f32 %v2252, %v2340
        %2342 = vmatmul.bf16.gmra.mxu0 %v2050
        %v2343 = vpop.f32.mrf.mxu0
        %v2344 = vadd.f32 %v2255, %v2343
        %v2345 = vpop.f32.mrf.mxu0
        %v2346 = vadd.f32 %v2257, %v2345
        %2347 = vmatmul.bf16.gmra.mxu0 %v2052
        %v2348 = vpop.f32.mrf.mxu0
        %v2349 = vadd.f32 %v2260, %v2348
        %v2350 = vpop.f32.mrf.mxu0
        %v2351 = vadd.f32 %v2262, %v2350
        %2352 = vmatmul.bf16.gmra.mxu0 %v2054
        %v2353 = vpop.f32.mrf.mxu0
        %v2354 = vadd.f32 %v2265, %v2353
        %v2355 = vpop.f32.mrf.mxu0
        %v2356 = vadd.f32 %v2267, %v2355
        %2357 = vmatmul.bf16.gmra.mxu0 %v2056
        %v2358 = vpop.f32.mrf.mxu0
        %v2359 = vadd.f32 %v2270, %v2358
        %v2360 = vpop.f32.mrf.mxu0
        %v2361 = vadd.f32 %v2272, %v2360
        %2362 = vdwg.mxu0
        %v2365 = vunpack.c.l.b16 %v1830
        %v2366 = vunpack.c.h.b16 %v1830
        %v2367 = vunpack.c.l.b16 %v1831
        %v2368 = vunpack.c.h.b16 %v1831
        %v2369 = vpack.c.b16 %v2367, %v2365
        %v2370 = vpack.c.b16 %v2368, %v2366
        %v2405 = vunpack.c.l.b16 %v1862
        %v2406 = vunpack.c.l.b16 %v1863
        %v2407 = vunpack.c.l.b16 %v1864
        %v2408 = vunpack.c.l.b16 %v1865
        %v2409 = vunpack.c.l.b16 %v1866
        %v2410 = vunpack.c.l.b16 %v1867
        %v2411 = vunpack.c.l.b16 %v1868
        %v2412 = vunpack.c.l.b16 %v1869
        %v2413 = vunpack.c.l.b16 %v1870
        %v2414 = vunpack.c.l.b16 %v1871
        %v2415 = vunpack.c.l.b16 %v1872
        %v2416 = vunpack.c.l.b16 %v1873
        %v2417 = vunpack.c.l.b16 %v1874
        %v2418 = vunpack.c.l.b16 %v1875
        %v2419 = vunpack.c.l.b16 %v1876
        %v2420 = vunpack.c.l.b16 %v1877
        %v2421 = vunpack.c.l.b16 %v1878
        %v2422 = vunpack.c.l.b16 %v1879
        %v2423 = vunpack.c.l.b16 %v1880
        %v2424 = vunpack.c.l.b16 %v1881
        %v2425 = vunpack.c.l.b16 %v1882
        %v2426 = vunpack.c.l.b16 %v1883
        %v2427 = vunpack.c.l.b16 %v1884
        %v2428 = vunpack.c.l.b16 %v1885
        %v2429 = vunpack.c.l.b16 %v1886
        %v2430 = vunpack.c.l.b16 %v1887
        %v2431 = vunpack.c.l.b16 %v1888
        %v2432 = vunpack.c.l.b16 %v1889
        %v2433 = vunpack.c.l.b16 %v1890
        %v2434 = vunpack.c.l.b16 %v1891
        %v2435 = vunpack.c.l.b16 %v1892
        %v2436 = vunpack.c.l.b16 %v1893
        %v2437 = vpack.c.b16 %v2406, %v2405
        %v2438 = vpack.c.b16 %v2408, %v2407
        %v2439 = vpack.c.b16 %v2410, %v2409
        %v2440 = vpack.c.b16 %v2412, %v2411
        %v2441 = vpack.c.b16 %v2414, %v2413
        %v2442 = vpack.c.b16 %v2416, %v2415
        %v2443 = vpack.c.b16 %v2418, %v2417
        %v2444 = vpack.c.b16 %v2420, %v2419
        %v2445 = vpack.c.b16 %v2422, %v2421
        %v2446 = vpack.c.b16 %v2424, %v2423
        %v2447 = vpack.c.b16 %v2426, %v2425
        %v2448 = vpack.c.b16 %v2428, %v2427
        %v2449 = vpack.c.b16 %v2430, %v2429
        %v2450 = vpack.c.b16 %v2432, %v2431
        %v2451 = vpack.c.b16 %v2434, %v2433
        %v2452 = vpack.c.b16 %v2436, %v2435
        %2469 = vmatpush.bf16.msra.mxu0 %v2444
        %2470 = vmatpush.bf16.msra.mxu0 %v2443
        %2471 = vmatpush.bf16.msra.mxu0 %v2442
        %2472 = vmatpush.bf16.msra.mxu0 %v2441
        %2473 = vmatpush.bf16.msra.mxu0 %v2440
        %2474 = vmatpush.bf16.msra.mxu0 %v2439
        %2475 = vmatpush.bf16.msra.mxu0 %v2438
        %2476 = vmatpush.bf16.msra.mxu0 %v2437
        %2477 = vmatmul.bf16.gmra.mxu0 %v2369
        %v2478 = vpop.f32.mrf.mxu0
        %v2479 = vadd.f32 %v2284, %v2478
        %v2480 = vpop.f32.mrf.mxu0
        %v2481 = vadd.f32 %v2286, %v2480
        %2482 = vmatmul.bf16.gmra.mxu0 %v2025
        %v2483 = vpop.f32.mrf.mxu0
        %v2484 = vadd.f32 %v2289, %v2483
        %v2485 = vpop.f32.mrf.mxu0
        %v2486 = vadd.f32 %v2291, %v2485
        %2487 = vmatmul.bf16.gmra.mxu0 %v2027
        %v2488 = vpop.f32.mrf.mxu0
        %v2489 = vadd.f32 %v2294, %v2488
        %v2490 = vpop.f32.mrf.mxu0
        %v2491 = vadd.f32 %v2296, %v2490
        %2492 = vmatmul.bf16.gmra.mxu0 %v2029
        %v2493 = vpop.f32.mrf.mxu0
        %v2494 = vadd.f32 %v2299, %v2493
        %v2495 = vpop.f32.mrf.mxu0
        %v2496 = vadd.f32 %v2301, %v2495
        %2497 = vmatmul.bf16.gmra.mxu0 %v2031
        %v2498 = vpop.f32.mrf.mxu0
        %v2499 = vadd.f32 %v2304, %v2498
        %v2500 = vpop.f32.mrf.mxu0
        %v2501 = vadd.f32 %v2306, %v2500
        %2502 = vmatmul.bf16.gmra.mxu0 %v2033
        %v2503 = vpop.f32.mrf.mxu0
        %v2504 = vadd.f32 %v2309, %v2503
        %v2505 = vpop.f32.mrf.mxu0
        %v2506 = vadd.f32 %v2311, %v2505
        %2507 = vmatmul.bf16.gmra.mxu0 %v2035
        %v2508 = vpop.f32.mrf.mxu0
        %v2509 = vadd.f32 %v2314, %v2508
        %v2510 = vpop.f32.mrf.mxu0
        %v2511 = vadd.f32 %v2316, %v2510
        %2512 = vmatmul.bf16.gmra.mxu0 %v2037
        %v2513 = vpop.f32.mrf.mxu0
        %v2514 = vadd.f32 %v2319, %v2513
        %v2515 = vpop.f32.mrf.mxu0
        %v2516 = vadd.f32 %v2321, %v2515
        %2517 = vmatmul.bf16.gmra.mxu0 %v2039
        %v2518 = vpop.f32.mrf.mxu0
        %v2519 = vadd.f32 %v2324, %v2518
        %v2520 = vpop.f32.mrf.mxu0
        %v2521 = vadd.f32 %v2326, %v2520
        %2522 = vmatmul.bf16.gmra.mxu0 %v2041
        %v2523 = vpop.f32.mrf.mxu0
        %v2524 = vadd.f32 %v2329, %v2523
        %v2525 = vpop.f32.mrf.mxu0
        %v2526 = vadd.f32 %v2331, %v2525
        %2527 = vmatmul.bf16.gmra.mxu0 %v2043
        %v2528 = vpop.f32.mrf.mxu0
        %v2529 = vadd.f32 %v2334, %v2528
        %v2530 = vpop.f32.mrf.mxu0
        %v2531 = vadd.f32 %v2336, %v2530
        %2532 = vmatmul.bf16.gmra.mxu0 %v2045
        %v2533 = vpop.f32.mrf.mxu0
        %v2534 = vadd.f32 %v2339, %v2533
        %v2535 = vpop.f32.mrf.mxu0
        %v2536 = vadd.f32 %v2341, %v2535
        %2537 = vmatmul.bf16.gmra.mxu0 %v2047
        %v2538 = vpop.f32.mrf.mxu0
        %v2539 = vadd.f32 %v2344, %v2538
        %v2540 = vpop.f32.mrf.mxu0
        %v2541 = vadd.f32 %v2346, %v2540
        %2542 = vmatmul.bf16.gmra.mxu0 %v2049
        %v2543 = vpop.f32.mrf.mxu0
        %v2544 = vadd.f32 %v2349, %v2543
        %v2545 = vpop.f32.mrf.mxu0
        %v2546 = vadd.f32 %v2351, %v2545
        %2547 = vmatmul.bf16.gmra.mxu0 %v2051
        %v2548 = vpop.f32.mrf.mxu0
        %v2549 = vadd.f32 %v2354, %v2548
        %v2550 = vpop.f32.mrf.mxu0
        %v2551 = vadd.f32 %v2356, %v2550
        %2552 = vmatmul.bf16.gmra.mxu0 %v2053
        %v2553 = vpop.f32.mrf.mxu0
        %v2554 = vadd.f32 %v2359, %v2553
        %v2555 = vpop.f32.mrf.mxu0
        %v2556 = vadd.f32 %v2361, %v2555
        %2557 = vdwg.mxu0
        %2558 = vmatpush.bf16.msra.mxu0 %v2452
        %2559 = vmatpush.bf16.msra.mxu0 %v2451
        %2560 = vmatpush.bf16.msra.mxu0 %v2450
        %2561 = vmatpush.bf16.msra.mxu0 %v2449
        %2562 = vmatpush.bf16.msra.mxu0 %v2448
        %2563 = vmatpush.bf16.msra.mxu0 %v2447
        %2564 = vmatpush.bf16.msra.mxu0 %v2446
        %2565 = vmatpush.bf16.msra.mxu0 %v2445
        %2566 = vmatmul.bf16.gmra.mxu0 %v2370
        %v2567 = vpop.f32.mrf.mxu0
        %v2568 = vadd.f32 %v2479, %v2567
        %v2569 = vpop.f32.mrf.mxu0
        %v2570 = vadd.f32 %v2481, %v2569
        %2571 = vmatmul.bf16.gmra.mxu0 %v2026
        %v2572 = vpop.f32.mrf.mxu0
        %v2573 = vadd.f32 %v2484, %v2572
        %v2574 = vpop.f32.mrf.mxu0
        %v2575 = vadd.f32 %v2486, %v2574
        %2576 = vmatmul.bf16.gmra.mxu0 %v2028
        %v2577 = vpop.f32.mrf.mxu0
        %v2578 = vadd.f32 %v2489, %v2577
        %v2579 = vpop.f32.mrf.mxu0
        %v2580 = vadd.f32 %v2491, %v2579
        %2581 = vmatmul.bf16.gmra.mxu0 %v2030
        %v2582 = vpop.f32.mrf.mxu0
        %v2583 = vadd.f32 %v2494, %v2582
        %v2584 = vpop.f32.mrf.mxu0
        %v2585 = vadd.f32 %v2496, %v2584
        %2586 = vmatmul.bf16.gmra.mxu0 %v2032
        %v2587 = vpop.f32.mrf.mxu0
        %v2588 = vadd.f32 %v2499, %v2587
        %v2589 = vpop.f32.mrf.mxu0
        %v2590 = vadd.f32 %v2501, %v2589
        %2591 = vmatmul.bf16.gmra.mxu0 %v2034
        %v2592 = vpop.f32.mrf.mxu0
        %v2593 = vadd.f32 %v2504, %v2592
        %v2594 = vpop.f32.mrf.mxu0
        %v2595 = vadd.f32 %v2506, %v2594
        %2596 = vmatmul.bf16.gmra.mxu0 %v2036
        %v2597 = vpop.f32.mrf.mxu0
        %v2598 = vadd.f32 %v2509, %v2597
        %v2599 = vpop.f32.mrf.mxu0
        %v2600 = vadd.f32 %v2511, %v2599
        %2601 = vmatmul.bf16.gmra.mxu0 %v2038
        %v2602 = vpop.f32.mrf.mxu0
        %v2603 = vadd.f32 %v2514, %v2602
        %v2604 = vpop.f32.mrf.mxu0
        %v2605 = vadd.f32 %v2516, %v2604
        %2606 = vmatmul.bf16.gmra.mxu0 %v2040
        %v2607 = vpop.f32.mrf.mxu0
        %v2608 = vadd.f32 %v2519, %v2607
        %v2609 = vpop.f32.mrf.mxu0
        %v2610 = vadd.f32 %v2521, %v2609
        %2611 = vmatmul.bf16.gmra.mxu0 %v2042
        %v2612 = vpop.f32.mrf.mxu0
        %v2613 = vadd.f32 %v2524, %v2612
        %v2614 = vpop.f32.mrf.mxu0
        %v2615 = vadd.f32 %v2526, %v2614
        %2616 = vmatmul.bf16.gmra.mxu0 %v2044
        %v2617 = vpop.f32.mrf.mxu0
        %v2618 = vadd.f32 %v2529, %v2617
        %v2619 = vpop.f32.mrf.mxu0
        %v2620 = vadd.f32 %v2531, %v2619
        %2621 = vmatmul.bf16.gmra.mxu0 %v2046
        %v2622 = vpop.f32.mrf.mxu0
        %v2623 = vadd.f32 %v2534, %v2622
        %v2624 = vpop.f32.mrf.mxu0
        %v2625 = vadd.f32 %v2536, %v2624
        %2626 = vmatmul.bf16.gmra.mxu0 %v2048
        %v2627 = vpop.f32.mrf.mxu0
        %v2628 = vadd.f32 %v2539, %v2627
        %v2629 = vpop.f32.mrf.mxu0
        %v2630 = vadd.f32 %v2541, %v2629
        %2631 = vmatmul.bf16.gmra.mxu0 %v2050
        %v2632 = vpop.f32.mrf.mxu0
        %v2633 = vadd.f32 %v2544, %v2632
        %v2634 = vpop.f32.mrf.mxu0
        %v2635 = vadd.f32 %v2546, %v2634
        %2636 = vmatmul.bf16.gmra.mxu0 %v2052
        %v2637 = vpop.f32.mrf.mxu0
        %v2638 = vadd.f32 %v2549, %v2637
        %v2639 = vpop.f32.mrf.mxu0
        %v2640 = vadd.f32 %v2551, %v2639
        %2641 = vmatmul.bf16.gmra.mxu0 %v2054
        %v2642 = vpop.f32.mrf.mxu0
        %v2643 = vadd.f32 %v2554, %v2642
        %v2644 = vpop.f32.mrf.mxu0
        %v2645 = vadd.f32 %v2556, %v2644
        %2646 = vdwg.mxu0
        %v2647 = vld [vmem:[#allocation2 + $0x20] sm:$0xff]
        %v2648 = vld [vmem:[#allocation2 + $0x28] sm:$0xff]
        %v2649 = vld [vmem:[#allocation2 + $0x30] sm:$0xff]
        %v2650 = vld [vmem:[#allocation2 + $0x38] sm:$0xff]
        %v2651 = vld [vmem:[#allocation2 + $0x40] sm:$0xff]
        %v2652 = vld [vmem:[#allocation2 + $0x48] sm:$0xff]
        %v2653 = vld [vmem:[#allocation2 + $0x50] sm:$0xff]
        %v2654 = vld [vmem:[#allocation2 + $0x58] sm:$0xff]
        %v2655 = vld [vmem:[#allocation2 + $0x60] sm:$0xff]
        %v2656 = vld [vmem:[#allocation2 + $0x68] sm:$0xff]
        %v2657 = vld [vmem:[#allocation2 + $0x70] sm:$0xff]
        %v2658 = vld [vmem:[#allocation2 + $0x78] sm:$0xff]
        %v2659 = vld [vmem:[#allocation2 + $0x80] sm:$0xff]
        %v2660 = vld [vmem:[#allocation2 + $0x88] sm:$0xff]
        %v2661 = vld [vmem:[#allocation2 + $0x90] sm:$0xff]
        %v2662 = vld [vmem:[#allocation2 + $0x98] sm:$0xff]
        %v2663 = vld [vmem:[#allocation2 + $0xa0] sm:$0xff]
        %v2664 = vld [vmem:[#allocation2 + $0xa8] sm:$0xff]
        %v2665 = vld [vmem:[#allocation2 + $0xb0] sm:$0xff]
        %v2666 = vld [vmem:[#allocation2 + $0xb8] sm:$0xff]
        %v2667 = vld [vmem:[#allocation2 + $0xc0] sm:$0xff]
        %v2668 = vld [vmem:[#allocation2 + $0xc8] sm:$0xff]
        %v2669 = vld [vmem:[#allocation2 + $0xd0] sm:$0xff]
        %v2670 = vld [vmem:[#allocation2 + $0xd8] sm:$0xff]
        %v2671 = vld [vmem:[#allocation2 + $0xe0] sm:$0xff]
        %v2672 = vld [vmem:[#allocation2 + $0xe8] sm:$0xff]
        %v2673 = vld [vmem:[#allocation2 + $0xf0] sm:$0xff]
        %v2674 = vld [vmem:[#allocation2 + $0xf8] sm:$0xff]
        %v2675 = vld [vmem:[#allocation2 + $0x100] sm:$0xff]
        %v2676 = vld [vmem:[#allocation2 + $0x108] sm:$0xff]
        %v2677 = vld [vmem:[#allocation2 + $0x110] sm:$0xff]
        %v2678 = vld [vmem:[#allocation2 + $0x118] sm:$0xff]
        %s2679 = scalar_lea.vmem %s5, 256
        %v2680 = vld [vmem:[%s2679] sm:$0xf]
        %v2681 = vld [vmem:[%s2679 + $0x4] sm:$0xf]
        %v2682 = vld [vmem:[%s2679 + $0x8] sm:$0xf]
        %v2683 = vld [vmem:[%s2679 + $0xc] sm:$0xf]
        %v2684 = vld [vmem:[%s2679 + $0x10] sm:$0xf]
        %v2685 = vld [vmem:[%s2679 + $0x14] sm:$0xf]
        %v2686 = vld [vmem:[%s2679 + $0x18] sm:$0xf]
        %v2687 = vld [vmem:[%s2679 + $0x1c] sm:$0xf]
        %v2688 = vld [vmem:[%s2679 + $0x20] sm:$0xf]
        %v2689 = vld [vmem:[%s2679 + $0x24] sm:$0xf]
        %v2690 = vld [vmem:[%s2679 + $0x28] sm:$0xf]
        %v2691 = vld [vmem:[%s2679 + $0x2c] sm:$0xf]
        %v2692 = vld [vmem:[%s2679 + $0x30] sm:$0xf]
        %v2693 = vld [vmem:[%s2679 + $0x34] sm:$0xf]
        %v2694 = vld [vmem:[%s2679 + $0x38] sm:$0xf]
        %v2695 = vld [vmem:[%s2679 + $0x3c] sm:$0xf]
        %v2696 = vld [vmem:[%s2679 + $0x40] sm:$0xf]
        %v2697 = vld [vmem:[%s2679 + $0x44] sm:$0xf]
        %v2698 = vld [vmem:[%s2679 + $0x48] sm:$0xf]
        %v2699 = vld [vmem:[%s2679 + $0x4c] sm:$0xf]
        %v2700 = vld [vmem:[%s2679 + $0x50] sm:$0xf]
        %v2701 = vld [vmem:[%s2679 + $0x54] sm:$0xf]
        %v2702 = vld [vmem:[%s2679 + $0x58] sm:$0xf]
        %v2703 = vld [vmem:[%s2679 + $0x5c] sm:$0xf]
        %v2704 = vld [vmem:[%s2679 + $0x60] sm:$0xf]
        %v2705 = vld [vmem:[%s2679 + $0x64] sm:$0xf]
        %v2706 = vld [vmem:[%s2679 + $0x68] sm:$0xf]
        %v2707 = vld [vmem:[%s2679 + $0x6c] sm:$0xf]
        %v2708 = vld [vmem:[%s2679 + $0x70] sm:$0xf]
        %v2709 = vld [vmem:[%s2679 + $0x74] sm:$0xf]
        %v2710 = vld [vmem:[%s2679 + $0x78] sm:$0xf]
        %v2711 = vld [vmem:[%s2679 + $0x7c] sm:$0xf]
        %v2744 = vunpack.c.l.b16 %v2647
        %v2745 = vunpack.c.h.b16 %v2647
        %v2746 = vunpack.c.l.b16 %v2648
        %v2747 = vunpack.c.h.b16 %v2648
        %v2748 = vunpack.c.l.b16 %v2649
        %v2749 = vunpack.c.h.b16 %v2649
        %v2750 = vunpack.c.l.b16 %v2650
        %v2751 = vunpack.c.h.b16 %v2650
        %v2752 = vunpack.c.l.b16 %v2651
        %v2753 = vunpack.c.h.b16 %v2651
        %v2754 = vunpack.c.l.b16 %v2652
        %v2755 = vunpack.c.h.b16 %v2652
        %v2756 = vunpack.c.l.b16 %v2653
        %v2757 = vunpack.c.h.b16 %v2653
        %v2758 = vunpack.c.l.b16 %v2654
        %v2759 = vunpack.c.h.b16 %v2654
        %v2760 = vunpack.c.l.b16 %v2655
        %v2761 = vunpack.c.h.b16 %v2655
        %v2762 = vunpack.c.l.b16 %v2656
        %v2763 = vunpack.c.h.b16 %v2656
        %v2764 = vunpack.c.l.b16 %v2657
        %v2765 = vunpack.c.h.b16 %v2657
        %v2766 = vunpack.c.l.b16 %v2658
        %v2767 = vunpack.c.h.b16 %v2658
        %v2768 = vunpack.c.l.b16 %v2659
        %v2769 = vunpack.c.h.b16 %v2659
        %v2770 = vunpack.c.l.b16 %v2660
        %v2771 = vunpack.c.h.b16 %v2660
        %v2772 = vunpack.c.l.b16 %v2661
        %v2773 = vunpack.c.h.b16 %v2661
        %v2774 = vunpack.c.l.b16 %v2662
        %v2775 = vunpack.c.h.b16 %v2662
        %v2776 = vunpack.c.l.b16 %v2663
        %v2777 = vunpack.c.h.b16 %v2663
        %v2778 = vunpack.c.l.b16 %v2664
        %v2779 = vunpack.c.h.b16 %v2664
        %v2780 = vunpack.c.l.b16 %v2665
        %v2781 = vunpack.c.h.b16 %v2665
        %v2782 = vunpack.c.l.b16 %v2666
        %v2783 = vunpack.c.h.b16 %v2666
        %v2784 = vunpack.c.l.b16 %v2667
        %v2785 = vunpack.c.h.b16 %v2667
        %v2786 = vunpack.c.l.b16 %v2668
        %v2787 = vunpack.c.h.b16 %v2668
        %v2788 = vunpack.c.l.b16 %v2669
        %v2789 = vunpack.c.h.b16 %v2669
        %v2790 = vunpack.c.l.b16 %v2670
        %v2791 = vunpack.c.h.b16 %v2670
        %v2792 = vunpack.c.l.b16 %v2671
        %v2793 = vunpack.c.h.b16 %v2671
        %v2794 = vunpack.c.l.b16 %v2672
        %v2795 = vunpack.c.h.b16 %v2672
        %v2796 = vunpack.c.l.b16 %v2673
        %v2797 = vunpack.c.h.b16 %v2673
        %v2798 = vunpack.c.l.b16 %v2674
        %v2799 = vunpack.c.h.b16 %v2674
        %v2800 = vunpack.c.l.b16 %v2675
        %v2801 = vunpack.c.h.b16 %v2675
        %v2802 = vunpack.c.l.b16 %v2676
        %v2803 = vunpack.c.h.b16 %v2676
        %v2804 = vunpack.c.l.b16 %v2677
        %v2805 = vunpack.c.h.b16 %v2677
        %v2806 = vunpack.c.l.b16 %v2678
        %v2807 = vunpack.c.h.b16 %v2678
        %v2808 = vpack.c.b16 %v2746, %v2744
        %v2809 = vpack.c.b16 %v2747, %v2745
        %v2810 = vpack.c.b16 %v2750, %v2748
        %v2811 = vpack.c.b16 %v2751, %v2749
        %v2812 = vpack.c.b16 %v2754, %v2752
        %v2813 = vpack.c.b16 %v2755, %v2753
        %v2814 = vpack.c.b16 %v2758, %v2756
        %v2815 = vpack.c.b16 %v2759, %v2757
        %v2816 = vpack.c.b16 %v2762, %v2760
        %v2817 = vpack.c.b16 %v2763, %v2761
        %v2818 = vpack.c.b16 %v2766, %v2764
        %v2819 = vpack.c.b16 %v2767, %v2765
        %v2820 = vpack.c.b16 %v2770, %v2768
        %v2821 = vpack.c.b16 %v2771, %v2769
        %v2822 = vpack.c.b16 %v2774, %v2772
        %v2823 = vpack.c.b16 %v2775, %v2773
        %v2824 = vpack.c.b16 %v2778, %v2776
        %v2825 = vpack.c.b16 %v2779, %v2777
        %v2826 = vpack.c.b16 %v2782, %v2780
        %v2827 = vpack.c.b16 %v2783, %v2781
        %v2828 = vpack.c.b16 %v2786, %v2784
        %v2829 = vpack.c.b16 %v2787, %v2785
        %v2830 = vpack.c.b16 %v2790, %v2788
        %v2831 = vpack.c.b16 %v2791, %v2789
        %v2832 = vpack.c.b16 %v2794, %v2792
        %v2833 = vpack.c.b16 %v2795, %v2793
        %v2834 = vpack.c.b16 %v2798, %v2796
        %v2835 = vpack.c.b16 %v2799, %v2797
        %v2836 = vpack.c.b16 %v2802, %v2800
        %v2837 = vpack.c.b16 %v2803, %v2801
        %v2838 = vpack.c.b16 %v2806, %v2804
        %v2839 = vpack.c.b16 %v2807, %v2805
        %v2904 = vunpack.c.l.b16 %v2680
        %v2905 = vunpack.c.l.b16 %v2681
        %v2906 = vunpack.c.l.b16 %v2682
        %v2907 = vunpack.c.l.b16 %v2683
        %v2908 = vunpack.c.l.b16 %v2684
        %v2909 = vunpack.c.l.b16 %v2685
        %v2910 = vunpack.c.l.b16 %v2686
        %v2911 = vunpack.c.l.b16 %v2687
        %v2912 = vunpack.c.l.b16 %v2688
        %v2913 = vunpack.c.l.b16 %v2689
        %v2914 = vunpack.c.l.b16 %v2690
        %v2915 = vunpack.c.l.b16 %v2691
        %v2916 = vunpack.c.l.b16 %v2692
        %v2917 = vunpack.c.l.b16 %v2693
        %v2918 = vunpack.c.l.b16 %v2694
        %v2919 = vunpack.c.l.b16 %v2695
        %v2920 = vunpack.c.l.b16 %v2696
        %v2921 = vunpack.c.l.b16 %v2697
        %v2922 = vunpack.c.l.b16 %v2698
        %v2923 = vunpack.c.l.b16 %v2699
        %v2924 = vunpack.c.l.b16 %v2700
        %v2925 = vunpack.c.l.b16 %v2701
        %v2926 = vunpack.c.l.b16 %v2702
        %v2927 = vunpack.c.l.b16 %v2703
        %v2928 = vunpack.c.l.b16 %v2704
        %v2929 = vunpack.c.l.b16 %v2705
        %v2930 = vunpack.c.l.b16 %v2706
        %v2931 = vunpack.c.l.b16 %v2707
        %v2932 = vunpack.c.l.b16 %v2708
        %v2933 = vunpack.c.l.b16 %v2709
        %v2934 = vunpack.c.l.b16 %v2710
        %v2935 = vunpack.c.l.b16 %v2711
        %v2936 = vpack.c.b16 %v2905, %v2904
        %v2937 = vpack.c.b16 %v2907, %v2906
        %v2938 = vpack.c.b16 %v2909, %v2908
        %v2939 = vpack.c.b16 %v2911, %v2910
        %v2940 = vpack.c.b16 %v2913, %v2912
        %v2941 = vpack.c.b16 %v2915, %v2914
        %v2942 = vpack.c.b16 %v2917, %v2916
        %v2943 = vpack.c.b16 %v2919, %v2918
        %v2944 = vpack.c.b16 %v2921, %v2920
        %v2945 = vpack.c.b16 %v2923, %v2922
        %v2946 = vpack.c.b16 %v2925, %v2924
        %v2947 = vpack.c.b16 %v2927, %v2926
        %v2948 = vpack.c.b16 %v2929, %v2928
        %v2949 = vpack.c.b16 %v2931, %v2930
        %v2950 = vpack.c.b16 %v2933, %v2932
        %v2951 = vpack.c.b16 %v2935, %v2934
        %2968 = vmatpush.bf16.msra.mxu0 %v2943
        %2969 = vmatpush.bf16.msra.mxu0 %v2942
        %2970 = vmatpush.bf16.msra.mxu0 %v2941
        %2971 = vmatpush.bf16.msra.mxu0 %v2940
        %2972 = vmatpush.bf16.msra.mxu0 %v2939
        %2973 = vmatpush.bf16.msra.mxu0 %v2938
        %2974 = vmatpush.bf16.msra.mxu0 %v2937
        %2975 = vmatpush.bf16.msra.mxu0 %v2936
        %2976 = vmatmul.bf16.gmra.mxu0 %v2808
        %v2977 = vpop.f32.mrf.mxu0
        %v2978 = vadd.f32 0.0, %v2977
        %v2979 = vpop.f32.mrf.mxu0
        %v2980 = vadd.f32 0.0, %v2979
        %2981 = vmatmul.bf16.gmra.mxu0 %v2810
        %v2982 = vpop.f32.mrf.mxu0
        %v2983 = vadd.f32 0.0, %v2982
        %v2984 = vpop.f32.mrf.mxu0
        %v2985 = vadd.f32 0.0, %v2984
        %2986 = vmatmul.bf16.gmra.mxu0 %v2812
        %v2987 = vpop.f32.mrf.mxu0
        %v2988 = vadd.f32 0.0, %v2987
        %v2989 = vpop.f32.mrf.mxu0
        %v2990 = vadd.f32 0.0, %v2989
        %2991 = vmatmul.bf16.gmra.mxu0 %v2814
        %v2992 = vpop.f32.mrf.mxu0
        %v2993 = vadd.f32 0.0, %v2992
        %v2994 = vpop.f32.mrf.mxu0
        %v2995 = vadd.f32 0.0, %v2994
        %2996 = vmatmul.bf16.gmra.mxu0 %v2816
        %v2997 = vpop.f32.mrf.mxu0
        %v2998 = vadd.f32 0.0, %v2997
        %v2999 = vpop.f32.mrf.mxu0
        %v3000 = vadd.f32 0.0, %v2999
        %3001 = vmatmul.bf16.gmra.mxu0 %v2818
        %v3002 = vpop.f32.mrf.mxu0
        %v3003 = vadd.f32 0.0, %v3002
        %v3004 = vpop.f32.mrf.mxu0
        %v3005 = vadd.f32 0.0, %v3004
        %3006 = vmatmul.bf16.gmra.mxu0 %v2820
        %v3007 = vpop.f32.mrf.mxu0
        %v3008 = vadd.f32 0.0, %v3007
        %v3009 = vpop.f32.mrf.mxu0
        %v3010 = vadd.f32 0.0, %v3009
        %3011 = vmatmul.bf16.gmra.mxu0 %v2822
        %v3012 = vpop.f32.mrf.mxu0
        %v3013 = vadd.f32 0.0, %v3012
        %v3014 = vpop.f32.mrf.mxu0
        %v3015 = vadd.f32 0.0, %v3014
        %3016 = vmatmul.bf16.gmra.mxu0 %v2824
        %v3017 = vpop.f32.mrf.mxu0
        %v3018 = vadd.f32 0.0, %v3017
        %v3019 = vpop.f32.mrf.mxu0
        %v3020 = vadd.f32 0.0, %v3019
        %3021 = vmatmul.bf16.gmra.mxu0 %v2826
        %v3022 = vpop.f32.mrf.mxu0
        %v3023 = vadd.f32 0.0, %v3022
        %v3024 = vpop.f32.mrf.mxu0
        %v3025 = vadd.f32 0.0, %v3024
        %3026 = vmatmul.bf16.gmra.mxu0 %v2828
        %v3027 = vpop.f32.mrf.mxu0
        %v3028 = vadd.f32 0.0, %v3027
        %v3029 = vpop.f32.mrf.mxu0
        %v3030 = vadd.f32 0.0, %v3029
        %3031 = vmatmul.bf16.gmra.mxu0 %v2830
        %v3032 = vpop.f32.mrf.mxu0
        %v3033 = vadd.f32 0.0, %v3032
        %v3034 = vpop.f32.mrf.mxu0
        %v3035 = vadd.f32 0.0, %v3034
        %3036 = vmatmul.bf16.gmra.mxu0 %v2832
        %v3037 = vpop.f32.mrf.mxu0
        %v3038 = vadd.f32 0.0, %v3037
        %v3039 = vpop.f32.mrf.mxu0
        %v3040 = vadd.f32 0.0, %v3039
        %3041 = vmatmul.bf16.gmra.mxu0 %v2834
        %v3042 = vpop.f32.mrf.mxu0
        %v3043 = vadd.f32 0.0, %v3042
        %v3044 = vpop.f32.mrf.mxu0
        %v3045 = vadd.f32 0.0, %v3044
        %3046 = vmatmul.bf16.gmra.mxu0 %v2836
        %v3047 = vpop.f32.mrf.mxu0
        %v3048 = vadd.f32 0.0, %v3047
        %v3049 = vpop.f32.mrf.mxu0
        %v3050 = vadd.f32 0.0, %v3049
        %3051 = vmatmul.bf16.gmra.mxu0 %v2838
        %v3052 = vpop.f32.mrf.mxu0
        %v3053 = vadd.f32 0.0, %v3052
        %v3054 = vpop.f32.mrf.mxu0
        %v3055 = vadd.f32 0.0, %v3054
        %3056 = vdwg.mxu0
        %3057 = vmatpush.bf16.msra.mxu0 %v2951
        %3058 = vmatpush.bf16.msra.mxu0 %v2950
        %3059 = vmatpush.bf16.msra.mxu0 %v2949
        %3060 = vmatpush.bf16.msra.mxu0 %v2948
        %3061 = vmatpush.bf16.msra.mxu0 %v2947
        %3062 = vmatpush.bf16.msra.mxu0 %v2946
        %3063 = vmatpush.bf16.msra.mxu0 %v2945
        %3064 = vmatpush.bf16.msra.mxu0 %v2944
        %3065 = vmatmul.bf16.gmra.mxu0 %v2809
        %v3066 = vpop.f32.mrf.mxu0
        %v3067 = vadd.f32 %v2978, %v3066
        %v3068 = vpop.f32.mrf.mxu0
        %v3069 = vadd.f32 %v2980, %v3068
        %3070 = vmatmul.bf16.gmra.mxu0 %v2811
        %v3071 = vpop.f32.mrf.mxu0
        %v3072 = vadd.f32 %v2983, %v3071
        %v3073 = vpop.f32.mrf.mxu0
        %v3074 = vadd.f32 %v2985, %v3073
        %3075 = vmatmul.bf16.gmra.mxu0 %v2813
        %v3076 = vpop.f32.mrf.mxu0
        %v3077 = vadd.f32 %v2988, %v3076
        %v3078 = vpop.f32.mrf.mxu0
        %v3079 = vadd.f32 %v2990, %v3078
        %3080 = vmatmul.bf16.gmra.mxu0 %v2815
        %v3081 = vpop.f32.mrf.mxu0
        %v3082 = vadd.f32 %v2993, %v3081
        %v3083 = vpop.f32.mrf.mxu0
        %v3084 = vadd.f32 %v2995, %v3083
        %3085 = vmatmul.bf16.gmra.mxu0 %v2817
        %v3086 = vpop.f32.mrf.mxu0
        %v3087 = vadd.f32 %v2998, %v3086
        %v3088 = vpop.f32.mrf.mxu0
        %v3089 = vadd.f32 %v3000, %v3088
        %3090 = vmatmul.bf16.gmra.mxu0 %v2819
        %v3091 = vpop.f32.mrf.mxu0
        %v3092 = vadd.f32 %v3003, %v3091
        %v3093 = vpop.f32.mrf.mxu0
        %v3094 = vadd.f32 %v3005, %v3093
        %3095 = vmatmul.bf16.gmra.mxu0 %v2821
        %v3096 = vpop.f32.mrf.mxu0
        %v3097 = vadd.f32 %v3008, %v3096
        %v3098 = vpop.f32.mrf.mxu0
        %v3099 = vadd.f32 %v3010, %v3098
        %3100 = vmatmul.bf16.gmra.mxu0 %v2823
        %v3101 = vpop.f32.mrf.mxu0
        %v3102 = vadd.f32 %v3013, %v3101
        %v3103 = vpop.f32.mrf.mxu0
        %v3104 = vadd.f32 %v3015, %v3103
        %3105 = vmatmul.bf16.gmra.mxu0 %v2825
        %v3106 = vpop.f32.mrf.mxu0
        %v3107 = vadd.f32 %v3018, %v3106
        %v3108 = vpop.f32.mrf.mxu0
        %v3109 = vadd.f32 %v3020, %v3108
        %3110 = vmatmul.bf16.gmra.mxu0 %v2827
        %v3111 = vpop.f32.mrf.mxu0
        %v3112 = vadd.f32 %v3023, %v3111
        %v3113 = vpop.f32.mrf.mxu0
        %v3114 = vadd.f32 %v3025, %v3113
        %3115 = vmatmul.bf16.gmra.mxu0 %v2829
        %v3116 = vpop.f32.mrf.mxu0
        %v3117 = vadd.f32 %v3028, %v3116
        %v3118 = vpop.f32.mrf.mxu0
        %v3119 = vadd.f32 %v3030, %v3118
        %3120 = vmatmul.bf16.gmra.mxu0 %v2831
        %v3121 = vpop.f32.mrf.mxu0
        %v3122 = vadd.f32 %v3033, %v3121
        %v3123 = vpop.f32.mrf.mxu0
        %v3124 = vadd.f32 %v3035, %v3123
        %3125 = vmatmul.bf16.gmra.mxu0 %v2833
        %v3126 = vpop.f32.mrf.mxu0
        %v3127 = vadd.f32 %v3038, %v3126
        %v3128 = vpop.f32.mrf.mxu0
        %v3129 = vadd.f32 %v3040, %v3128
        %3130 = vmatmul.bf16.gmra.mxu0 %v2835
        %v3131 = vpop.f32.mrf.mxu0
        %v3132 = vadd.f32 %v3043, %v3131
        %v3133 = vpop.f32.mrf.mxu0
        %v3134 = vadd.f32 %v3045, %v3133
        %3135 = vmatmul.bf16.gmra.mxu0 %v2837
        %v3136 = vpop.f32.mrf.mxu0
        %v3137 = vadd.f32 %v3048, %v3136
        %v3138 = vpop.f32.mrf.mxu0
        %v3139 = vadd.f32 %v3050, %v3138
        %3140 = vmatmul.bf16.gmra.mxu0 %v2839
        %v3141 = vpop.f32.mrf.mxu0
        %v3142 = vadd.f32 %v3053, %v3141
        %v3143 = vpop.f32.mrf.mxu0
        %v3144 = vadd.f32 %v3055, %v3143
        %3145 = vdwg.mxu0
        %v3146 = vadd.f32 %v2568, %v3067
        %v3147 = vadd.f32 %v2570, %v3069
        %v3148 = vadd.f32 %v2573, %v3072
        %v3149 = vadd.f32 %v2575, %v3074
        %v3150 = vadd.f32 %v2578, %v3077
        %v3151 = vadd.f32 %v2580, %v3079
        %v3152 = vadd.f32 %v2583, %v3082
        %v3153 = vadd.f32 %v2585, %v3084
        %v3154 = vadd.f32 %v2588, %v3087
        %v3155 = vadd.f32 %v2590, %v3089
        %v3156 = vadd.f32 %v2593, %v3092
        %v3157 = vadd.f32 %v2595, %v3094
        %v3158 = vadd.f32 %v2598, %v3097
        %v3159 = vadd.f32 %v2600, %v3099
        %v3160 = vadd.f32 %v2603, %v3102
        %v3161 = vadd.f32 %v2605, %v3104
        %v3162 = vadd.f32 %v2608, %v3107
        %v3163 = vadd.f32 %v2610, %v3109
        %v3164 = vadd.f32 %v2613, %v3112
        %v3165 = vadd.f32 %v2615, %v3114
        %v3166 = vadd.f32 %v2618, %v3117
        %v3167 = vadd.f32 %v2620, %v3119
        %v3168 = vadd.f32 %v2623, %v3122
        %v3169 = vadd.f32 %v2625, %v3124
        %v3170 = vadd.f32 %v2628, %v3127
        %v3171 = vadd.f32 %v2630, %v3129
        %v3172 = vadd.f32 %v2633, %v3132
        %v3173 = vadd.f32 %v2635, %v3134
        %v3174 = vadd.f32 %v2638, %v3137
        %v3175 = vadd.f32 %v2640, %v3139
        %v3176 = vadd.f32 %v2643, %v3142
        %v3177 = vadd.f32 %v2645, %v3144
        %v3178 = vld [vmem:[%s6] sm:$0x1]
        %v3180 = vperm.slane %v3178, 0
        %v3182 = vadd.f32 %v3146, %v3180
        %v3183 = vadd.f32 %v3147, %v3180
        %v3184 = vadd.f32 %v3148, %v3180
        %v3185 = vadd.f32 %v3149, %v3180
        %v3186 = vadd.f32 %v3150, %v3180
        %v3187 = vadd.f32 %v3151, %v3180
        %v3188 = vadd.f32 %v3152, %v3180
        %v3189 = vadd.f32 %v3153, %v3180
        %v3190 = vadd.f32 %v3154, %v3180
        %v3191 = vadd.f32 %v3155, %v3180
        %v3192 = vadd.f32 %v3156, %v3180
        %v3193 = vadd.f32 %v3157, %v3180
        %v3194 = vadd.f32 %v3158, %v3180
        %v3195 = vadd.f32 %v3159, %v3180
        %v3196 = vadd.f32 %v3160, %v3180
        %v3197 = vadd.f32 %v3161, %v3180
        %v3198 = vadd.f32 %v3162, %v3180
        %v3199 = vadd.f32 %v3163, %v3180
        %v3200 = vadd.f32 %v3164, %v3180
        %v3201 = vadd.f32 %v3165, %v3180
        %v3202 = vadd.f32 %v3166, %v3180
        %v3203 = vadd.f32 %v3167, %v3180
        %v3204 = vadd.f32 %v3168, %v3180
        %v3205 = vadd.f32 %v3169, %v3180
        %v3206 = vadd.f32 %v3170, %v3180
        %v3207 = vadd.f32 %v3171, %v3180
        %v3208 = vadd.f32 %v3172, %v3180
        %v3209 = vadd.f32 %v3173, %v3180
        %v3210 = vadd.f32 %v3174, %v3180
        %v3211 = vadd.f32 %v3175, %v3180
        %v3212 = vadd.f32 %v3176, %v3180
        %v3213 = vadd.f32 %v3177, %v3180
        %v3214 = vmax.f32 %v3182, 0.0
        %v3215 = vmax.f32 %v3183, 0.0
        %v3216 = vmax.f32 %v3184, 0.0
        %v3217 = vmax.f32 %v3185, 0.0
        %v3218 = vmax.f32 %v3186, 0.0
        %v3219 = vmax.f32 %v3187, 0.0
        %v3220 = vmax.f32 %v3188, 0.0
        %v3221 = vmax.f32 %v3189, 0.0
        %v3222 = vmax.f32 %v3190, 0.0
        %v3223 = vmax.f32 %v3191, 0.0
        %v3224 = vmax.f32 %v3192, 0.0
        %v3225 = vmax.f32 %v3193, 0.0
        %v3226 = vmax.f32 %v3194, 0.0
        %v3227 = vmax.f32 %v3195, 0.0
        %v3228 = vmax.f32 %v3196, 0.0
        %v3229 = vmax.f32 %v3197, 0.0
        %v3230 = vmax.f32 %v3198, 0.0
        %v3231 = vmax.f32 %v3199, 0.0
        %v3232 = vmax.f32 %v3200, 0.0
        %v3233 = vmax.f32 %v3201, 0.0
        %v3234 = vmax.f32 %v3202, 0.0
        %v3235 = vmax.f32 %v3203, 0.0
        %v3236 = vmax.f32 %v3204, 0.0
        %v3237 = vmax.f32 %v3205, 0.0
        %v3238 = vmax.f32 %v3206, 0.0
        %v3239 = vmax.f32 %v3207, 0.0
        %v3240 = vmax.f32 %v3208, 0.0
        %v3241 = vmax.f32 %v3209, 0.0
        %v3242 = vmax.f32 %v3210, 0.0
        %v3243 = vmax.f32 %v3211, 0.0
        %v3244 = vmax.f32 %v3212, 0.0
        %v3245 = vmax.f32 %v3213, 0.0
        %v3246 = vpack.c.bf16 %v3214, %v3214
        %v3247 = vpack.c.bf16 %v3215, %v3215
        %v3248 = vpack.c.bf16 %v3216, %v3216
        %v3249 = vpack.c.bf16 %v3217, %v3217
        %v3250 = vpack.c.bf16 %v3218, %v3218
        %v3251 = vpack.c.bf16 %v3219, %v3219
        %v3252 = vpack.c.bf16 %v3220, %v3220
        %v3253 = vpack.c.bf16 %v3221, %v3221
        %v3254 = vpack.c.bf16 %v3222, %v3222
        %v3255 = vpack.c.bf16 %v3223, %v3223
        %v3256 = vpack.c.bf16 %v3224, %v3224
        %v3257 = vpack.c.bf16 %v3225, %v3225
        %v3258 = vpack.c.bf16 %v3226, %v3226
        %v3259 = vpack.c.bf16 %v3227, %v3227
        %v3260 = vpack.c.bf16 %v3228, %v3228
        %v3261 = vpack.c.bf16 %v3229, %v3229
        %v3262 = vpack.c.bf16 %v3230, %v3230
        %v3263 = vpack.c.bf16 %v3231, %v3231
        %v3264 = vpack.c.bf16 %v3232, %v3232
        %v3265 = vpack.c.bf16 %v3233, %v3233
        %v3266 = vpack.c.bf16 %v3234, %v3234
        %v3267 = vpack.c.bf16 %v3235, %v3235
        %v3268 = vpack.c.bf16 %v3236, %v3236
        %v3269 = vpack.c.bf16 %v3237, %v3237
        %v3270 = vpack.c.bf16 %v3238, %v3238
        %v3271 = vpack.c.bf16 %v3239, %v3239
        %v3272 = vpack.c.bf16 %v3240, %v3240
        %v3273 = vpack.c.bf16 %v3241, %v3241
        %v3274 = vpack.c.bf16 %v3242, %v3242
        %v3275 = vpack.c.bf16 %v3243, %v3243
        %v3276 = vpack.c.bf16 %v3244, %v3244
        %v3277 = vpack.c.bf16 %v3245, %v3245
        %v3278 = vld [vmem:[%s7] sm:$0xff]
        %v3279 = vld [vmem:[%s7 + $0x8] sm:$0xff]
        %v3280 = vld [vmem:[%s7 + $0x10] sm:$0xff]
        %v3281 = vld [vmem:[%s7 + $0x18] sm:$0xff]
        %v3282 = vld [vmem:[%s7 + $0x20] sm:$0xff]
        %v3283 = vld [vmem:[%s7 + $0x28] sm:$0xff]
        %v3284 = vld [vmem:[%s7 + $0x30] sm:$0xff]
        %v3285 = vld [vmem:[%s7 + $0x38] sm:$0xff]
        %v3286 = vld [vmem:[%s8] sm:$0x3]
        %v3288 = vperm.slane %v3286, 0
        %v3289 = vperm.slane %v3286, 1
        %v3300 = vunpack.c.l.b16 %v3246
        %v3301 = vunpack.c.l.b16 %v3247
        %v3302 = vunpack.c.l.b16 %v3248
        %v3303 = vunpack.c.l.b16 %v3249
        %v3304 = vunpack.c.l.b16 %v3250
        %v3305 = vunpack.c.l.b16 %v3251
        %v3306 = vunpack.c.l.b16 %v3252
        %v3307 = vunpack.c.l.b16 %v3253
        %v3308 = vpack.c.b16 %v3301, %v3300
        %v3309 = vpack.c.b16 %v3303, %v3302
        %v3310 = vpack.c.b16 %v3305, %v3304
        %v3311 = vpack.c.b16 %v3307, %v3306
        %v3320 = vunpack.c.l.b16 %v3278
        %v3321 = vunpack.c.h.b16 %v3278
        %v3322 = vunpack.c.l.b16 %v3279
        %v3323 = vunpack.c.h.b16 %v3279
        %v3324 = vunpack.c.l.b16 %v3280
        %v3325 = vunpack.c.h.b16 %v3280
        %v3326 = vunpack.c.l.b16 %v3281
        %v3327 = vunpack.c.h.b16 %v3281
        %v3328 = vunpack.c.l.b16 %v3282
        %v3329 = vunpack.c.h.b16 %v3282
        %v3330 = vunpack.c.l.b16 %v3283
        %v3331 = vunpack.c.h.b16 %v3283
        %v3332 = vunpack.c.l.b16 %v3284
        %v3333 = vunpack.c.h.b16 %v3284
        %v3334 = vunpack.c.l.b16 %v3285
        %v3335 = vunpack.c.h.b16 %v3285
        %v3336 = vpack.c.b16 %v3322, %v3320
        %v3337 = vpack.c.b16 %v3323, %v3321
        %v3338 = vpack.c.b16 %v3326, %v3324
        %v3339 = vpack.c.b16 %v3327, %v3325
        %v3340 = vpack.c.b16 %v3330, %v3328
        %v3341 = vpack.c.b16 %v3331, %v3329
        %v3342 = vpack.c.b16 %v3334, %v3332
        %v3343 = vpack.c.b16 %v3335, %v3333
        %v3353 = vsel %vm1522, %v3308, 0
        %v3356 = vsel %vm1522, %v3309, 0
        %v3359 = vsel %vm1522, %v3310, 0
        %v3362 = vsel %vm1522, %v3311, 0
        %3364 = vmatpush.bf16.msra.mxu0 0
        %3365 = vmatpush.bf16.msra.mxu0 0
        %3366 = vmatpush.bf16.msra.mxu0 0
        %3367 = vmatpush.bf16.msra.mxu0 0
        %3368 = vmatpush.bf16.msra.mxu0 %v3342
        %3369 = vmatpush.bf16.msra.mxu0 %v3340
        %3370 = vmatpush.bf16.msra.mxu0 %v3338
        %3371 = vmatpush.bf16.msra.mxu0 %v3336
        %3372 = vmatmul.bf16.gmra.mxu0 %v3353
        %v3373 = vpop.f32.mrf.mxu0
        %v3374 = vadd.f32 %v3288, %v3373
        %v3375 = vpop.f32.mrf.mxu0
        %v3376 = vadd.f32 %v3288, %v3375
        %3377 = vmatmul.bf16.gmra.mxu0 %v3356
        %v3378 = vpop.f32.mrf.mxu0
        %v3379 = vadd.f32 %v3288, %v3378
        %v3380 = vpop.f32.mrf.mxu0
        %v3381 = vadd.f32 %v3288, %v3380
        %3382 = vmatmul.bf16.gmra.mxu0 %v3359
        %v3383 = vpop.f32.mrf.mxu0
        %v3384 = vadd.f32 %v3288, %v3383
        %v3385 = vpop.f32.mrf.mxu0
        %v3386 = vadd.f32 %v3288, %v3385
        %3387 = vmatmul.bf16.gmra.mxu0 %v3362
        %v3388 = vpop.f32.mrf.mxu0
        %v3389 = vadd.f32 %v3288, %v3388
        %v3390 = vpop.f32.mrf.mxu0
        %v3391 = vadd.f32 %v3288, %v3390
        %3392 = vdwg.mxu0
        %3393 = vmatpush.bf16.msra.mxu0 0
        %3394 = vmatpush.bf16.msra.mxu0 0
        %3395 = vmatpush.bf16.msra.mxu0 0
        %3396 = vmatpush.bf16.msra.mxu0 0
        %3397 = vmatpush.bf16.msra.mxu0 %v3343
        %3398 = vmatpush.bf16.msra.mxu0 %v3341
        %3399 = vmatpush.bf16.msra.mxu0 %v3339
        %3400 = vmatpush.bf16.msra.mxu0 %v3337
        %3401 = vmatmul.bf16.gmra.mxu0 %v3353
        %v3402 = vpop.f32.mrf.mxu0
        %v3403 = vadd.f32 %v3289, %v3402
        %v3404 = vpop.f32.mrf.mxu0
        %v3405 = vadd.f32 %v3289, %v3404
        %3406 = vmatmul.bf16.gmra.mxu0 %v3356
        %v3407 = vpop.f32.mrf.mxu0
        %v3408 = vadd.f32 %v3289, %v3407
        %v3409 = vpop.f32.mrf.mxu0
        %v3410 = vadd.f32 %v3289, %v3409
        %3411 = vmatmul.bf16.gmra.mxu0 %v3359
        %v3412 = vpop.f32.mrf.mxu0
        %v3413 = vadd.f32 %v3289, %v3412
        %v3414 = vpop.f32.mrf.mxu0
        %v3415 = vadd.f32 %v3289, %v3414
        %3416 = vmatmul.bf16.gmra.mxu0 %v3362
        %v3417 = vpop.f32.mrf.mxu0
        %v3418 = vadd.f32 %v3289, %v3417
        %v3419 = vpop.f32.mrf.mxu0
        %v3420 = vadd.f32 %v3289, %v3419
        %3421 = vdwg.mxu0
        %v3422 = vld [vmem:[%s452] sm:$0xff]
        %v3423 = vld [vmem:[%s452 + $0x8] sm:$0xff]
        %v3424 = vld [vmem:[%s452 + $0x10] sm:$0xff]
        %v3425 = vld [vmem:[%s452 + $0x18] sm:$0xff]
        %v3426 = vld [vmem:[%s452 + $0x20] sm:$0xff]
        %v3427 = vld [vmem:[%s452 + $0x28] sm:$0xff]
        %v3428 = vld [vmem:[%s452 + $0x30] sm:$0xff]
        %v3429 = vld [vmem:[%s452 + $0x38] sm:$0xff]
        %v3430 = vunpack.c.l.bf16 %v3422
        %v3431 = vunpack.c.h.bf16 %v3422
        %v3432 = vunpack.c.l.bf16 %v3423
        %v3433 = vunpack.c.h.bf16 %v3423
        %v3434 = vunpack.c.l.bf16 %v3424
        %v3435 = vunpack.c.h.bf16 %v3424
        %v3436 = vunpack.c.l.bf16 %v3425
        %v3437 = vunpack.c.h.bf16 %v3425
        %v3438 = vunpack.c.l.bf16 %v3426
        %v3439 = vunpack.c.h.bf16 %v3426
        %v3440 = vunpack.c.l.bf16 %v3427
        %v3441 = vunpack.c.h.bf16 %v3427
        %v3442 = vunpack.c.l.bf16 %v3428
        %v3443 = vunpack.c.h.bf16 %v3428
        %v3444 = vunpack.c.l.bf16 %v3429
        %v3445 = vunpack.c.h.bf16 %v3429
        %v3446 = vadd.f32 %v3374, %v3430
        %v3447 = vadd.f32 %v3403, %v3431
        %v3448 = vadd.f32 %v3376, %v3432
        %v3449 = vadd.f32 %v3405, %v3433
        %v3450 = vadd.f32 %v3379, %v3434
        %v3451 = vadd.f32 %v3408, %v3435
        %v3452 = vadd.f32 %v3381, %v3436
        %v3453 = vadd.f32 %v3410, %v3437
        %v3454 = vadd.f32 %v3384, %v3438
        %v3455 = vadd.f32 %v3413, %v3439
        %v3456 = vadd.f32 %v3386, %v3440
        %v3457 = vadd.f32 %v3415, %v3441
        %v3458 = vadd.f32 %v3389, %v3442
        %v3459 = vadd.f32 %v3418, %v3443
        %v3460 = vadd.f32 %v3391, %v3444
        %v3461 = vadd.f32 %v3420, %v3445
        %v3462 = vmax.f32 %v3446, 0.0
        %v3463 = vmax.f32 %v3447, 0.0
        %v3464 = vmax.f32 %v3448, 0.0
        %v3465 = vmax.f32 %v3449, 0.0
        %v3466 = vmax.f32 %v3450, 0.0
        %v3467 = vmax.f32 %v3451, 0.0
        %v3468 = vmax.f32 %v3452, 0.0
        %v3469 = vmax.f32 %v3453, 0.0
        %v3470 = vmax.f32 %v3454, 0.0
        %v3471 = vmax.f32 %v3455, 0.0
        %v3472 = vmax.f32 %v3456, 0.0
        %v3473 = vmax.f32 %v3457, 0.0
        %v3474 = vmax.f32 %v3458, 0.0
        %v3475 = vmax.f32 %v3459, 0.0
        %v3476 = vmax.f32 %v3460, 0.0
        %v3477 = vmax.f32 %v3461, 0.0
        %v3478 = vpack.c.bf16 %v3463, %v3462
        %v3479 = vpack.c.bf16 %v3465, %v3464
        %v3480 = vpack.c.bf16 %v3467, %v3466
        %v3481 = vpack.c.bf16 %v3469, %v3468
        %v3482 = vpack.c.bf16 %v3471, %v3470
        %v3483 = vpack.c.bf16 %v3473, %v3472
        %v3484 = vpack.c.bf16 %v3475, %v3474
        %v3485 = vpack.c.bf16 %v3477, %v3476
        %3486 = vst [vmem:[%s442] sm:$0xff] %v3478
        %3487 = vst [vmem:[%s442 + $0x8] sm:$0xff] %v3479
        %3488 = vst [vmem:[%s442 + $0x10] sm:$0xff] %v3480
        %3489 = vst [vmem:[%s442 + $0x18] sm:$0xff] %v3481
        %3490 = vst [vmem:[%s442 + $0x20] sm:$0xff] %v3482
        %3491 = vst [vmem:[%s442 + $0x28] sm:$0xff] %v3483
        %3492 = vst [vmem:[%s442 + $0x30] sm:$0xff] %v3484
        %3493 = vst [vmem:[%s442 + $0x38] sm:$0xff] %v3485
        %v3502 = vunpack.c.l.b16 %v3254
        %v3503 = vunpack.c.l.b16 %v3255
        %v3504 = vunpack.c.l.b16 %v3256
        %v3505 = vunpack.c.l.b16 %v3257
        %v3506 = vunpack.c.l.b16 %v3258
        %v3507 = vunpack.c.l.b16 %v3259
        %v3508 = vunpack.c.l.b16 %v3260
        %v3509 = vunpack.c.l.b16 %v3261
        %v3510 = vpack.c.b16 %v3503, %v3502
        %v3511 = vpack.c.b16 %v3505, %v3504
        %v3512 = vpack.c.b16 %v3507, %v3506
        %v3513 = vpack.c.b16 %v3509, %v3508
        %v3515 = vsel %vm1522, %v3510, 0
        %v3518 = vsel %vm1522, %v3511, 0
        %v3521 = vsel %vm1522, %v3512, 0
        %v3524 = vsel %vm1522, %v3513, 0
        %3526 = vmatpush.bf16.msra.mxu0 0
        %3527 = vmatpush.bf16.msra.mxu0 0
        %3528 = vmatpush.bf16.msra.mxu0 0
        %3529 = vmatpush.bf16.msra.mxu0 0
        %3530 = vmatpush.bf16.msra.mxu0 %v3342
        %3531 = vmatpush.bf16.msra.mxu0 %v3340
        %3532 = vmatpush.bf16.msra.mxu0 %v3338
        %3533 = vmatpush.bf16.msra.mxu0 %v3336
        %3534 = vmatmul.bf16.gmra.mxu0 %v3515
        %v3535 = vpop.f32.mrf.mxu0
        %v3536 = vadd.f32 %v3288, %v3535
        %v3537 = vpop.f32.mrf.mxu0
        %v3538 = vadd.f32 %v3288, %v3537
        %3539 = vmatmul.bf16.gmra.mxu0 %v3518
        %v3540 = vpop.f32.mrf.mxu0
        %v3541 = vadd.f32 %v3288, %v3540
        %v3542 = vpop.f32.mrf.mxu0
        %v3543 = vadd.f32 %v3288, %v3542
        %3544 = vmatmul.bf16.gmra.mxu0 %v3521
        %v3545 = vpop.f32.mrf.mxu0
        %v3546 = vadd.f32 %v3288, %v3545
        %v3547 = vpop.f32.mrf.mxu0
        %v3548 = vadd.f32 %v3288, %v3547
        %3549 = vmatmul.bf16.gmra.mxu0 %v3524
        %v3550 = vpop.f32.mrf.mxu0
        %v3551 = vadd.f32 %v3288, %v3550
        %v3552 = vpop.f32.mrf.mxu0
        %v3553 = vadd.f32 %v3288, %v3552
        %3554 = vdwg.mxu0
        %3555 = vmatpush.bf16.msra.mxu0 0
        %3556 = vmatpush.bf16.msra.mxu0 0
        %3557 = vmatpush.bf16.msra.mxu0 0
        %3558 = vmatpush.bf16.msra.mxu0 0
        %3559 = vmatpush.bf16.msra.mxu0 %v3343
        %3560 = vmatpush.bf16.msra.mxu0 %v3341
        %3561 = vmatpush.bf16.msra.mxu0 %v3339
        %3562 = vmatpush.bf16.msra.mxu0 %v3337
        %3563 = vmatmul.bf16.gmra.mxu0 %v3515
        %v3564 = vpop.f32.mrf.mxu0
        %v3565 = vadd.f32 %v3289, %v3564
        %v3566 = vpop.f32.mrf.mxu0
        %v3567 = vadd.f32 %v3289, %v3566
        %3568 = vmatmul.bf16.gmra.mxu0 %v3518
        %v3569 = vpop.f32.mrf.mxu0
        %v3570 = vadd.f32 %v3289, %v3569
        %v3571 = vpop.f32.mrf.mxu0
        %v3572 = vadd.f32 %v3289, %v3571
        %3573 = vmatmul.bf16.gmra.mxu0 %v3521
        %v3574 = vpop.f32.mrf.mxu0
        %v3575 = vadd.f32 %v3289, %v3574
        %v3576 = vpop.f32.mrf.mxu0
        %v3577 = vadd.f32 %v3289, %v3576
        %3578 = vmatmul.bf16.gmra.mxu0 %v3524
        %v3579 = vpop.f32.mrf.mxu0
        %v3580 = vadd.f32 %v3289, %v3579
        %v3581 = vpop.f32.mrf.mxu0
        %v3582 = vadd.f32 %v3289, %v3581
        %3583 = vdwg.mxu0
        %s3584 = scalar_lea.vmem %s452, 64
        %v3585 = vld [vmem:[%s3584] sm:$0xff]
        %v3586 = vld [vmem:[%s3584 + $0x8] sm:$0xff]
        %v3587 = vld [vmem:[%s3584 + $0x10] sm:$0xff]
        %v3588 = vld [vmem:[%s3584 + $0x18] sm:$0xff]
        %v3589 = vld [vmem:[%s3584 + $0x20] sm:$0xff]
        %v3590 = vld [vmem:[%s3584 + $0x28] sm:$0xff]
        %v3591 = vld [vmem:[%s3584 + $0x30] sm:$0xff]
        %v3592 = vld [vmem:[%s3584 + $0x38] sm:$0xff]
        %v3593 = vunpack.c.l.bf16 %v3585
        %v3594 = vunpack.c.h.bf16 %v3585
        %v3595 = vunpack.c.l.bf16 %v3586
        %v3596 = vunpack.c.h.bf16 %v3586
        %v3597 = vunpack.c.l.bf16 %v3587
        %v3598 = vunpack.c.h.bf16 %v3587
        %v3599 = vunpack.c.l.bf16 %v3588
        %v3600 = vunpack.c.h.bf16 %v3588
        %v3601 = vunpack.c.l.bf16 %v3589
        %v3602 = vunpack.c.h.bf16 %v3589
        %v3603 = vunpack.c.l.bf16 %v3590
        %v3604 = vunpack.c.h.bf16 %v3590
        %v3605 = vunpack.c.l.bf16 %v3591
        %v3606 = vunpack.c.h.bf16 %v3591
        %v3607 = vunpack.c.l.bf16 %v3592
        %v3608 = vunpack.c.h.bf16 %v3592
        %v3609 = vadd.f32 %v3536, %v3593
        %v3610 = vadd.f32 %v3565, %v3594
        %v3611 = vadd.f32 %v3538, %v3595
        %v3612 = vadd.f32 %v3567, %v3596
        %v3613 = vadd.f32 %v3541, %v3597
        %v3614 = vadd.f32 %v3570, %v3598
        %v3615 = vadd.f32 %v3543, %v3599
        %v3616 = vadd.f32 %v3572, %v3600
        %v3617 = vadd.f32 %v3546, %v3601
        %v3618 = vadd.f32 %v3575, %v3602
        %v3619 = vadd.f32 %v3548, %v3603
        %v3620 = vadd.f32 %v3577, %v3604
        %v3621 = vadd.f32 %v3551, %v3605
        %v3622 = vadd.f32 %v3580, %v3606
        %v3623 = vadd.f32 %v3553, %v3607
        %v3624 = vadd.f32 %v3582, %v3608
        %v3625 = vmax.f32 %v3609, 0.0
        %v3626 = vmax.f32 %v3610, 0.0
        %v3627 = vmax.f32 %v3611, 0.0
        %v3628 = vmax.f32 %v3612, 0.0
        %v3629 = vmax.f32 %v3613, 0.0
        %v3630 = vmax.f32 %v3614, 0.0
        %v3631 = vmax.f32 %v3615, 0.0
        %v3632 = vmax.f32 %v3616, 0.0
        %v3633 = vmax.f32 %v3617, 0.0
        %v3634 = vmax.f32 %v3618, 0.0
        %v3635 = vmax.f32 %v3619, 0.0
        %v3636 = vmax.f32 %v3620, 0.0
        %v3637 = vmax.f32 %v3621, 0.0
        %v3638 = vmax.f32 %v3622, 0.0
        %v3639 = vmax.f32 %v3623, 0.0
        %v3640 = vmax.f32 %v3624, 0.0
        %v3641 = vpack.c.bf16 %v3626, %v3625
        %v3642 = vpack.c.bf16 %v3628, %v3627
        %v3643 = vpack.c.bf16 %v3630, %v3629
        %v3644 = vpack.c.bf16 %v3632, %v3631
        %v3645 = vpack.c.bf16 %v3634, %v3633
        %v3646 = vpack.c.bf16 %v3636, %v3635
        %v3647 = vpack.c.bf16 %v3638, %v3637
        %v3648 = vpack.c.bf16 %v3640, %v3639
        %s3649 = scalar_lea.vmem %s442, 64 [#allocation3]
        %3650 = vst [vmem:[%s3649] sm:$0xff] %v3641
        %3651 = vst [vmem:[%s3649 + $0x8] sm:$0xff] %v3642
        %3652 = vst [vmem:[%s3649 + $0x10] sm:$0xff] %v3643
        %3653 = vst [vmem:[%s3649 + $0x18] sm:$0xff] %v3644
        %3654 = vst [vmem:[%s3649 + $0x20] sm:$0xff] %v3645
        %3655 = vst [vmem:[%s3649 + $0x28] sm:$0xff] %v3646
        %3656 = vst [vmem:[%s3649 + $0x30] sm:$0xff] %v3647
        %3657 = vst [vmem:[%s3649 + $0x38] sm:$0xff] %v3648
        %v3666 = vunpack.c.l.b16 %v3262
        %v3667 = vunpack.c.l.b16 %v3263
        %v3668 = vunpack.c.l.b16 %v3264
        %v3669 = vunpack.c.l.b16 %v3265
        %v3670 = vunpack.c.l.b16 %v3266
        %v3671 = vunpack.c.l.b16 %v3267
        %v3672 = vunpack.c.l.b16 %v3268
        %v3673 = vunpack.c.l.b16 %v3269
        %v3674 = vpack.c.b16 %v3667, %v3666
        %v3675 = vpack.c.b16 %v3669, %v3668
        %v3676 = vpack.c.b16 %v3671, %v3670
        %v3677 = vpack.c.b16 %v3673, %v3672
        %v3679 = vsel %vm1522, %v3674, 0
        %v3682 = vsel %vm1522, %v3675, 0
        %v3685 = vsel %vm1522, %v3676, 0
        %v3688 = vsel %vm1522, %v3677, 0
        %3690 = vmatpush.bf16.msra.mxu0 0
        %3691 = vmatpush.bf16.msra.mxu0 0
        %3692 = vmatpush.bf16.msra.mxu0 0
        %3693 = vmatpush.bf16.msra.mxu0 0
        %3694 = vmatpush.bf16.msra.mxu0 %v3342
        %3695 = vmatpush.bf16.msra.mxu0 %v3340
        %3696 = vmatpush.bf16.msra.mxu0 %v3338
        %3697 = vmatpush.bf16.msra.mxu0 %v3336
        %3698 = vmatmul.bf16.gmra.mxu0 %v3679
        %v3699 = vpop.f32.mrf.mxu0
        %v3700 = vadd.f32 %v3288, %v3699
        %v3701 = vpop.f32.mrf.mxu0
        %v3702 = vadd.f32 %v3288, %v3701
        %3703 = vmatmul.bf16.gmra.mxu0 %v3682
        %v3704 = vpop.f32.mrf.mxu0
        %v3705 = vadd.f32 %v3288, %v3704
        %v3706 = vpop.f32.mrf.mxu0
        %v3707 = vadd.f32 %v3288, %v3706
        %3708 = vmatmul.bf16.gmra.mxu0 %v3685
        %v3709 = vpop.f32.mrf.mxu0
        %v3710 = vadd.f32 %v3288, %v3709
        %v3711 = vpop.f32.mrf.mxu0
        %v3712 = vadd.f32 %v3288, %v3711
        %3713 = vmatmul.bf16.gmra.mxu0 %v3688
        %v3714 = vpop.f32.mrf.mxu0
        %v3715 = vadd.f32 %v3288, %v3714
        %v3716 = vpop.f32.mrf.mxu0
        %v3717 = vadd.f32 %v3288, %v3716
        %3718 = vdwg.mxu0
        %3719 = vmatpush.bf16.msra.mxu0 0
        %3720 = vmatpush.bf16.msra.mxu0 0
        %3721 = vmatpush.bf16.msra.mxu0 0
        %3722 = vmatpush.bf16.msra.mxu0 0
        %3723 = vmatpush.bf16.msra.mxu0 %v3343
        %3724 = vmatpush.bf16.msra.mxu0 %v3341
        %3725 = vmatpush.bf16.msra.mxu0 %v3339
        %3726 = vmatpush.bf16.msra.mxu0 %v3337
        %3727 = vmatmul.bf16.gmra.mxu0 %v3679
        %v3728 = vpop.f32.mrf.mxu0
        %v3729 = vadd.f32 %v3289, %v3728
        %v3730 = vpop.f32.mrf.mxu0
        %v3731 = vadd.f32 %v3289, %v3730
        %3732 = vmatmul.bf16.gmra.mxu0 %v3682
        %v3733 = vpop.f32.mrf.mxu0
        %v3734 = vadd.f32 %v3289, %v3733
        %v3735 = vpop.f32.mrf.mxu0
        %v3736 = vadd.f32 %v3289, %v3735
        %3737 = vmatmul.bf16.gmra.mxu0 %v3685
        %v3738 = vpop.f32.mrf.mxu0
        %v3739 = vadd.f32 %v3289, %v3738
        %v3740 = vpop.f32.mrf.mxu0
        %v3741 = vadd.f32 %v3289, %v3740
        %3742 = vmatmul.bf16.gmra.mxu0 %v3688
        %v3743 = vpop.f32.mrf.mxu0
        %v3744 = vadd.f32 %v3289, %v3743
        %v3745 = vpop.f32.mrf.mxu0
        %v3746 = vadd.f32 %v3289, %v3745
        %3747 = vdwg.mxu0
        %s3748 = scalar_lea.vmem %s452, 128
        %v3749 = vld [vmem:[%s3748] sm:$0xff]
        %v3750 = vld [vmem:[%s3748 + $0x8] sm:$0xff]
        %v3751 = vld [vmem:[%s3748 + $0x10] sm:$0xff]
        %v3752 = vld [vmem:[%s3748 + $0x18] sm:$0xff]
        %v3753 = vld [vmem:[%s3748 + $0x20] sm:$0xff]
        %v3754 = vld [vmem:[%s3748 + $0x28] sm:$0xff]
        %v3755 = vld [vmem:[%s3748 + $0x30] sm:$0xff]
        %v3756 = vld [vmem:[%s3748 + $0x38] sm:$0xff]
        %v3757 = vunpack.c.l.bf16 %v3749
        %v3758 = vunpack.c.h.bf16 %v3749
        %v3759 = vunpack.c.l.bf16 %v3750
        %v3760 = vunpack.c.h.bf16 %v3750
        %v3761 = vunpack.c.l.bf16 %v3751
        %v3762 = vunpack.c.h.bf16 %v3751
        %v3763 = vunpack.c.l.bf16 %v3752
        %v3764 = vunpack.c.h.bf16 %v3752
        %v3765 = vunpack.c.l.bf16 %v3753
        %v3766 = vunpack.c.h.bf16 %v3753
        %v3767 = vunpack.c.l.bf16 %v3754
        %v3768 = vunpack.c.h.bf16 %v3754
        %v3769 = vunpack.c.l.bf16 %v3755
        %v3770 = vunpack.c.h.bf16 %v3755
        %v3771 = vunpack.c.l.bf16 %v3756
        %v3772 = vunpack.c.h.bf16 %v3756
        %v3773 = vadd.f32 %v3700, %v3757
        %v3774 = vadd.f32 %v3729, %v3758
        %v3775 = vadd.f32 %v3702, %v3759
        %v3776 = vadd.f32 %v3731, %v3760
        %v3777 = vadd.f32 %v3705, %v3761
        %v3778 = vadd.f32 %v3734, %v3762
        %v3779 = vadd.f32 %v3707, %v3763
        %v3780 = vadd.f32 %v3736, %v3764
        %v3781 = vadd.f32 %v3710, %v3765
        %v3782 = vadd.f32 %v3739, %v3766
        %v3783 = vadd.f32 %v3712, %v3767
        %v3784 = vadd.f32 %v3741, %v3768
        %v3785 = vadd.f32 %v3715, %v3769
        %v3786 = vadd.f32 %v3744, %v3770
        %v3787 = vadd.f32 %v3717, %v3771
        %v3788 = vadd.f32 %v3746, %v3772
        %v3789 = vmax.f32 %v3773, 0.0
        %v3790 = vmax.f32 %v3774, 0.0
        %v3791 = vmax.f32 %v3775, 0.0
        %v3792 = vmax.f32 %v3776, 0.0
        %v3793 = vmax.f32 %v3777, 0.0
        %v3794 = vmax.f32 %v3778, 0.0
        %v3795 = vmax.f32 %v3779, 0.0
        %v3796 = vmax.f32 %v3780, 0.0
        %v3797 = vmax.f32 %v3781, 0.0
        %v3798 = vmax.f32 %v3782, 0.0
        %v3799 = vmax.f32 %v3783, 0.0
        %v3800 = vmax.f32 %v3784, 0.0
        %v3801 = vmax.f32 %v3785, 0.0
        %v3802 = vmax.f32 %v3786, 0.0
        %v3803 = vmax.f32 %v3787, 0.0
        %v3804 = vmax.f32 %v3788, 0.0
        %v3805 = vpack.c.bf16 %v3790, %v3789
        %v3806 = vpack.c.bf16 %v3792, %v3791
        %v3807 = vpack.c.bf16 %v3794, %v3793
        %v3808 = vpack.c.bf16 %v3796, %v3795
        %v3809 = vpack.c.bf16 %v3798, %v3797
        %v3810 = vpack.c.bf16 %v3800, %v3799
        %v3811 = vpack.c.bf16 %v3802, %v3801
        %v3812 = vpack.c.bf16 %v3804, %v3803
        %s3813 = scalar_lea.vmem %s442, 128 [#allocation3]
        %3814 = vst [vmem:[%s3813] sm:$0xff] %v3805
        %3815 = vst [vmem:[%s3813 + $0x8] sm:$0xff] %v3806
        %3816 = vst [vmem:[%s3813 + $0x10] sm:$0xff] %v3807
        %3817 = vst [vmem:[%s3813 + $0x18] sm:$0xff] %v3808
        %3818 = vst [vmem:[%s3813 + $0x20] sm:$0xff] %v3809
        %3819 = vst [vmem:[%s3813 + $0x28] sm:$0xff] %v3810
        %3820 = vst [vmem:[%s3813 + $0x30] sm:$0xff] %v3811
        %3821 = vst [vmem:[%s3813 + $0x38] sm:$0xff] %v3812
        %v3830 = vunpack.c.l.b16 %v3270
        %v3831 = vunpack.c.l.b16 %v3271
        %v3832 = vunpack.c.l.b16 %v3272
        %v3833 = vunpack.c.l.b16 %v3273
        %v3834 = vunpack.c.l.b16 %v3274
        %v3835 = vunpack.c.l.b16 %v3275
        %v3836 = vunpack.c.l.b16 %v3276
        %v3837 = vunpack.c.l.b16 %v3277
        %v3838 = vpack.c.b16 %v3831, %v3830
        %v3839 = vpack.c.b16 %v3833, %v3832
        %v3840 = vpack.c.b16 %v3835, %v3834
        %v3841 = vpack.c.b16 %v3837, %v3836
        %v3843 = vsel %vm1522, %v3838, 0
        %v3846 = vsel %vm1522, %v3839, 0
        %v3849 = vsel %vm1522, %v3840, 0
        %v3852 = vsel %vm1522, %v3841, 0
        %3854 = vmatpush.bf16.msra.mxu0 0
        %3855 = vmatpush.bf16.msra.mxu0 0
        %3856 = vmatpush.bf16.msra.mxu0 0
        %3857 = vmatpush.bf16.msra.mxu0 0
        %3858 = vmatpush.bf16.msra.mxu0 %v3342
        %3859 = vmatpush.bf16.msra.mxu0 %v3340
        %3860 = vmatpush.bf16.msra.mxu0 %v3338
        %3861 = vmatpush.bf16.msra.mxu0 %v3336
        %3862 = vmatmul.bf16.gmra.mxu0 %v3843
        %v3863 = vpop.f32.mrf.mxu0
        %v3864 = vadd.f32 %v3288, %v3863
        %v3865 = vpop.f32.mrf.mxu0
        %v3866 = vadd.f32 %v3288, %v3865
        %3867 = vmatmul.bf16.gmra.mxu0 %v3846
        %v3868 = vpop.f32.mrf.mxu0
        %v3869 = vadd.f32 %v3288, %v3868
        %v3870 = vpop.f32.mrf.mxu0
        %v3871 = vadd.f32 %v3288, %v3870
        %3872 = vmatmul.bf16.gmra.mxu0 %v3849
        %v3873 = vpop.f32.mrf.mxu0
        %v3874 = vadd.f32 %v3288, %v3873
        %v3875 = vpop.f32.mrf.mxu0
        %v3876 = vadd.f32 %v3288, %v3875
        %3877 = vmatmul.bf16.gmra.mxu0 %v3852
        %v3878 = vpop.f32.mrf.mxu0
        %v3879 = vadd.f32 %v3288, %v3878
        %v3880 = vpop.f32.mrf.mxu0
        %v3881 = vadd.f32 %v3288, %v3880
        %3882 = vdwg.mxu0
        %3883 = vmatpush.bf16.msra.mxu0 0
        %3884 = vmatpush.bf16.msra.mxu0 0
        %3885 = vmatpush.bf16.msra.mxu0 0
        %3886 = vmatpush.bf16.msra.mxu0 0
        %3887 = vmatpush.bf16.msra.mxu0 %v3343
        %3888 = vmatpush.bf16.msra.mxu0 %v3341
        %3889 = vmatpush.bf16.msra.mxu0 %v3339
        %3890 = vmatpush.bf16.msra.mxu0 %v3337
        %3891 = vmatmul.bf16.gmra.mxu0 %v3843
        %v3892 = vpop.f32.mrf.mxu0
        %v3893 = vadd.f32 %v3289, %v3892
        %v3894 = vpop.f32.mrf.mxu0
        %v3895 = vadd.f32 %v3289, %v3894
        %3896 = vmatmul.bf16.gmra.mxu0 %v3846
        %v3897 = vpop.f32.mrf.mxu0
        %v3898 = vadd.f32 %v3289, %v3897
        %v3899 = vpop.f32.mrf.mxu0
        %v3900 = vadd.f32 %v3289, %v3899
        %3901 = vmatmul.bf16.gmra.mxu0 %v3849
        %v3902 = vpop.f32.mrf.mxu0
        %v3903 = vadd.f32 %v3289, %v3902
        %v3904 = vpop.f32.mrf.mxu0
        %v3905 = vadd.f32 %v3289, %v3904
        %3906 = vmatmul.bf16.gmra.mxu0 %v3852
        %v3907 = vpop.f32.mrf.mxu0
        %v3908 = vadd.f32 %v3289, %v3907
        %v3909 = vpop.f32.mrf.mxu0
        %v3910 = vadd.f32 %v3289, %v3909
        %3911 = vdwg.mxu0
        %s3912 = scalar_lea.vmem %s452, 192
        %v3913 = vld [vmem:[%s3912] sm:$0xff]
        %v3914 = vld [vmem:[%s3912 + $0x8] sm:$0xff]
        %v3915 = vld [vmem:[%s3912 + $0x10] sm:$0xff]
        %v3916 = vld [vmem:[%s3912 + $0x18] sm:$0xff]
        %v3917 = vld [vmem:[%s3912 + $0x20] sm:$0xff]
        %v3918 = vld [vmem:[%s3912 + $0x28] sm:$0xff]
        %v3919 = vld [vmem:[%s3912 + $0x30] sm:$0xff]
        %v3920 = vld [vmem:[%s3912 + $0x38] sm:$0xff]
        %v3921 = vunpack.c.l.bf16 %v3913
        %v3922 = vunpack.c.h.bf16 %v3913
        %v3923 = vunpack.c.l.bf16 %v3914
        %v3924 = vunpack.c.h.bf16 %v3914
        %v3925 = vunpack.c.l.bf16 %v3915
        %v3926 = vunpack.c.h.bf16 %v3915
        %v3927 = vunpack.c.l.bf16 %v3916
        %v3928 = vunpack.c.h.bf16 %v3916
        %v3929 = vunpack.c.l.bf16 %v3917
        %v3930 = vunpack.c.h.bf16 %v3917
        %v3931 = vunpack.c.l.bf16 %v3918
        %v3932 = vunpack.c.h.bf16 %v3918
        %v3933 = vunpack.c.l.bf16 %v3919
        %v3934 = vunpack.c.h.bf16 %v3919
        %v3935 = vunpack.c.l.bf16 %v3920
        %v3936 = vunpack.c.h.bf16 %v3920
        %v3937 = vadd.f32 %v3864, %v3921
        %v3938 = vadd.f32 %v3893, %v3922
        %v3939 = vadd.f32 %v3866, %v3923
        %v3940 = vadd.f32 %v3895, %v3924
        %v3941 = vadd.f32 %v3869, %v3925
        %v3942 = vadd.f32 %v3898, %v3926
        %v3943 = vadd.f32 %v3871, %v3927
        %v3944 = vadd.f32 %v3900, %v3928
        %v3945 = vadd.f32 %v3874, %v3929
        %v3946 = vadd.f32 %v3903, %v3930
        %v3947 = vadd.f32 %v3876, %v3931
        %v3948 = vadd.f32 %v3905, %v3932
        %v3949 = vadd.f32 %v3879, %v3933
        %v3950 = vadd.f32 %v3908, %v3934
        %v3951 = vadd.f32 %v3881, %v3935
        %v3952 = vadd.f32 %v3910, %v3936
        %v3953 = vmax.f32 %v3937, 0.0
        %v3954 = vmax.f32 %v3938, 0.0
        %v3955 = vmax.f32 %v3939, 0.0
        %v3956 = vmax.f32 %v3940, 0.0
        %v3957 = vmax.f32 %v3941, 0.0
        %v3958 = vmax.f32 %v3942, 0.0
        %v3959 = vmax.f32 %v3943, 0.0
        %v3960 = vmax.f32 %v3944, 0.0
        %v3961 = vmax.f32 %v3945, 0.0
        %v3962 = vmax.f32 %v3946, 0.0
        %v3963 = vmax.f32 %v3947, 0.0
        %v3964 = vmax.f32 %v3948, 0.0
        %v3965 = vmax.f32 %v3949, 0.0
        %v3966 = vmax.f32 %v3950, 0.0
        %v3967 = vmax.f32 %v3951, 0.0
        %v3968 = vmax.f32 %v3952, 0.0
        %v3969 = vpack.c.bf16 %v3954, %v3953
        %v3970 = vpack.c.bf16 %v3956, %v3955
        %v3971 = vpack.c.bf16 %v3958, %v3957
        %v3972 = vpack.c.bf16 %v3960, %v3959
        %v3973 = vpack.c.bf16 %v3962, %v3961
        %v3974 = vpack.c.bf16 %v3964, %v3963
        %v3975 = vpack.c.bf16 %v3966, %v3965
        %v3976 = vpack.c.bf16 %v3968, %v3967
        %s3977 = scalar_lea.vmem %s442, 192 [#allocation3]
        %3978 = vst [vmem:[%s3977] sm:$0xff] %v3969
        %3979 = vst [vmem:[%s3977 + $0x8] sm:$0xff] %v3970
        %3980 = vst [vmem:[%s3977 + $0x10] sm:$0xff] %v3971
        %3981 = vst [vmem:[%s3977 + $0x18] sm:$0xff] %v3972
        %3982 = vst [vmem:[%s3977 + $0x20] sm:$0xff] %v3973
        %3983 = vst [vmem:[%s3977 + $0x28] sm:$0xff] %v3974
        %3984 = vst [vmem:[%s3977 + $0x30] sm:$0xff] %v3975
        %3985 = vst [vmem:[%s3977 + $0x38] sm:$0xff] %v3976
        %s3986 = sand.u32 %s271, 1
        %s3987 = scalar_lea.sflag [#allocation4], %s3986
        %s3988 = sand.u32 %s271, 1
        %s3989 = smul.addr %s3988, 256
        %s3990 = scalar_lea.vmem [#allocation3], %s3989
        // Predicated region
        $region57: #{bottleneck_forward.1} parent=55 // pred_check
          %p3991 = pneg %p281
        $region58: #{bottleneck_forward.1} parent=55 // pred_check_branch
          %3993 = sbr.rel (%p3991) target = $region60
        $region59: #{bottleneck_forward.1} parent=55 // pred_region
          %s3994 = smul.u32 16, %s28
          %3996 = vsyncadd %s3987, 0
          %s3997 = smul.addr %s3994, 4
          %s3998 = smul.addr %s27, 64
          %s3999 = sadd.s32 %s3997, %s3998
          %s4000 = smul.addr %s3999, 4
          %s4001 = scalar_lea.hbm %s9, %s4000
          %s4002 = sshll.u32 %s3990, 4
          %s4003 = int_to_ptr.vmem [resolvable:$true] %s4002
          %s4004 = sshll.u32 %s4001, 4
          %s4005 = int_to_ptr.hbm [resolvable:$true] %s4004
          %4010 = dma.vmem_to_hbm [thread:$0]  %s4003, 4096, %s4005, %s3987, 128, 128, 8
        $region60: #{bottleneck_forward.1} parent=55 // pred_fallthru
          _
      $region56: #{bottleneck_forward.1} parent=5 // pred_fallthru
        _
      %p4011 = scmp.le.s32.totalorder 2, %s18
      // Predicated region
      $region61: #{bottleneck_forward.1} parent=5 // pred_check
        %p4012 = pneg %p4011
      $region62: #{bottleneck_forward.1} parent=5 // pred_check_branch
        %4014 = sbr.rel (%p4012) target = $region64
      $region63: #{bottleneck_forward.1} parent=5 // pred_region
        %s4015 = ssub.s32 %s18, 2
        // Predicated region
        $region65: #{bottleneck_forward.1} parent=63 // pred_check
          %p4016 = pneg %p287
        $region66: #{bottleneck_forward.1} parent=63 // pred_check_branch
          %4018 = sbr.rel (%p4016) target = $region68
        $region67: #{bottleneck_forward.1} parent=63 // pred_region
          %s4019 = sand.u32 %s272, 1
          %s4020 = scalar_lea.sflag [#allocation4], %s4019
          %s4021 = sand.u32 %s272, 1
          %s4022 = smul.addr %s4021, 256
          %s4023 = scalar_lea.vmem [#allocation3], %s4022
          %4025 = dma.done %s4020, 4096
        $region68: #{bottleneck_forward.1} parent=63 // pred_fallthru
          _
      $region64: #{bottleneck_forward.1} parent=5 // pred_fallthru
        _
    $region6: #{bottleneck_forward.1} parent=1 // loop_footer
      %s22 = sadd.s32 1, %s18
    $region7: #{bottleneck_forward.1} parent=1 // loop_footer_branch
      %17 = sbr.rel target = $region3
    $region8: #{bottleneck_forward.1} parent=1 // loop_exit
      _
    %4026 = vsyncpa [#allocation4], 1
    %s4027 = scalar_lea.sflag [#allocation4], 1
    %4028 = vsyncpa %s4027, 1

</llo_original>
